<compile_context>
chip_gen: v5e
topology: v5e:2x2
jax: 0.10.0
libtpu: 0.0.40
codegen_flags: <defaults>
</compile_context>

<pallas_src>
import math

import jax
import jax.numpy as jnp
from jax.experimental import pallas as pl
from jax.experimental.pallas import tpu as pltpu


# ----------------------------------------------------------------------------- helpers

def _layernorm(u, w, b, eps=1e-5):
    mu = jnp.mean(u, axis=-1, keepdims=True)
    uc = u - mu
    var = jnp.mean(uc * uc, axis=-1, keepdims=True)
    return uc * jax.lax.rsqrt(var + eps) * w + b


def _gelu_tanh(u):
    # tanh-GELU: transcendental goes to the EUP slot instead of a long VALU polynomial.
    return 0.5 * u * (1.0 + jnp.tanh(0.7978845608028654 * (u + 0.044715 * u * u * u)))


# ----------------------------------------------------------------------------- kernel

def _transformer_kernel(x_ref, wbig_ref, bv_ref, wout_ref, wf1_ref, bf1_ref,
                        wf2_ref, vecs_ref, xo_ref, attn_ref):
    bb, n, dim = x_ref.shape                    # bb batches folded into the M dimension
    depth = wbig_ref.shape[0]
    heads = attn_ref.shape[1]
    dvp = bv_ref.shape[2]                       # per-head value width, lane-padded to 128
    inner = (wbig_ref.shape[2] - dvp) // 2      # heads * dim_head
    dh = inner // heads

    x = x_ref[...].astype(jnp.float32).reshape(bb * n, dim)

    # TODO(synk): for deep stacks switch this static unroll to lax.fori_loop over layers
    #             (weights already support dynamic first-axis indexing); depth=2 is fine.
    for l in range(depth):
        vecs = vecs_ref[l]                      # (6,dim): ln1_w, ln1_b, b_out, ln2_w, ln2_b, b_ff2

        # ---- PreNorm -> ConvalueAttention ------------------------------------
        xn = _layernorm(x, vecs[0:1, :], vecs[1:2, :])
        # one fused MXU matmul -> q (scale pre-folded), k and the folded-Convalue value
        big = jnp.dot(xn, wbig_ref[l], preferred_element_type=jnp.float32)
        q4 = big[:, :inner].reshape(bb, n, heads, dh)
        k4 = big[:, inner:2 * inner].reshape(bb, n, heads, dh)
        v3 = (big[:, 2 * inner:] + bv_ref[l]).reshape(bb, n, dvp)   # same v for every head
        wout3 = wout_ref[l]                     # (heads, dvp, dim)

        outs = []
        for b in range(bb):                     # static; bb is 1 (v7x grid) or B (folded)
            qh = jnp.transpose(q4[b], (1, 0, 2))        # (heads, n, dh)
            kh = jnp.transpose(k4[b], (1, 0, 2))
            logits = jnp.einsum('hnd,hmd->hnm', qh, kh,
                                preferred_element_type=jnp.float32)  # (heads, n, n)
            mx = jnp.max(logits, axis=-1, keepdims=True)
            e = jnp.exp(logits - mx)
            a = e * pl.reciprocal(jnp.sum(e, axis=-1, keepdims=True), approx=True)
            if l == depth - 1:                  # module returns the LAST layer's attention
                attn_ref[b] = a.astype(attn_ref.dtype)   # single stacked store
            # v shared across heads -> one (heads*n, n) @ (n, dvp) MXU push
            av = jnp.dot(a.reshape(heads * n, n), v3[b],
                         preferred_element_type=jnp.float32).reshape(heads, n, dvp)
            ph = jnp.einsum('hnd,hdc->hnc', av, wout3,
                            preferred_element_type=jnp.float32)      # (heads, n, dim)
            outs.append(jnp.sum(ph, axis=0))    # head accumulation
        proj = outs[0] if bb == 1 else jnp.concatenate(outs, axis=0)
        x = proj + vecs[2:3, :] + x

        # ---- PreNorm -> FeedForward ------------------------------------------
        xn2 = _layernorm(x, vecs[3:4, :], vecs[4:5, :])
        h1 = jnp.dot(xn2, wf1_ref[l], preferred_element_type=jnp.float32) + bf1_ref[l]
        h1 = _gelu_tanh(h1)
        ff = jnp.dot(h1, wf2_ref[l], preferred_element_type=jnp.float32) + vecs[5:6, :]
        x = ff + x

    xo_ref[...] = x.reshape(bb, n, dim).astype(xo_ref.dtype)


# ----------------------------------------------------------------------------- wrapper

def _conv_banded_matrix(w, d_in):
    """w: (c_out, c_in, K) PyTorch conv taps.  Returns M of shape
    (c_in*d_in, c_out*d_out), d_out = d_in-K+1, such that
      out[t, co*d_out + j] = sum_{ci,i} in[t, ci*d_in + i] * M[ci*d_in+i, co*d_out+j]
    reproduces Conv2d with kernel (1, K), stride 1, applied along the last axis."""
    c_out, c_in, K = w.shape
    d_out = d_in - K + 1
    i = jnp.arange(d_in)[:, None]
    j = jnp.arange(d_out)[None, :]
    kk = i - j
    valid = (kk >= 0) & (kk < K)
    kc = jnp.clip(kk, 0, K - 1)
    wk = w[:, :, kc]                                        # (c_out, c_in, d_in, d_out)
    wk = jnp.where(valid[None, None, :, :], wk, 0.0)
    return wk.transpose(1, 2, 0, 3).reshape(c_in * d_in, c_out * d_out)


def _pack_layer(p, dim, heads, dim_head):
    inner = heads * dim_head
    scale = float(dim_head) ** -0.5
    c1, _, _, K1 = p['conv1_w'].shape
    c2, _, _, K2 = p['conv2_w'].shape
    d1 = dim - K1 + 1
    d2 = d1 - K2 + 1
    dv = c2 * d2
    dvp = ((dv + 127) // 128) * 128                          # lane-pad per-head value width
    M1 = _conv_banded_matrix(p['conv1_w'][:, :, 0, :], dim)  # (dim, c1*d1)
    M2 = _conv_banded_matrix(p['conv2_w'][:, :, 0, :], d1)   # (c1*d1, dv)
    wv = M1 @ M2                                             # folded Convalue weight
    bv = jnp.repeat(p['conv1_b'], d1) @ M2 + jnp.repeat(p['conv2_b'], d2)
    wv = jnp.pad(wv, ((0, 0), (0, dvp - dv)))
    bv = jnp.pad(bv, (0, dvp - dv))
    # fold the 1/sqrt(dim_head) attention scale into the q rows of to_qk
    wqk = jnp.concatenate([p['wqk'][:inner] * scale, p['wqk'][inner:]], axis=0)
    wbig = jnp.concatenate([wqk.T, wv], axis=-1)             # (dim, 2*inner + dvp)
    wout3 = p['wout'].T.reshape(heads, dv, dim)
    wout3 = jnp.pad(wout3, ((0, 0), (0, dvp - dv), (0, 0)))  # (heads, dvp, dim)
    vecs = jnp.stack([p['ln1_w'], p['ln1_b'], p['bout'],
                      p['ln2_w'], p['ln2_b'], p['bff2']], axis=0)
    return (wbig, bv[None, :], wout3, p['wff1'].T, p['bff1'][None, :],
            p['wff2'].T, vecs)


def convalue_transformer_forward(x, params, *, heads, dim_head, batch_block=1):
    B, n, dim = x.shape
    depth = len(params)
    assert depth >= 1, "depth must be >= 1 (attention output would be undefined)"
    assert B % batch_block == 0
    bb = batch_block

    packed = [_pack_layer(p, dim, heads, dim_head) for p in params]
    WBIG, BV, WOUT, WF1, BF1, WF2, VECS = tuple(jnp.stack(ws) for ws in zip(*packed))
    weight_ops = (WBIG, BV, WOUT, WF1, BF1, WF2, VECS)

    def _zmap(nd):
        return lambda b: (0,) * nd

    in_specs = [pl.BlockSpec((bb, n, dim), lambda b: (b, 0, 0))]
    in_specs += [pl.BlockSpec(w.shape, _zmap(w.ndim)) for w in weight_ops]
    out_specs = (pl.BlockSpec((bb, n, dim), lambda b: (b, 0, 0)),
                 pl.BlockSpec((bb, heads, n, n), lambda b: (b, 0, 0, 0)))
    out_shape = (jax.ShapeDtypeStruct((B, n, dim), jnp.float32),
                 jax.ShapeDtypeStruct((B, heads, n, n), jnp.float32))

    # advisory cost estimate for XLA scheduling around the custom call
    inner = heads * dim_head
    dvp = int(BV.shape[-1])
    mlp = int(WF1.shape[-1])
    flops = B * depth * (2 * n * dim * (2 * inner + dvp)
                         + 2 * heads * n * n * dim_head
                         + 2 * heads * n * n * dvp
                         + 2 * heads * n * dvp * dim
                         + 4 * n * dim * mlp)
    transcendentals = B * depth * (heads * n * n + n * mlp + heads * n + 2 * n)
    bytes_accessed = (2 * B * n * dim + B * heads * n * n) * 4 \
        + sum(int(w.size) * 4 for w in weight_ops)
    cost = pl.CostEstimate(flops=flops, transcendentals=transcendentals,
                           bytes_accessed=bytes_accessed)

    fn = pl.pallas_call(
        _transformer_kernel,
        out_shape=out_shape,
        grid=(B // bb,),
        in_specs=in_specs,
        out_specs=out_specs,
        compiler_params=pltpu.CompilerParams(dimension_semantics=("parallel",)),
        cost_estimate=cost,
    )
    return fn(x.astype(jnp.float32), *weight_ops)


# ----------------------------------------------------------------------------- params & reference

def init_params(key, dim, depth, heads, dim_head, mlp_dim):
    inner = heads * dim_head
    c1, c2, K1, K2 = 2, 4, 25, 10
    d2 = dim - K1 - K2 + 2
    dv = c2 * d2
    params = []
    for kl in jax.random.split(key, depth):
        ks = iter(jax.random.split(kl, 16))

        def unif(k, shape, fan_in):
            b = 1.0 / math.sqrt(fan_in)
            return jax.random.uniform(k, shape, jnp.float32, -b, b)

        params.append({
            'ln1_w': 1.0 + 0.1 * jax.random.normal(next(ks), (dim,), jnp.float32),
            'ln1_b': 0.05 * jax.random.normal(next(ks), (dim,), jnp.float32),
            'wqk': unif(next(ks), (2 * inner, dim), dim),
            'conv1_w': unif(next(ks), (c1, 1, 1, K1), 1 * K1),
            'conv1_b': unif(next(ks), (c1,), 1 * K1),
            'conv2_w': unif(next(ks), (c2, c1, 1, K2), c1 * K2),
            'conv2_b': unif(next(ks), (c2,), c1 * K2),
            'wout': unif(next(ks), (dim, heads * dv), heads * dv),
            'bout': unif(next(ks), (dim,), heads * dv),
            'ln2_w': 1.0 + 0.1 * jax.random.normal(next(ks), (dim,), jnp.float32),
            'ln2_b': 0.05 * jax.random.normal(next(ks), (dim,), jnp.float32),
            'wff1': unif(next(ks), (mlp_dim, dim), dim),
            'bff1': unif(next(ks), (mlp_dim,), dim),
            'wff2': unif(next(ks), (dim, mlp_dim), mlp_dim),
            'bff2': unif(next(ks), (dim,), mlp_dim),
        })
    return params


def reference_forward(x, params, heads, dim_head):
    """Pure-JAX mirror of the PyTorch ConvalueTransformer forward (dropout=0)."""
    hi = jax.lax.Precision.HIGHEST
    B, n, dim = x.shape
    inner = heads * dim_head
    attention = None
    for p in params:
        # PreNorm -> ConvalueAttention
        xn = _layernorm(x, p['ln1_w'], p['ln1_b'])
        qk = jnp.dot(xn, p['wqk'].T, precision=hi)
        q, k = qk[..., :inner], qk[..., inner:]
        qh = q.reshape(B, n, heads, dim_head).transpose(0, 2, 1, 3)
        kh = k.reshape(B, n, heads, dim_head).transpose(0, 2, 1, 3)
        # Convalue: two Conv2d's with kernel (1,K) along the feature axis
        w1, b1, w2, b2 = p['conv1_w'], p['conv1_b'], p['conv2_w'], p['conv2_b']
        c1, _, _, K1 = w1.shape
        c2, _, _, K2 = w2.shape
        d1, d2 = dim - K1 + 1, dim - K1 - K2 + 2
        o1 = jnp.zeros((B, c1, n, d1), jnp.float32)
        for t in range(K1):
            o1 = o1 + xn[:, None, :, t:t + d1] * w1[:, 0, 0, t][None, :, None, None]
        o1 = o1 + b1[None, :, None, None]
        o2 = jnp.zeros((B, c2, n, d2), jnp.float32)
        for t in range(K2):
            o2 = o2 + jnp.einsum('bcnj,dc->bdnj', o1[:, :, :, t:t + d2],
                                 w2[:, :, 0, t], precision=hi)
        o2 = o2 + b2[None, :, None, None]
        v = o2.transpose(0, 2, 1, 3).reshape(B, n, c2 * d2)      # 'b c t d -> b t (c d)'
        dots = jnp.einsum('bhnd,bhmd->bhnm', qh, kh, precision=hi) * (dim_head ** -0.5)
        attention = jax.nn.softmax(dots, axis=-1)
        out = jnp.einsum('bhnm,bmv->bhnv', attention, v, precision=hi)
        out = out.transpose(0, 2, 1, 3).reshape(B, n, heads * c2 * d2)
        x = jnp.dot(out, p['wout'].T, precision=hi) + p['bout'] + x
        # PreNorm -> FeedForward
        xn2 = _layernorm(x, p['ln2_w'], p['ln2_b'])
        h1 = jax.nn.gelu(jnp.dot(xn2, p['wff1'].T, precision=hi) + p['bff1'],
                         approximate=False)
        x = jnp.dot(h1, p['wff2'].T, precision=hi) + p['bff2'] + x
    return x, attention


# ----------------------------------------------------------------------------- main

if __name__ == "__main__":
    B, n, dim = 2, 8, 64
    depth, heads, dim_head, mlp_dim = 2, 8, 16, 64
    # the module hard-codes Linear(992, dim): heads * 4 * (dim - 33) must equal 992
    assert heads * 4 * (dim - 33) == 992

    key = jax.random.PRNGKey(0)
    kx, kp = jax.random.split(key)
    x = jax.random.normal(kx, (B, n, dim), jnp.float32)
    params = init_params(kp, dim, depth, heads, dim_head, mlp_dim)

    ref_out, ref_attn = reference_forward(x, params, heads, dim_head)
    tol_x = 3e-2 * (1.0 + float(jnp.max(jnp.abs(ref_out))))

    # batch_block=1 -> grid=(B,), one batch per program (maps onto v7x's two TCs).
    # batch_block=B -> grid=(1,), batch folded into the matmul M dim (best on v5e/v6e).
    for bb in (1, B):
        out, attn = convalue_transformer_forward(x, params, heads=heads,
                                                 dim_head=dim_head, batch_block=bb)
        out = jax.block_until_ready(out)
        attn = jax.block_until_ready(attn)
        assert out.shape == (B, n, dim), out.shape
        assert attn.shape == (B, heads, n, n), attn.shape
        err_x = float(jnp.max(jnp.abs(out - ref_out)))
        err_a = float(jnp.max(jnp.abs(attn - ref_attn)))
        assert err_x < tol_x, f"batch_block={bb}: output max abs err {err_x}"
        assert err_a < 2e-2, f"batch_block={bb}: attention max abs err {err_a}"

    print("KERNEL_OK")
</pallas_src>

<mosaic_0001>
module attributes {stable_mosaic.version = 11 : i64} {
  func.func @_transformer_kernel(%arg0: i32, %arg1: memref<1x8x64xf32, #tpu.memory_space<vmem>>, %arg2: memref<2x64x384xf32, #tpu.memory_space<vmem>>, %arg3: memref<2x1x128xf32, #tpu.memory_space<vmem>>, %arg4: memref<2x8x128x64xf32, #tpu.memory_space<vmem>>, %arg5: memref<2x64x64xf32, #tpu.memory_space<vmem>>, %arg6: memref<2x1x64xf32, #tpu.memory_space<vmem>>, %arg7: memref<2x64x64xf32, #tpu.memory_space<vmem>>, %arg8: memref<2x6x64xf32, #tpu.memory_space<vmem>>, %arg9: memref<1x8x64xf32, #tpu.memory_space<vmem>>, %arg10: memref<1x8x8x8xf32, #tpu.memory_space<vmem>>) attributes {dimension_semantics = [#tpu.dimension_semantics<parallel>], iteration_bounds = array<i64: 2>, scalar_prefetch = 0 : i64, scratch_operands = 0 : i64, tpu.core_type = #tpu.core_type<tc>, window_params = [{transform_indices = @transform_0, window_bounds = array<i64: 1, 8, 64>}, {pipeline_mode = #tpu.pipeline_mode<synchronous>, transform_indices = @transform_1, window_bounds = array<i64: 2, 64, 384>}, {pipeline_mode = #tpu.pipeline_mode<synchronous>, transform_indices = @transform_2, window_bounds = array<i64: 2, 1, 128>}, {pipeline_mode = #tpu.pipeline_mode<synchronous>, transform_indices = @transform_3, window_bounds = array<i64: 2, 8, 128, 64>}, {pipeline_mode = #tpu.pipeline_mode<synchronous>, transform_indices = @transform_4, window_bounds = array<i64: 2, 64, 64>}, {pipeline_mode = #tpu.pipeline_mode<synchronous>, transform_indices = @transform_5, window_bounds = array<i64: 2, 1, 64>}, {pipeline_mode = #tpu.pipeline_mode<synchronous>, transform_indices = @transform_6, window_bounds = array<i64: 2, 64, 64>}, {pipeline_mode = #tpu.pipeline_mode<synchronous>, transform_indices = @transform_7, window_bounds = array<i64: 2, 6, 64>}, {transform_indices = @transform_8, window_bounds = array<i64: 1, 8, 64>}, {transform_indices = @transform_9, window_bounds = array<i64: 1, 8, 8, 8>}]} {
    %c0 = arith.constant 0 : index
    %c0_0 = arith.constant 0 : index
    %c0_1 = arith.constant 0 : index
    %0 = vector.load %arg1[%c0, %c0_0, %c0_1] : memref<1x8x64xf32, #tpu.memory_space<vmem>>, vector<1x8x64xf32>
    %1 = vector.shape_cast %0 : vector<1x8x64xf32> to vector<8x64xf32>
    %c0_2 = arith.constant 0 : index
    %c0_3 = arith.constant 0 : index
    %c0_4 = arith.constant 0 : index
    %2 = vector.load %arg8[%c0_2, %c0_3, %c0_4] : memref<2x6x64xf32, #tpu.memory_space<vmem>>, vector<1x6x64xf32>
    %3 = vector.shape_cast %2 : vector<1x6x64xf32> to vector<6x64xf32>
    %4 = vector.extract_strided_slice %3 {offsets = [0, 0], sizes = [1, 64], strides = [1, 1]} : vector<6x64xf32> to vector<1x64xf32>
    %5 = vector.extract_strided_slice %3 {offsets = [1, 0], sizes = [1, 64], strides = [1, 1]} : vector<6x64xf32> to vector<1x64xf32>
    %cst = arith.constant dense<0.000000e+00> : vector<8xf32>
    %6 = vector.multi_reduction <add>, %1, %cst [1] : vector<8x64xf32> to vector<8xf32>
    %7 = vector.shape_cast %6 : vector<8xf32> to vector<8x1xf32>
    %cst_5 = arith.constant 6.400000e+01 : f32
    %8 = vector.broadcast %cst_5 : f32 to vector<8x1xf32>
    %9 = arith.divf %7, %8 : vector<8x1xf32>
    %10 = vector.broadcast %9 : vector<8x1xf32> to vector<8x64xf32>
    %11 = arith.subf %1, %10 : vector<8x64xf32>
    %12 = arith.mulf %11, %11 : vector<8x64xf32>
    %cst_6 = arith.constant dense<0.000000e+00> : vector<8xf32>
    %13 = vector.multi_reduction <add>, %12, %cst_6 [1] : vector<8x64xf32> to vector<8xf32>
    %14 = vector.shape_cast %13 : vector<8xf32> to vector<8x1xf32>
    %cst_7 = arith.constant 6.400000e+01 : f32
    %15 = vector.broadcast %cst_7 : f32 to vector<8x1xf32>
    %16 = arith.divf %14, %15 : vector<8x1xf32>
    %cst_8 = arith.constant 9.99999974E-6 : f32
    %17 = vector.broadcast %cst_8 : f32 to vector<8x1xf32>
    %18 = arith.addf %16, %17 : vector<8x1xf32>
    %19 = math.rsqrt %18 : vector<8x1xf32>
    %20 = vector.broadcast %19 : vector<8x1xf32> to vector<8x64xf32>
    %21 = arith.mulf %11, %20 : vector<8x64xf32>
    %22 = vector.broadcast %4 : vector<1x64xf32> to vector<8x64xf32>
    %23 = arith.mulf %21, %22 : vector<8x64xf32>
    %24 = vector.broadcast %5 : vector<1x64xf32> to vector<8x64xf32>
    %25 = arith.addf %23, %24 : vector<8x64xf32>
    %c0_9 = arith.constant 0 : index
    %c0_10 = arith.constant 0 : index
    %c0_11 = arith.constant 0 : index
    %26 = vector.load %arg2[%c0_9, %c0_10, %c0_11] : memref<2x64x384xf32, #tpu.memory_space<vmem>>, vector<1x64x384xf32>
    %27 = vector.shape_cast %26 : vector<1x64x384xf32> to vector<64x384xf32>
    %cst_12 = arith.constant dense<0.000000e+00> : vector<8x384xf32>
    %28 = tpu.matmul %25, %27, %cst_12 {dimension_numbers = #tpu.dot_dimension_numbers<[1], [0], [0], [1], [0, 0, 1, 1], [], []>} : vector<8x64xf32>, vector<64x384xf32>, vector<8x384xf32> -> vector<8x384xf32>
    %29 = vector.extract_strided_slice %28 {offsets = [0, 0], sizes = [8, 128], strides = [1, 1]} : vector<8x384xf32> to vector<8x128xf32>
    %30 = vector.shape_cast %29 : vector<8x128xf32> to vector<1x8x8x16xf32>
    %31 = vector.extract_strided_slice %28 {offsets = [0, 128], sizes = [8, 128], strides = [1, 1]} : vector<8x384xf32> to vector<8x128xf32>
    %32 = vector.shape_cast %31 : vector<8x128xf32> to vector<1x8x8x16xf32>
    %33 = vector.extract_strided_slice %28 {offsets = [0, 256], sizes = [8, 128], strides = [1, 1]} : vector<8x384xf32> to vector<8x128xf32>
    %c0_13 = arith.constant 0 : index
    %c0_14 = arith.constant 0 : index
    %c0_15 = arith.constant 0 : index
    %34 = vector.load %arg3[%c0_13, %c0_14, %c0_15] : memref<2x1x128xf32, #tpu.memory_space<vmem>>, vector<1x1x128xf32>
    %35 = vector.shape_cast %34 : vector<1x1x128xf32> to vector<1x128xf32>
    %36 = vector.broadcast %35 : vector<1x128xf32> to vector<8x128xf32>
    %37 = arith.addf %33, %36 : vector<8x128xf32>
    %38 = vector.shape_cast %37 : vector<8x128xf32> to vector<1x8x128xf32>
    %c0_16 = arith.constant 0 : index
    %c0_17 = arith.constant 0 : index
    %c0_18 = arith.constant 0 : index
    %c0_19 = arith.constant 0 : index
    %39 = vector.load %arg4[%c0_16, %c0_17, %c0_18, %c0_19] : memref<2x8x128x64xf32, #tpu.memory_space<vmem>>, vector<1x8x128x64xf32>
    %40 = vector.shape_cast %39 : vector<1x8x128x64xf32> to vector<8x128x64xf32>
    %41 = vector.shape_cast %30 : vector<1x8x8x16xf32> to vector<8x8x16xf32>
    %42 = tpu.transpose %41, [1, 0, 2] : vector<8x8x16xf32> -> vector<8x8x16xf32>
    %43 = vector.shape_cast %32 : vector<1x8x8x16xf32> to vector<8x8x16xf32>
    %44 = tpu.transpose %43, [1, 0, 2] : vector<8x8x16xf32> -> vector<8x8x16xf32>
    "tpu.trace_start"() <{level = 10 : i32, message = "hnd,hmd->hnm"}> : () -> ()
    %cst_20 = arith.constant dense<0.000000e+00> : vector<8x8x8xf32>
    %45 = tpu.matmul %42, %44, %cst_20 {dimension_numbers = #tpu.dot_dimension_numbers<[2], [2], [1], [1], [0, 0, 0, 1, 1, 1], [0], [0]>} : vector<8x8x16xf32>, vector<8x8x16xf32>, vector<8x8x8xf32> -> vector<8x8x8xf32>
    "tpu.trace_stop"() : () -> ()
    %cst_21 = arith.constant dense<0xFF800000> : vector<8x8xf32>
    %46 = vector.multi_reduction <maximumf>, %45, %cst_21 [2] : vector<8x8x8xf32> to vector<8x8xf32>
    %47 = vector.shape_cast %46 : vector<8x8xf32> to vector<8x8x1xf32>
    %48 = vector.broadcast %47 : vector<8x8x1xf32> to vector<8x8x8xf32>
    %49 = arith.subf %45, %48 : vector<8x8x8xf32>
    %50 = math.exp %49 : vector<8x8x8xf32>
    %cst_22 = arith.constant dense<0.000000e+00> : vector<8x8xf32>
    %51 = vector.multi_reduction <add>, %50, %cst_22 [2] : vector<8x8x8xf32> to vector<8x8xf32>
    %52 = vector.shape_cast %51 : vector<8x8xf32> to vector<8x8x1xf32>
    %53 = tpu.reciprocal %52 {approx = true} : vector<8x8x1xf32> -> vector<8x8x1xf32>
    %54 = vector.broadcast %53 : vector<8x8x1xf32> to vector<8x8x8xf32>
    %55 = arith.mulf %50, %54 : vector<8x8x8xf32>
    %56 = vector.shape_cast %55 : vector<8x8x8xf32> to vector<64x8xf32>
    %57 = vector.shape_cast %38 : vector<1x8x128xf32> to vector<8x128xf32>
    %cst_23 = arith.constant dense<0.000000e+00> : vector<64x128xf32>
    %58 = tpu.matmul %56, %57, %cst_23 {dimension_numbers = #tpu.dot_dimension_numbers<[1], [0], [0], [1], [0, 0, 1, 1], [], []>} : vector<64x8xf32>, vector<8x128xf32>, vector<64x128xf32> -> vector<64x128xf32>
    %59 = vector.shape_cast %58 : vector<64x128xf32> to vector<8x8x128xf32>
    "tpu.trace_start"() <{level = 10 : i32, message = "hnd,hdc->hnc"}> : () -> ()
    %cst_24 = arith.constant dense<0.000000e+00> : vector<8x8x64xf32>
    %60 = tpu.matmul %59, %40, %cst_24 {dimension_numbers = #tpu.dot_dimension_numbers<[2], [1], [1], [2], [0, 0, 0, 1, 1, 2], [0], [0]>} : vector<8x8x128xf32>, vector<8x128x64xf32>, vector<8x8x64xf32> -> vector<8x8x64xf32>
    "tpu.trace_stop"() : () -> ()
    %cst_25 = arith.constant dense<0.000000e+00> : vector<8x64xf32>
    %61 = vector.multi_reduction <add>, %60, %cst_25 [0] : vector<8x8x64xf32> to vector<8x64xf32>
    %62 = vector.extract_strided_slice %3 {offsets = [2, 0], sizes = [1, 64], strides = [1, 1]} : vector<6x64xf32> to vector<1x64xf32>
    %63 = vector.broadcast %62 : vector<1x64xf32> to vector<8x64xf32>
    %64 = arith.addf %61, %63 : vector<8x64xf32>
    %65 = arith.addf %64, %1 : vector<8x64xf32>
    %66 = vector.extract_strided_slice %3 {offsets = [3, 0], sizes = [1, 64], strides = [1, 1]} : vector<6x64xf32> to vector<1x64xf32>
    %67 = vector.extract_strided_slice %3 {offsets = [4, 0], sizes = [1, 64], strides = [1, 1]} : vector<6x64xf32> to vector<1x64xf32>
    %cst_26 = arith.constant dense<0.000000e+00> : vector<8xf32>
    %68 = vector.multi_reduction <add>, %65, %cst_26 [1] : vector<8x64xf32> to vector<8xf32>
    %69 = vector.shape_cast %68 : vector<8xf32> to vector<8x1xf32>
    %cst_27 = arith.constant 6.400000e+01 : f32
    %70 = vector.broadcast %cst_27 : f32 to vector<8x1xf32>
    %71 = arith.divf %69, %70 : vector<8x1xf32>
    %72 = vector.broadcast %71 : vector<8x1xf32> to vector<8x64xf32>
    %73 = arith.subf %65, %72 : vector<8x64xf32>
    %74 = arith.mulf %73, %73 : vector<8x64xf32>
    %cst_28 = arith.constant dense<0.000000e+00> : vector<8xf32>
    %75 = vector.multi_reduction <add>, %74, %cst_28 [1] : vector<8x64xf32> to vector<8xf32>
    %76 = vector.shape_cast %75 : vector<8xf32> to vector<8x1xf32>
    %cst_29 = arith.constant 6.400000e+01 : f32
    %77 = vector.broadcast %cst_29 : f32 to vector<8x1xf32>
    %78 = arith.divf %76, %77 : vector<8x1xf32>
    %cst_30 = arith.constant 9.99999974E-6 : f32
    %79 = vector.broadcast %cst_30 : f32 to vector<8x1xf32>
    %80 = arith.addf %78, %79 : vector<8x1xf32>
    %81 = math.rsqrt %80 : vector<8x1xf32>
    %82 = vector.broadcast %81 : vector<8x1xf32> to vector<8x64xf32>
    %83 = arith.mulf %73, %82 : vector<8x64xf32>
    %84 = vector.broadcast %66 : vector<1x64xf32> to vector<8x64xf32>
    %85 = arith.mulf %83, %84 : vector<8x64xf32>
    %86 = vector.broadcast %67 : vector<1x64xf32> to vector<8x64xf32>
    %87 = arith.addf %85, %86 : vector<8x64xf32>
    %c0_31 = arith.constant 0 : index
    %c0_32 = arith.constant 0 : index
    %c0_33 = arith.constant 0 : index
    %88 = vector.load %arg5[%c0_31, %c0_32, %c0_33] : memref<2x64x64xf32, #tpu.memory_space<vmem>>, vector<1x64x64xf32>
    %89 = vector.shape_cast %88 : vector<1x64x64xf32> to vector<64x64xf32>
    %cst_34 = arith.constant dense<0.000000e+00> : vector<8x64xf32>
    %90 = tpu.matmul %87, %89, %cst_34 {dimension_numbers = #tpu.dot_dimension_numbers<[1], [0], [0], [1], [0, 0, 1, 1], [], []>} : vector<8x64xf32>, vector<64x64xf32>, vector<8x64xf32> -> vector<8x64xf32>
    %c0_35 = arith.constant 0 : index
    %c0_36 = arith.constant 0 : index
    %c0_37 = arith.constant 0 : index
    %91 = vector.load %arg6[%c0_35, %c0_36, %c0_37] : memref<2x1x64xf32, #tpu.memory_space<vmem>>, vector<1x1x64xf32>
    %92 = vector.shape_cast %91 : vector<1x1x64xf32> to vector<1x64xf32>
    %93 = vector.broadcast %92 : vector<1x64xf32> to vector<8x64xf32>
    %94 = arith.addf %90, %93 : vector<8x64xf32>
    %cst_38 = arith.constant 5.000000e-01 : f32
    %95 = vector.broadcast %cst_38 : f32 to vector<8x64xf32>
    %96 = arith.mulf %95, %94 : vector<8x64xf32>
    %cst_39 = arith.constant 4.471500e-02 : f32
    %97 = vector.broadcast %cst_39 : f32 to vector<8x64xf32>
    %98 = arith.mulf %97, %94 : vector<8x64xf32>
    %99 = arith.mulf %98, %94 : vector<8x64xf32>
    %100 = arith.mulf %99, %94 : vector<8x64xf32>
    %101 = arith.addf %94, %100 : vector<8x64xf32>
    %cst_40 = arith.constant 0.797884583 : f32
    %102 = vector.broadcast %cst_40 : f32 to vector<8x64xf32>
    %103 = arith.mulf %102, %101 : vector<8x64xf32>
    %104 = math.tanh %103 : vector<8x64xf32>
    %cst_41 = arith.constant 1.000000e+00 : f32
    %105 = vector.broadcast %cst_41 : f32 to vector<8x64xf32>
    %106 = arith.addf %105, %104 : vector<8x64xf32>
    %107 = arith.mulf %96, %106 : vector<8x64xf32>
    %c0_42 = arith.constant 0 : index
    %c0_43 = arith.constant 0 : index
    %c0_44 = arith.constant 0 : index
    %108 = vector.load %arg7[%c0_42, %c0_43, %c0_44] : memref<2x64x64xf32, #tpu.memory_space<vmem>>, vector<1x64x64xf32>
    %109 = vector.shape_cast %108 : vector<1x64x64xf32> to vector<64x64xf32>
    %cst_45 = arith.constant dense<0.000000e+00> : vector<8x64xf32>
    %110 = tpu.matmul %107, %109, %cst_45 {dimension_numbers = #tpu.dot_dimension_numbers<[1], [0], [0], [1], [0, 0, 1, 1], [], []>} : vector<8x64xf32>, vector<64x64xf32>, vector<8x64xf32> -> vector<8x64xf32>
    %111 = vector.extract_strided_slice %3 {offsets = [5, 0], sizes = [1, 64], strides = [1, 1]} : vector<6x64xf32> to vector<1x64xf32>
    %112 = vector.broadcast %111 : vector<1x64xf32> to vector<8x64xf32>
    %113 = arith.addf %110, %112 : vector<8x64xf32>
    %114 = arith.addf %113, %65 : vector<8x64xf32>
    %c1 = arith.constant 1 : index
    %c0_46 = arith.constant 0 : index
    %c0_47 = arith.constant 0 : index
    %115 = vector.load %arg8[%c1, %c0_46, %c0_47] : memref<2x6x64xf32, #tpu.memory_space<vmem>>, vector<1x6x64xf32>
    %116 = vector.shape_cast %115 : vector<1x6x64xf32> to vector<6x64xf32>
    %117 = vector.extract_strided_slice %116 {offsets = [0, 0], sizes = [1, 64], strides = [1, 1]} : vector<6x64xf32> to vector<1x64xf32>
    %118 = vector.extract_strided_slice %116 {offsets = [1, 0], sizes = [1, 64], strides = [1, 1]} : vector<6x64xf32> to vector<1x64xf32>
    %cst_48 = arith.constant dense<0.000000e+00> : vector<8xf32>
    %119 = vector.multi_reduction <add>, %114, %cst_48 [1] : vector<8x64xf32> to vector<8xf32>
    %120 = vector.shape_cast %119 : vector<8xf32> to vector<8x1xf32>
    %cst_49 = arith.constant 6.400000e+01 : f32
    %121 = vector.broadcast %cst_49 : f32 to vector<8x1xf32>
    %122 = arith.divf %120, %121 : vector<8x1xf32>
    %123 = vector.broadcast %122 : vector<8x1xf32> to vector<8x64xf32>
    %124 = arith.subf %114, %123 : vector<8x64xf32>
    %125 = arith.mulf %124, %124 : vector<8x64xf32>
    %cst_50 = arith.constant dense<0.000000e+00> : vector<8xf32>
    %126 = vector.multi_reduction <add>, %125, %cst_50 [1] : vector<8x64xf32> to vector<8xf32>
    %127 = vector.shape_cast %126 : vector<8xf32> to vector<8x1xf32>
    %cst_51 = arith.constant 6.400000e+01 : f32
    %128 = vector.broadcast %cst_51 : f32 to vector<8x1xf32>
    %129 = arith.divf %127, %128 : vector<8x1xf32>
    %cst_52 = arith.constant 9.99999974E-6 : f32
    %130 = vector.broadcast %cst_52 : f32 to vector<8x1xf32>
    %131 = arith.addf %129, %130 : vector<8x1xf32>
    %132 = math.rsqrt %131 : vector<8x1xf32>
    %133 = vector.broadcast %132 : vector<8x1xf32> to vector<8x64xf32>
    %134 = arith.mulf %124, %133 : vector<8x64xf32>
    %135 = vector.broadcast %117 : vector<1x64xf32> to vector<8x64xf32>
    %136 = arith.mulf %134, %135 : vector<8x64xf32>
    %137 = vector.broadcast %118 : vector<1x64xf32> to vector<8x64xf32>
    %138 = arith.addf %136, %137 : vector<8x64xf32>
    %c1_53 = arith.constant 1 : index
    %c0_54 = arith.constant 0 : index
    %c0_55 = arith.constant 0 : index
    %139 = vector.load %arg2[%c1_53, %c0_54, %c0_55] : memref<2x64x384xf32, #tpu.memory_space<vmem>>, vector<1x64x384xf32>
    %140 = vector.shape_cast %139 : vector<1x64x384xf32> to vector<64x384xf32>
    %cst_56 = arith.constant dense<0.000000e+00> : vector<8x384xf32>
    %141 = tpu.matmul %138, %140, %cst_56 {dimension_numbers = #tpu.dot_dimension_numbers<[1], [0], [0], [1], [0, 0, 1, 1], [], []>} : vector<8x64xf32>, vector<64x384xf32>, vector<8x384xf32> -> vector<8x384xf32>
    %142 = vector.extract_strided_slice %141 {offsets = [0, 0], sizes = [8, 128], strides = [1, 1]} : vector<8x384xf32> to vector<8x128xf32>
    %143 = vector.shape_cast %142 : vector<8x128xf32> to vector<1x8x8x16xf32>
    %144 = vector.extract_strided_slice %141 {offsets = [0, 128], sizes = [8, 128], strides = [1, 1]} : vector<8x384xf32> to vector<8x128xf32>
    %145 = vector.shape_cast %144 : vector<8x128xf32> to vector<1x8x8x16xf32>
    %146 = vector.extract_strided_slice %141 {offsets = [0, 256], sizes = [8, 128], strides = [1, 1]} : vector<8x384xf32> to vector<8x128xf32>
    %c1_57 = arith.constant 1 : index
    %c0_58 = arith.constant 0 : index
    %c0_59 = arith.constant 0 : index
    %147 = vector.load %arg3[%c1_57, %c0_58, %c0_59] : memref<2x1x128xf32, #tpu.memory_space<vmem>>, vector<1x1x128xf32>
    %148 = vector.shape_cast %147 : vector<1x1x128xf32> to vector<1x128xf32>
    %149 = vector.broadcast %148 : vector<1x128xf32> to vector<8x128xf32>
    %150 = arith.addf %146, %149 : vector<8x128xf32>
    %151 = vector.shape_cast %150 : vector<8x128xf32> to vector<1x8x128xf32>
    %c1_60 = arith.constant 1 : index
    %c0_61 = arith.constant 0 : index
    %c0_62 = arith.constant 0 : index
    %c0_63 = arith.constant 0 : index
    %152 = vector.load %arg4[%c1_60, %c0_61, %c0_62, %c0_63] : memref<2x8x128x64xf32, #tpu.memory_space<vmem>>, vector<1x8x128x64xf32>
    %153 = vector.shape_cast %152 : vector<1x8x128x64xf32> to vector<8x128x64xf32>
    %154 = vector.shape_cast %143 : vector<1x8x8x16xf32> to vector<8x8x16xf32>
    %155 = tpu.transpose %154, [1, 0, 2] : vector<8x8x16xf32> -> vector<8x8x16xf32>
    %156 = vector.shape_cast %145 : vector<1x8x8x16xf32> to vector<8x8x16xf32>
    %157 = tpu.transpose %156, [1, 0, 2] : vector<8x8x16xf32> -> vector<8x8x16xf32>
    "tpu.trace_start"() <{level = 10 : i32, message = "hnd,hmd->hnm"}> : () -> ()
    %cst_64 = arith.constant dense<0.000000e+00> : vector<8x8x8xf32>
    %158 = tpu.matmul %155, %157, %cst_64 {dimension_numbers = #tpu.dot_dimension_numbers<[2], [2], [1], [1], [0, 0, 0, 1, 1, 1], [0], [0]>} : vector<8x8x16xf32>, vector<8x8x16xf32>, vector<8x8x8xf32> -> vector<8x8x8xf32>
    "tpu.trace_stop"() : () -> ()
    %cst_65 = arith.constant dense<0xFF800000> : vector<8x8xf32>
    %159 = vector.multi_reduction <maximumf>, %158, %cst_65 [2] : vector<8x8x8xf32> to vector<8x8xf32>
    %160 = vector.shape_cast %159 : vector<8x8xf32> to vector<8x8x1xf32>
    %161 = vector.broadcast %160 : vector<8x8x1xf32> to vector<8x8x8xf32>
    %162 = arith.subf %158, %161 : vector<8x8x8xf32>
    %163 = math.exp %162 : vector<8x8x8xf32>
    %cst_66 = arith.constant dense<0.000000e+00> : vector<8x8xf32>
    %164 = vector.multi_reduction <add>, %163, %cst_66 [2] : vector<8x8x8xf32> to vector<8x8xf32>
    %165 = vector.shape_cast %164 : vector<8x8xf32> to vector<8x8x1xf32>
    %166 = tpu.reciprocal %165 {approx = true} : vector<8x8x1xf32> -> vector<8x8x1xf32>
    %167 = vector.broadcast %166 : vector<8x8x1xf32> to vector<8x8x8xf32>
    %168 = arith.mulf %163, %167 : vector<8x8x8xf32>
    %c0_67 = arith.constant 0 : index
    %c0_68 = arith.constant 0 : index
    %c0_69 = arith.constant 0 : index
    %c0_70 = arith.constant 0 : index
    %169 = vector.load %arg10[%c0_67, %c0_68, %c0_69, %c0_70] : memref<1x8x8x8xf32, #tpu.memory_space<vmem>>, vector<1x8x8x8xf32>
    %170 = vector.shape_cast %169 : vector<1x8x8x8xf32> to vector<8x8x8xf32>
    %171 = vector.shape_cast %168 : vector<8x8x8xf32> to vector<1x8x8x8xf32>
    tpu.vector_store %arg10[%c0_67, %c0_68, %c0_69, %c0_70], %171 {strides = array<i32>} : memref<1x8x8x8xf32, #tpu.memory_space<vmem>>, vector<1x8x8x8xf32>,
    %172 = vector.shape_cast %168 : vector<8x8x8xf32> to vector<64x8xf32>
    %173 = vector.shape_cast %151 : vector<1x8x128xf32> to vector<8x128xf32>
    %cst_71 = arith.constant dense<0.000000e+00> : vector<64x128xf32>
    %174 = tpu.matmul %172, %173, %cst_71 {dimension_numbers = #tpu.dot_dimension_numbers<[1], [0], [0], [1], [0, 0, 1, 1], [], []>} : vector<64x8xf32>, vector<8x128xf32>, vector<64x128xf32> -> vector<64x128xf32>
    %175 = vector.shape_cast %174 : vector<64x128xf32> to vector<8x8x128xf32>
    "tpu.trace_start"() <{level = 10 : i32, message = "hnd,hdc->hnc"}> : () -> ()
    %cst_72 = arith.constant dense<0.000000e+00> : vector<8x8x64xf32>
    %176 = tpu.matmul %175, %153, %cst_72 {dimension_numbers = #tpu.dot_dimension_numbers<[2], [1], [1], [2], [0, 0, 0, 1, 1, 2], [0], [0]>} : vector<8x8x128xf32>, vector<8x128x64xf32>, vector<8x8x64xf32> -> vector<8x8x64xf32>
    "tpu.trace_stop"() : () -> ()
    %cst_73 = arith.constant dense<0.000000e+00> : vector<8x64xf32>
    %177 = vector.multi_reduction <add>, %176, %cst_73 [0] : vector<8x8x64xf32> to vector<8x64xf32>
    %178 = vector.extract_strided_slice %116 {offsets = [2, 0], sizes = [1, 64], strides = [1, 1]} : vector<6x64xf32> to vector<1x64xf32>
    %179 = vector.broadcast %178 : vector<1x64xf32> to vector<8x64xf32>
    %180 = arith.addf %177, %179 : vector<8x64xf32>
    %181 = arith.addf %180, %114 : vector<8x64xf32>
    %182 = vector.extract_strided_slice %116 {offsets = [3, 0], sizes = [1, 64], strides = [1, 1]} : vector<6x64xf32> to vector<1x64xf32>
    %183 = vector.extract_strided_slice %116 {offsets = [4, 0], sizes = [1, 64], strides = [1, 1]} : vector<6x64xf32> to vector<1x64xf32>
    %cst_74 = arith.constant dense<0.000000e+00> : vector<8xf32>
    %184 = vector.multi_reduction <add>, %181, %cst_74 [1] : vector<8x64xf32> to vector<8xf32>
    %185 = vector.shape_cast %184 : vector<8xf32> to vector<8x1xf32>
    %cst_75 = arith.constant 6.400000e+01 : f32
    %186 = vector.broadcast %cst_75 : f32 to vector<8x1xf32>
    %187 = arith.divf %185, %186 : vector<8x1xf32>
    %188 = vector.broadcast %187 : vector<8x1xf32> to vector<8x64xf32>
    %189 = arith.subf %181, %188 : vector<8x64xf32>
    %190 = arith.mulf %189, %189 : vector<8x64xf32>
    %cst_76 = arith.constant dense<0.000000e+00> : vector<8xf32>
    %191 = vector.multi_reduction <add>, %190, %cst_76 [1] : vector<8x64xf32> to vector<8xf32>
    %192 = vector.shape_cast %191 : vector<8xf32> to vector<8x1xf32>
    %cst_77 = arith.constant 6.400000e+01 : f32
    %193 = vector.broadcast %cst_77 : f32 to vector<8x1xf32>
    %194 = arith.divf %192, %193 : vector<8x1xf32>
    %cst_78 = arith.constant 9.99999974E-6 : f32
    %195 = vector.broadcast %cst_78 : f32 to vector<8x1xf32>
    %196 = arith.addf %194, %195 : vector<8x1xf32>
    %197 = math.rsqrt %196 : vector<8x1xf32>
    %198 = vector.broadcast %197 : vector<8x1xf32> to vector<8x64xf32>
    %199 = arith.mulf %189, %198 : vector<8x64xf32>
    %200 = vector.broadcast %182 : vector<1x64xf32> to vector<8x64xf32>
    %201 = arith.mulf %199, %200 : vector<8x64xf32>
    %202 = vector.broadcast %183 : vector<1x64xf32> to vector<8x64xf32>
    %203 = arith.addf %201, %202 : vector<8x64xf32>
    %c1_79 = arith.constant 1 : index
    %c0_80 = arith.constant 0 : index
    %c0_81 = arith.constant 0 : index
    %204 = vector.load %arg5[%c1_79, %c0_80, %c0_81] : memref<2x64x64xf32, #tpu.memory_space<vmem>>, vector<1x64x64xf32>
    %205 = vector.shape_cast %204 : vector<1x64x64xf32> to vector<64x64xf32>
    %cst_82 = arith.constant dense<0.000000e+00> : vector<8x64xf32>
    %206 = tpu.matmul %203, %205, %cst_82 {dimension_numbers = #tpu.dot_dimension_numbers<[1], [0], [0], [1], [0, 0, 1, 1], [], []>} : vector<8x64xf32>, vector<64x64xf32>, vector<8x64xf32> -> vector<8x64xf32>
    %c1_83 = arith.constant 1 : index
    %c0_84 = arith.constant 0 : index
    %c0_85 = arith.constant 0 : index
    %207 = vector.load %arg6[%c1_83, %c0_84, %c0_85] : memref<2x1x64xf32, #tpu.memory_space<vmem>>, vector<1x1x64xf32>
    %208 = vector.shape_cast %207 : vector<1x1x64xf32> to vector<1x64xf32>
    %209 = vector.broadcast %208 : vector<1x64xf32> to vector<8x64xf32>
    %210 = arith.addf %206, %209 : vector<8x64xf32>
    %cst_86 = arith.constant 5.000000e-01 : f32
    %211 = vector.broadcast %cst_86 : f32 to vector<8x64xf32>
    %212 = arith.mulf %211, %210 : vector<8x64xf32>
    %cst_87 = arith.constant 4.471500e-02 : f32
    %213 = vector.broadcast %cst_87 : f32 to vector<8x64xf32>
    %214 = arith.mulf %213, %210 : vector<8x64xf32>
    %215 = arith.mulf %214, %210 : vector<8x64xf32>
    %216 = arith.mulf %215, %210 : vector<8x64xf32>
    %217 = arith.addf %210, %216 : vector<8x64xf32>
    %cst_88 = arith.constant 0.797884583 : f32
    %218 = vector.broadcast %cst_88 : f32 to vector<8x64xf32>
    %219 = arith.mulf %218, %217 : vector<8x64xf32>
    %220 = math.tanh %219 : vector<8x64xf32>
    %cst_89 = arith.constant 1.000000e+00 : f32
    %221 = vector.broadcast %cst_89 : f32 to vector<8x64xf32>
    %222 = arith.addf %221, %220 : vector<8x64xf32>
    %223 = arith.mulf %212, %222 : vector<8x64xf32>
    %c1_90 = arith.constant 1 : index
    %c0_91 = arith.constant 0 : index
    %c0_92 = arith.constant 0 : index
    %224 = vector.load %arg7[%c1_90, %c0_91, %c0_92] : memref<2x64x64xf32, #tpu.memory_space<vmem>>, vector<1x64x64xf32>
    %225 = vector.shape_cast %224 : vector<1x64x64xf32> to vector<64x64xf32>
    %cst_93 = arith.constant dense<0.000000e+00> : vector<8x64xf32>
    %226 = tpu.matmul %223, %225, %cst_93 {dimension_numbers = #tpu.dot_dimension_numbers<[1], [0], [0], [1], [0, 0, 1, 1], [], []>} : vector<8x64xf32>, vector<64x64xf32>, vector<8x64xf32> -> vector<8x64xf32>
    %227 = vector.extract_strided_slice %116 {offsets = [5, 0], sizes = [1, 64], strides = [1, 1]} : vector<6x64xf32> to vector<1x64xf32>
    %228 = vector.broadcast %227 : vector<1x64xf32> to vector<8x64xf32>
    %229 = arith.addf %226, %228 : vector<8x64xf32>
    %230 = arith.addf %229, %181 : vector<8x64xf32>
    %231 = vector.shape_cast %230 : vector<8x64xf32> to vector<1x8x64xf32>
    %c0_94 = arith.constant 0 : index
    %c0_95 = arith.constant 0 : index
    %c0_96 = arith.constant 0 : index
    %232 = vector.load %arg9[%c0_94, %c0_95, %c0_96] : memref<1x8x64xf32, #tpu.memory_space<vmem>>, vector<1x8x64xf32>
    tpu.vector_store %arg9[%c0_94, %c0_95, %c0_96], %231 {strides = array<i32>} : memref<1x8x64xf32, #tpu.memory_space<vmem>>, vector<1x8x64xf32>,
    return
  }
  func.func @transform_0(%arg0: i32) -> (i32, i32, i32) {
    %c0_i32 = arith.constant 0 : i32
    %c0_i32_0 = arith.constant 0 : i32
    %c0_i32_1 = arith.constant 0 : i32
    return %arg0, %c0_i32, %c0_i32_0 : i32, i32, i32
  }
  func.func @transform_1(%arg0: i32) -> (i32, i32, i32) {
    %c0_i32 = arith.constant 0 : i32
    %c0_i32_0 = arith.constant 0 : i32
    %c0_i32_1 = arith.constant 0 : i32
    %c0_i32_2 = arith.constant 0 : i32
    return %c0_i32, %c0_i32_0, %c0_i32_1 : i32, i32, i32
  }
  func.func @transform_2(%arg0: i32) -> (i32, i32, i32) {
    %c0_i32 = arith.constant 0 : i32
    %c0_i32_0 = arith.constant 0 : i32
    %c0_i32_1 = arith.constant 0 : i32
    %c0_i32_2 = arith.constant 0 : i32
    return %c0_i32, %c0_i32_0, %c0_i32_1 : i32, i32, i32
  }
  func.func @transform_3(%arg0: i32) -> (i32, i32, i32, i32) {
    %c0_i32 = arith.constant 0 : i32
    %c0_i32_0 = arith.constant 0 : i32
    %c0_i32_1 = arith.constant 0 : i32
    %c0_i32_2 = arith.constant 0 : i32
    %c0_i32_3 = arith.constant 0 : i32
    return %c0_i32, %c0_i32_0, %c0_i32_1, %c0_i32_2 : i32, i32, i32, i32
  }
  func.func @transform_4(%arg0: i32) -> (i32, i32, i32) {
    %c0_i32 = arith.constant 0 : i32
    %c0_i32_0 = arith.constant 0 : i32
    %c0_i32_1 = arith.constant 0 : i32
    %c0_i32_2 = arith.constant 0 : i32
    return %c0_i32, %c0_i32_0, %c0_i32_1 : i32, i32, i32
  }
  func.func @transform_5(%arg0: i32) -> (i32, i32, i32) {
    %c0_i32 = arith.constant 0 : i32
    %c0_i32_0 = arith.constant 0 : i32
    %c0_i32_1 = arith.constant 0 : i32
    %c0_i32_2 = arith.constant 0 : i32
    return %c0_i32, %c0_i32_0, %c0_i32_1 : i32, i32, i32
  }
  func.func @transform_6(%arg0: i32) -> (i32, i32, i32) {
    %c0_i32 = arith.constant 0 : i32
    %c0_i32_0 = arith.constant 0 : i32
    %c0_i32_1 = arith.constant 0 : i32
    %c0_i32_2 = arith.constant 0 : i32
    return %c0_i32, %c0_i32_0, %c0_i32_1 : i32, i32, i32
  }
  func.func @transform_7(%arg0: i32) -> (i32, i32, i32) {
    %c0_i32 = arith.constant 0 : i32
    %c0_i32_0 = arith.constant 0 : i32
    %c0_i32_1 = arith.constant 0 : i32
    %c0_i32_2 = arith.constant 0 : i32
    return %c0_i32, %c0_i32_0, %c0_i32_1 : i32, i32, i32
  }
  func.func @transform_8(%arg0: i32) -> (i32, i32, i32) {
    %c0_i32 = arith.constant 0 : i32
    %c0_i32_0 = arith.constant 0 : i32
    %c0_i32_1 = arith.constant 0 : i32
    return %arg0, %c0_i32, %c0_i32_0 : i32, i32, i32
  }
  func.func @transform_9(%arg0: i32) -> (i32, i32, i32, i32) {
    %c0_i32 = arith.constant 0 : i32
    %c0_i32_0 = arith.constant 0 : i32
    %c0_i32_1 = arith.constant 0 : i32
    %c0_i32_2 = arith.constant 0 : i32
    return %arg0, %c0_i32, %c0_i32_0, %c0_i32_1 : i32, i32, i32, i32
  }
}

</mosaic_0001>

<llo_original>
// kernel: tpu_custom_call.1
$region0: #{tpu_custom_call.1}
  #allocation0 [shape = 'u32[]', space=smem, size = 0x4, offset = 0x4, fixed_abs, tag = 'smem constant byte address 0x4 - core index']
  #allocation1 [shape = 'u32[72,128]{1,0:T(1,128)}', space=vmem, size = 0x9000, scoped, tag = 'internal scratch']
  %s0 = inlined_call_operand.vmem [shape: f32[2,8,64], index: 0, kind: input, shape index: {}]
  %s1 = inlined_call_operand.vmem [shape: f32[2,64,384], index: 1, kind: input, shape index: {}]
  %s2 = inlined_call_operand.vmem [shape: f32[2,1,128], index: 2, kind: input, shape index: {}]
  %s3 = inlined_call_operand.vmem [shape: f32[2,8,128,64], index: 3, kind: input, shape index: {}]
  %s4 = inlined_call_operand.vmem [shape: f32[2,64,64], index: 4, kind: input, shape index: {}]
  %s5 = inlined_call_operand.vmem [shape: f32[2,1,64], index: 5, kind: input, shape index: {}]
  %s6 = inlined_call_operand.vmem [shape: f32[2,64,64], index: 6, kind: input, shape index: {}]
  %s7 = inlined_call_operand.vmem [shape: f32[2,6,64], index: 7, kind: input, shape index: {}]
  %s8 = inlined_call_operand.hbm [shape: f32[2,8,64], index: 8, kind: output, shape index: {0}]
  %s9 = inlined_call_operand.hbm [shape: f32[2,8,8,8], index: 9, kind: output, shape index: {1}]
  %10 = xla_tuple %s8, %s9
  %s11 = sld [smem:[#allocation0]]
  $region73: #{tpu_custom_call.1} parent=0
    _
  %s13 = ssub.s32 1, %s11
  %s14 = scalar_select 0, %s13, %s11
  $region1: #{tpu_custom_call.1} parent=0
    #allocation2 [shape = 'u8[8192]{0}', space=vmem, size = 0x2000, scoped, tag = 'output window, operand 0']
    #allocation3 [shape = 's32[2]{0}', space=sflag, size = 0x8, scoped, tag = 'scoped memory for tpu_custom_call.1']
    #allocation4 [shape = 'u8[65536]{0}', space=vmem, size = 0x10000, scoped, tag = 'output window, operand 1']
    #allocation5 [shape = 's32[2]{0}', space=sflag, size = 0x8, scoped, tag = 'scoped memory for tpu_custom_call.1']
    %15 = vsyncpa [#allocation3], 0
    %s16 = scalar_lea.sflag [#allocation3], 1
    %17 = vsyncpa %s16, 0
    %18 = vsyncpa [#allocation5], 0
    %s19 = scalar_lea.sflag [#allocation5], 1
    %20 = vsyncpa %s19, 0
    loop: start=0, step=1, limit=4
    $region2: #{tpu_custom_call.1} parent=1 // loop_pre_header
      _
    $region3: #{tpu_custom_call.1} parent=1 // loop_header
      %s22 = sphi 0, %s26
      %p23 = scmp.ge.s32.totalorder %s22, 4
      %s32 = sphi 0, %s34
      %s35 = sphi 0, %s32
      %s36 = sphi 0, %s35
      %s52 = sphi 0, %s36
      %s56 = sphi 0, %s56
      %s58 = sphi 0, %s56
      %s59 = sphi 0, %s58
      %s73 = sphi 0, %s59
      %s77 = sphi 0, %s77
      %s79 = sphi 0, %s77
      %s80 = sphi 0, %s79
      %s94 = sphi 0, %s80
      %s98 = sphi 0, %s98
      %s100 = sphi 0, %s98
      %s101 = sphi 0, %s100
      %s115 = sphi 0, %s101
      %s119 = sphi 0, %s119
      %s121 = sphi 0, %s119
      %s122 = sphi 0, %s121
      %s136 = sphi 0, %s122
      %s140 = sphi 0, %s140
      %s142 = sphi 0, %s140
      %s143 = sphi 0, %s142
      %s157 = sphi 0, %s143
      %s161 = sphi 0, %s161
      %s163 = sphi 0, %s161
      %s164 = sphi 0, %s163
      %s178 = sphi 0, %s164
      %s182 = sphi 0, %s182
      %s184 = sphi 0, %s182
      %s185 = sphi 0, %s184
      %s199 = sphi 0, %s185
      %s205 = sphi 0, %s207
      %s208 = sphi 0, %s205
      %s209 = sphi 0, %s208
      %s225 = sphi 0, %s209
      %s231 = sphi 0, %s233
      %s234 = sphi 0, %s231
      %s235 = sphi 0, %s234
      %s251 = sphi 0, %s235
    $region4: #{tpu_custom_call.1} parent=1 // loop_header_branch
      %25 = sbr.rel (%p23) target = $region8
    $region5: #{tpu_custom_call.1} parent=1 // loop_body
      %s27 = ssub.s32 %s22, 1
      %s28 = ssub.s32 %s22, 2
      %s29 = sadd.s32 %s22, 1
      %s30 = ssub.s32 %s22, %s29
      %p31 = scmp.eq.s32.totalorder %s30, 0
      %s33 = sadd.s32 %s32, 1
      %s34 = scalar_select %p31, %s32, %s33
      %p37 = pneg %p31
      %p38 = scmp.eq.s32.totalorder %s22, 1
      %p39 = por %p37, %p38
      %p40 = scmp.ne.s32.totalorder %s32, %s35
      %p41 = scmp.eq.s32.totalorder %s22, 0
      %p42 = por %p40, %p41
      %p43 = scmp.ne.s32.totalorder %s32, %s35
      %p44 = scmp.eq.s32.totalorder %s27, 1
      %p45 = por %p43, %p44
      %p46 = scmp.ne.s32.totalorder %s35, %s36
      %p47 = scmp.eq.s32.totalorder %s27, 0
      %p48 = por %p46, %p47
      %p49 = scmp.ne.s32.totalorder %s35, %s36
      %p50 = scmp.eq.s32.totalorder %s28, 1
      %p51 = por %p49, %p50
      %p53 = scmp.ne.s32.totalorder %s36, %s52
      %p54 = scmp.eq.s32.totalorder %s28, 0
      %p55 = por %p53, %p54
      %s57 = sadd.s32 %s56, 1
      %p60 = scmp.eq.s32.totalorder %s22, 1
      %p61 = scmp.ne.s32.totalorder %s56, %s58
      %p62 = scmp.eq.s32.totalorder %s22, 0
      %p63 = por %p61, %p62
      %p64 = scmp.ne.s32.totalorder %s56, %s58
      %p65 = scmp.eq.s32.totalorder %s27, 1
      %p66 = por %p64, %p65
      %p67 = scmp.ne.s32.totalorder %s58, %s59
      %p68 = scmp.eq.s32.totalorder %s27, 0
      %p69 = por %p67, %p68
      %p70 = scmp.ne.s32.totalorder %s58, %s59
      %p71 = scmp.eq.s32.totalorder %s28, 1
      %p72 = por %p70, %p71
      %p74 = scmp.ne.s32.totalorder %s59, %s73
      %p75 = scmp.eq.s32.totalorder %s28, 0
      %p76 = por %p74, %p75
      %s78 = sadd.s32 %s77, 1
      %p81 = scmp.eq.s32.totalorder %s22, 1
      %p82 = scmp.ne.s32.totalorder %s77, %s79
      %p83 = scmp.eq.s32.totalorder %s22, 0
      %p84 = por %p82, %p83
      %p85 = scmp.ne.s32.totalorder %s77, %s79
      %p86 = scmp.eq.s32.totalorder %s27, 1
      %p87 = por %p85, %p86
      %p88 = scmp.ne.s32.totalorder %s79, %s80
      %p89 = scmp.eq.s32.totalorder %s27, 0
      %p90 = por %p88, %p89
      %p91 = scmp.ne.s32.totalorder %s79, %s80
      %p92 = scmp.eq.s32.totalorder %s28, 1
      %p93 = por %p91, %p92
      %p95 = scmp.ne.s32.totalorder %s80, %s94
      %p96 = scmp.eq.s32.totalorder %s28, 0
      %p97 = por %p95, %p96
      %s99 = sadd.s32 %s98, 1
      %p102 = scmp.eq.s32.totalorder %s22, 1
      %p103 = scmp.ne.s32.totalorder %s98, %s100
      %p104 = scmp.eq.s32.totalorder %s22, 0
      %p105 = por %p103, %p104
      %p106 = scmp.ne.s32.totalorder %s98, %s100
      %p107 = scmp.eq.s32.totalorder %s27, 1
      %p108 = por %p106, %p107
      %p109 = scmp.ne.s32.totalorder %s100, %s101
      %p110 = scmp.eq.s32.totalorder %s27, 0
      %p111 = por %p109, %p110
      %p112 = scmp.ne.s32.totalorder %s100, %s101
      %p113 = scmp.eq.s32.totalorder %s28, 1
      %p114 = por %p112, %p113
      %p116 = scmp.ne.s32.totalorder %s101, %s115
      %p117 = scmp.eq.s32.totalorder %s28, 0
      %p118 = por %p116, %p117
      %s120 = sadd.s32 %s119, 1
      %p123 = scmp.eq.s32.totalorder %s22, 1
      %p124 = scmp.ne.s32.totalorder %s119, %s121
      %p125 = scmp.eq.s32.totalorder %s22, 0
      %p126 = por %p124, %p125
      %p127 = scmp.ne.s32.totalorder %s119, %s121
      %p128 = scmp.eq.s32.totalorder %s27, 1
      %p129 = por %p127, %p128
      %p130 = scmp.ne.s32.totalorder %s121, %s122
      %p131 = scmp.eq.s32.totalorder %s27, 0
      %p132 = por %p130, %p131
      %p133 = scmp.ne.s32.totalorder %s121, %s122
      %p134 = scmp.eq.s32.totalorder %s28, 1
      %p135 = por %p133, %p134
      %p137 = scmp.ne.s32.totalorder %s122, %s136
      %p138 = scmp.eq.s32.totalorder %s28, 0
      %p139 = por %p137, %p138
      %s141 = sadd.s32 %s140, 1
      %p144 = scmp.eq.s32.totalorder %s22, 1
      %p145 = scmp.ne.s32.totalorder %s140, %s142
      %p146 = scmp.eq.s32.totalorder %s22, 0
      %p147 = por %p145, %p146
      %p148 = scmp.ne.s32.totalorder %s140, %s142
      %p149 = scmp.eq.s32.totalorder %s27, 1
      %p150 = por %p148, %p149
      %p151 = scmp.ne.s32.totalorder %s142, %s143
      %p152 = scmp.eq.s32.totalorder %s27, 0
      %p153 = por %p151, %p152
      %p154 = scmp.ne.s32.totalorder %s142, %s143
      %p155 = scmp.eq.s32.totalorder %s28, 1
      %p156 = por %p154, %p155
      %p158 = scmp.ne.s32.totalorder %s143, %s157
      %p159 = scmp.eq.s32.totalorder %s28, 0
      %p160 = por %p158, %p159
      %s162 = sadd.s32 %s161, 1
      %p165 = scmp.eq.s32.totalorder %s22, 1
      %p166 = scmp.ne.s32.totalorder %s161, %s163
      %p167 = scmp.eq.s32.totalorder %s22, 0
      %p168 = por %p166, %p167
      %p169 = scmp.ne.s32.totalorder %s161, %s163
      %p170 = scmp.eq.s32.totalorder %s27, 1
      %p171 = por %p169, %p170
      %p172 = scmp.ne.s32.totalorder %s163, %s164
      %p173 = scmp.eq.s32.totalorder %s27, 0
      %p174 = por %p172, %p173
      %p175 = scmp.ne.s32.totalorder %s163, %s164
      %p176 = scmp.eq.s32.totalorder %s28, 1
      %p177 = por %p175, %p176
      %p179 = scmp.ne.s32.totalorder %s164, %s178
      %p180 = scmp.eq.s32.totalorder %s28, 0
      %p181 = por %p179, %p180
      %s183 = sadd.s32 %s182, 1
      %p186 = scmp.eq.s32.totalorder %s22, 1
      %p187 = scmp.ne.s32.totalorder %s182, %s184
      %p188 = scmp.eq.s32.totalorder %s22, 0
      %p189 = por %p187, %p188
      %p190 = scmp.ne.s32.totalorder %s182, %s184
      %p191 = scmp.eq.s32.totalorder %s27, 1
      %p192 = por %p190, %p191
      %p193 = scmp.ne.s32.totalorder %s184, %s185
      %p194 = scmp.eq.s32.totalorder %s27, 0
      %p195 = por %p193, %p194
      %p196 = scmp.ne.s32.totalorder %s184, %s185
      %p197 = scmp.eq.s32.totalorder %s28, 1
      %p198 = por %p196, %p197
      %p200 = scmp.ne.s32.totalorder %s185, %s199
      %p201 = scmp.eq.s32.totalorder %s28, 0
      %p202 = por %p200, %p201
      %s203 = ssub.s32 %s22, %s29
      %p204 = scmp.eq.s32.totalorder %s203, 0
      %s206 = sadd.s32 %s205, 1
      %s207 = scalar_select %p204, %s205, %s206
      %p210 = pneg %p204
      %p211 = scmp.eq.s32.totalorder %s22, 1
      %p212 = por %p210, %p211
      %p213 = scmp.ne.s32.totalorder %s205, %s208
      %p214 = scmp.eq.s32.totalorder %s22, 0
      %p215 = por %p213, %p214
      %p216 = scmp.ne.s32.totalorder %s205, %s208
      %p217 = scmp.eq.s32.totalorder %s27, 1
      %p218 = por %p216, %p217
      %p219 = scmp.ne.s32.totalorder %s208, %s209
      %p220 = scmp.eq.s32.totalorder %s27, 0
      %p221 = por %p219, %p220
      %p222 = scmp.ne.s32.totalorder %s208, %s209
      %p223 = scmp.eq.s32.totalorder %s28, 1
      %p224 = por %p222, %p223
      %p226 = scmp.ne.s32.totalorder %s209, %s225
      %p227 = scmp.eq.s32.totalorder %s28, 0
      %p228 = por %p226, %p227
      %s229 = ssub.s32 %s22, %s29
      %p230 = scmp.eq.s32.totalorder %s229, 0
      %s232 = sadd.s32 %s231, 1
      %s233 = scalar_select %p230, %s231, %s232
      %p236 = pneg %p230
      %p237 = scmp.eq.s32.totalorder %s22, 1
      %p238 = por %p236, %p237
      %p239 = scmp.ne.s32.totalorder %s231, %s234
      %p240 = scmp.eq.s32.totalorder %s22, 0
      %p241 = por %p239, %p240
      %p242 = scmp.ne.s32.totalorder %s231, %s234
      %p243 = scmp.eq.s32.totalorder %s27, 1
      %p244 = por %p242, %p243
      %p245 = scmp.ne.s32.totalorder %s234, %s235
      %p246 = scmp.eq.s32.totalorder %s27, 0
      %p247 = por %p245, %p246
      %p248 = scmp.ne.s32.totalorder %s234, %s235
      %p249 = scmp.eq.s32.totalorder %s28, 1
      %p250 = por %p248, %p249
      %p252 = scmp.ne.s32.totalorder %s235, %s251
      %p253 = scmp.eq.s32.totalorder %s28, 0
      %p254 = por %p252, %p253
      %p255 = scmp.le.s32.totalorder 1, %s22
      %p256 = scmp.lt.s32.totalorder %s22, 3
      %p257 = pnand %p255, %p256
      %p258 = pneg %p257
      // Predicated region
      $region9: #{tpu_custom_call.1} parent=5 // pred_check
        _
      $region10: #{tpu_custom_call.1} parent=5 // pred_check_branch
        %260 = sbr.rel (%p257) target = $region12
      $region11: #{tpu_custom_call.1} parent=5 // pred_region
        %s261 = ssub.s32 %s22, 1
        // Predicated region
        $region13: #{tpu_custom_call.1} parent=11 // pred_check
          %p262 = pneg %p69
        $region14: #{tpu_custom_call.1} parent=11 // pred_check_branch
          %264 = sbr.rel (%p262) target = $region16
        $region15: #{tpu_custom_call.1} parent=11 // pred_region
          _
        $region16: #{tpu_custom_call.1} parent=11 // pred_fallthru
          _
        // Predicated region
        $region17: #{tpu_custom_call.1} parent=11 // pred_check
          %p265 = pneg %p90
        $region18: #{tpu_custom_call.1} parent=11 // pred_check_branch
          %267 = sbr.rel (%p265) target = $region20
        $region19: #{tpu_custom_call.1} parent=11 // pred_region
          _
        $region20: #{tpu_custom_call.1} parent=11 // pred_fallthru
          _
        // Predicated region
        $region21: #{tpu_custom_call.1} parent=11 // pred_check
          %p268 = pneg %p111
        $region22: #{tpu_custom_call.1} parent=11 // pred_check_branch
          %270 = sbr.rel (%p268) target = $region24
        $region23: #{tpu_custom_call.1} parent=11 // pred_region
          _
        $region24: #{tpu_custom_call.1} parent=11 // pred_fallthru
          _
        // Predicated region
        $region25: #{tpu_custom_call.1} parent=11 // pred_check
          %p271 = pneg %p132
        $region26: #{tpu_custom_call.1} parent=11 // pred_check_branch
          %273 = sbr.rel (%p271) target = $region28
        $region27: #{tpu_custom_call.1} parent=11 // pred_region
          _
        $region28: #{tpu_custom_call.1} parent=11 // pred_fallthru
          _
        // Predicated region
        $region29: #{tpu_custom_call.1} parent=11 // pred_check
          %p274 = pneg %p153
        $region30: #{tpu_custom_call.1} parent=11 // pred_check_branch
          %276 = sbr.rel (%p274) target = $region32
        $region31: #{tpu_custom_call.1} parent=11 // pred_region
          _
        $region32: #{tpu_custom_call.1} parent=11 // pred_fallthru
          _
        // Predicated region
        $region33: #{tpu_custom_call.1} parent=11 // pred_check
          %p277 = pneg %p174
        $region34: #{tpu_custom_call.1} parent=11 // pred_check_branch
          %279 = sbr.rel (%p277) target = $region36
        $region35: #{tpu_custom_call.1} parent=11 // pred_region
          _
        $region36: #{tpu_custom_call.1} parent=11 // pred_fallthru
          _
        // Predicated region
        $region37: #{tpu_custom_call.1} parent=11 // pred_check
          %p280 = pneg %p195
        $region38: #{tpu_custom_call.1} parent=11 // pred_check_branch
          %282 = sbr.rel (%p280) target = $region40
        $region39: #{tpu_custom_call.1} parent=11 // pred_region
          _
        $region40: #{tpu_custom_call.1} parent=11 // pred_fallthru
          _
      $region12: #{tpu_custom_call.1} parent=5 // pred_fallthru
        _
      %p283 = scmp.lt.s32.totalorder %s22, 2
      // Predicated region
      $region41: #{tpu_custom_call.1} parent=5 // pred_check
        %p284 = pneg %p283
      $region42: #{tpu_custom_call.1} parent=5 // pred_check_branch
        %286 = sbr.rel (%p284) target = $region44
      $region43: #{tpu_custom_call.1} parent=5 // pred_region
        // Predicated region
        $region45: #{tpu_custom_call.1} parent=43 // pred_check
          %p287 = pneg %p42
        $region46: #{tpu_custom_call.1} parent=43 // pred_check_branch
          %289 = sbr.rel (%p287) target = $region48
        $region47: #{tpu_custom_call.1} parent=43 // pred_region
          %p290 = scmp.lt.s32.totalorder %s22, 1
          %s291 = scalar_select %p290, %s22, 1
          %s292 = smul.addr %s291, 8
          %s293 = scalar_lea.vmem %s0, %s292
        $region48: #{tpu_custom_call.1} parent=43 // pred_fallthru
          _
      $region44: #{tpu_custom_call.1} parent=5 // pred_fallthru
        _
      %p294 = scmp.le.s32.totalorder 1, %s22
      %p295 = scmp.lt.s32.totalorder %s22, 3
      %p296 = pnand %p294, %p295
      %p297 = pneg %p296
      // Predicated region
      $region49: #{tpu_custom_call.1} parent=5 // pred_check
        _
      $region50: #{tpu_custom_call.1} parent=5 // pred_check_branch
        %299 = sbr.rel (%p296) target = $region52
      $region51: #{tpu_custom_call.1} parent=5 // pred_region
        %s300 = ssub.s32 %s22, 1
        %p301 = scmp.lt.s32.totalorder %s27, 1
        %s302 = scalar_select %p301, %s27, 1
        %s303 = smul.addr %s302, 8
        %s304 = scalar_lea.vmem %s0, %s303
        %p305 = pneg %p48
        %p306 = pneg %p45
        %p307 = pneg %p69
        %p308 = pneg %p66
        %p309 = pneg %p90
        %p310 = pneg %p87
        %p311 = pneg %p111
        %p312 = pneg %p108
        %p313 = pneg %p132
        %p314 = pneg %p129
        %p315 = pneg %p153
        %p316 = pneg %p150
        %p317 = pneg %p174
        %p318 = pneg %p171
        %p319 = pneg %p195
        %p320 = pneg %p192
        %p321 = pneg %p221
        %p322 = pneg %p218
        %s323 = sand.u32 %s208, 1
        %s324 = scalar_lea.sflag [#allocation3], %s323
        %s325 = sand.u32 %s208, 1
        %s326 = smul.addr %s325, 8
        %s327 = scalar_lea.vmem [#allocation2], %s326
        %p328 = pneg %p247
        %p329 = pneg %p244
        %s330 = sand.u32 %s234, 1
        %s331 = scalar_lea.sflag [#allocation5], %s330
        %s332 = sand.u32 %s234, 1
        %s333 = smul.addr %s332, 64
        %s334 = scalar_lea.vmem [#allocation4], %s333
        %p335 = scmp.lt.s32.totalorder %s27, 1
        %s336 = scalar_select %p335, %s27, 1
        %s337 = smul.addr %s336, 8
        %s338 = scalar_lea.vmem %s0, %s337
        %v339 = vld [vmem:[%s338] sm:$0xff]
        %v340 = vld [vmem:[%s7] sm:$0x3f]
        %vm341 = vcmask 523264
        %v342 = vsel %vm341, %v339, 0.0
        %343 = vadd.xlane.f32.xlu0 %v342
        %v344 = vpop.xlane.xlu0 %343
        %v345 = vrcp.pop 64.0
        %v346 = vmul.f32 64.0, %v345
        %v347 = vsub.f32 1.0, %v346
        %v348 = vmul.f32 %v345, %v347
        %v349 = vadd.f32 %v345, %v348
        %vm350 = vweird.f32 %v345
        %v351 = vsel %vm350, %v345, %v349
        %v352 = vmul.f32 %v344, %v351
        %v353 = vsub.f32 %v339, %v352
        %v354 = vmul.f32 %v353, %v353
        %v355 = vsel %vm341, %v354, 0.0
        %356 = vadd.xlane.f32.xlu0 %v355
        %v357 = vpop.xlane.xlu0 %356
        %v358 = vmul.f32 %v357, %v351
        %v359 = vadd.f32 %v358, 1e-05
        %v360 = vrsqrt.pop %v359
        %v361 = vmul.f32 %v360, %v359
        %v362 = vmul.f32 %v361, %v360
        %v363 = vmul.f32 0.5, %v362
        %v364 = vsub.f32 1.5, %v363
        %v365 = vmul.f32 %v360, %v364
        %vm366 = vweird.f32 %v359
        %vm367 = vweird.f32 %v360
        %vm368 = vmor %vm366, %vm367
        %v369 = vsel %vm368, %v360, %v365
        %v370 = vmul.f32 %v353, %v369
        %v371 = vperm.slane %v340, 0
        %v372 = vmul.f32 %v370, %v371
        %v373 = vperm.slane %v340, 1
        %v374 = vadd.f32 %v372, %v373
        %v375 = vld [vmem:[%s1] sm:$0xff]
        %v376 = vld [vmem:[%s1 + $0x8] sm:$0xff]
        %v377 = vld [vmem:[%s1 + $0x10] sm:$0xff]
        %v378 = vld [vmem:[%s1 + $0x18] sm:$0xff]
        %v379 = vld [vmem:[%s1 + $0x20] sm:$0xff]
        %v380 = vld [vmem:[%s1 + $0x28] sm:$0xff]
        %v381 = vld [vmem:[%s1 + $0x30] sm:$0xff]
        %v382 = vld [vmem:[%s1 + $0x38] sm:$0xff]
        %v383 = vld [vmem:[%s1 + $0x40] sm:$0xff]
        %v384 = vld [vmem:[%s1 + $0x48] sm:$0xff]
        %v385 = vld [vmem:[%s1 + $0x50] sm:$0xff]
        %v386 = vld [vmem:[%s1 + $0x58] sm:$0xff]
        %v387 = vld [vmem:[%s1 + $0x60] sm:$0xff]
        %v388 = vld [vmem:[%s1 + $0x68] sm:$0xff]
        %v389 = vld [vmem:[%s1 + $0x70] sm:$0xff]
        %v390 = vld [vmem:[%s1 + $0x78] sm:$0xff]
        %v391 = vld [vmem:[%s1 + $0x80] sm:$0xff]
        %v392 = vld [vmem:[%s1 + $0x88] sm:$0xff]
        %v393 = vld [vmem:[%s1 + $0x90] sm:$0xff]
        %v394 = vld [vmem:[%s1 + $0x98] sm:$0xff]
        %v395 = vld [vmem:[%s1 + $0xa0] sm:$0xff]
        %v396 = vld [vmem:[%s1 + $0xa8] sm:$0xff]
        %v397 = vld [vmem:[%s1 + $0xb0] sm:$0xff]
        %v398 = vld [vmem:[%s1 + $0xb8] sm:$0xff]
        %v400 = vsel %vm341, %v374, 0
        %402 = vmatpush.msra.mxu0 0.0
        %403 = vmatpush.msra.mxu0 0.0
        %404 = vmatpush.msra.mxu0 0.0
        %405 = vmatpush.msra.mxu0 0.0
        %406 = vmatpush.msra.mxu0 0.0
        %407 = vmatpush.msra.mxu0 0.0
        %408 = vmatpush.msra.mxu0 0.0
        %409 = vmatpush.msra.mxu0 0.0
        %410 = vmatpush.msra.mxu0 %v396
        %411 = vmatpush.msra.mxu0 %v393
        %412 = vmatpush.msra.mxu0 %v390
        %413 = vmatpush.msra.mxu0 %v387
        %414 = vmatpush.msra.mxu0 %v384
        %415 = vmatpush.msra.mxu0 %v381
        %416 = vmatpush.msra.mxu0 %v378
        %417 = vmatpush.msra.mxu0 %v375
        %418 = vmatmul.f32.gmra.mxu0 %v400
        %v419 = vpop.f32.mrf.mxu0
        %v420 = vadd.f32 0.0, %v419
        %421 = vdwg.mxu0
        %422 = vmatpush.msra.mxu0 0.0
        %423 = vmatpush.msra.mxu0 0.0
        %424 = vmatpush.msra.mxu0 0.0
        %425 = vmatpush.msra.mxu0 0.0
        %426 = vmatpush.msra.mxu0 0.0
        %427 = vmatpush.msra.mxu0 0.0
        %428 = vmatpush.msra.mxu0 0.0
        %429 = vmatpush.msra.mxu0 0.0
        %430 = vmatpush.msra.mxu0 %v397
        %431 = vmatpush.msra.mxu0 %v394
        %432 = vmatpush.msra.mxu0 %v391
        %433 = vmatpush.msra.mxu0 %v388
        %434 = vmatpush.msra.mxu0 %v385
        %435 = vmatpush.msra.mxu0 %v382
        %436 = vmatpush.msra.mxu0 %v379
        %437 = vmatpush.msra.mxu0 %v376
        %438 = vmatmul.f32.gmra.mxu0 %v400
        %v439 = vpop.f32.mrf.mxu0
        %v440 = vadd.f32 0.0, %v439
        %441 = vdwg.mxu0
        %442 = vmatpush.msra.mxu0 0.0
        %443 = vmatpush.msra.mxu0 0.0
        %444 = vmatpush.msra.mxu0 0.0
        %445 = vmatpush.msra.mxu0 0.0
        %446 = vmatpush.msra.mxu0 0.0
        %447 = vmatpush.msra.mxu0 0.0
        %448 = vmatpush.msra.mxu0 0.0
        %449 = vmatpush.msra.mxu0 0.0
        %450 = vmatpush.msra.mxu0 %v398
        %451 = vmatpush.msra.mxu0 %v395
        %452 = vmatpush.msra.mxu0 %v392
        %453 = vmatpush.msra.mxu0 %v389
        %454 = vmatpush.msra.mxu0 %v386
        %455 = vmatpush.msra.mxu0 %v383
        %456 = vmatpush.msra.mxu0 %v380
        %457 = vmatpush.msra.mxu0 %v377
        %458 = vmatmul.f32.gmra.mxu0 %v400
        %v459 = vpop.f32.mrf.mxu0
        %v460 = vadd.f32 0.0, %v459
        %461 = vdwg.mxu0
        %v462 = vld [vmem:[%s2] sm:$0x1]
        %v464 = vperm.slane %v462, 0
        %v466 = vadd.f32 %v460, %v464
        %v467 = vld [vmem:[%s3] sm:$0xff]
        %v468 = vld [vmem:[%s3 + $0x8] sm:$0xff]
        %v469 = vld [vmem:[%s3 + $0x10] sm:$0xff]
        %v470 = vld [vmem:[%s3 + $0x18] sm:$0xff]
        %v471 = vld [vmem:[%s3 + $0x20] sm:$0xff]
        %v472 = vld [vmem:[%s3 + $0x28] sm:$0xff]
        %v473 = vld [vmem:[%s3 + $0x30] sm:$0xff]
        %v474 = vld [vmem:[%s3 + $0x38] sm:$0xff]
        %v475 = vld [vmem:[%s3 + $0x40] sm:$0xff]
        %v476 = vld [vmem:[%s3 + $0x48] sm:$0xff]
        %v477 = vld [vmem:[%s3 + $0x50] sm:$0xff]
        %v478 = vld [vmem:[%s3 + $0x58] sm:$0xff]
        %v479 = vld [vmem:[%s3 + $0x60] sm:$0xff]
        %v480 = vld [vmem:[%s3 + $0x68] sm:$0xff]
        %v481 = vld [vmem:[%s3 + $0x70] sm:$0xff]
        %v482 = vld [vmem:[%s3 + $0x78] sm:$0xff]
        %v483 = vld [vmem:[%s3 + $0x80] sm:$0xff]
        %v484 = vld [vmem:[%s3 + $0x88] sm:$0xff]
        %v485 = vld [vmem:[%s3 + $0x90] sm:$0xff]
        %v486 = vld [vmem:[%s3 + $0x98] sm:$0xff]
        %v487 = vld [vmem:[%s3 + $0xa0] sm:$0xff]
        %v488 = vld [vmem:[%s3 + $0xa8] sm:$0xff]
        %v489 = vld [vmem:[%s3 + $0xb0] sm:$0xff]
        %v490 = vld [vmem:[%s3 + $0xb8] sm:$0xff]
        %v491 = vld [vmem:[%s3 + $0xc0] sm:$0xff]
        %v492 = vld [vmem:[%s3 + $0xc8] sm:$0xff]
        %v493 = vld [vmem:[%s3 + $0xd0] sm:$0xff]
        %v494 = vld [vmem:[%s3 + $0xd8] sm:$0xff]
        %v495 = vld [vmem:[%s3 + $0xe0] sm:$0xff]
        %v496 = vld [vmem:[%s3 + $0xe8] sm:$0xff]
        %v497 = vld [vmem:[%s3 + $0xf0] sm:$0xff]
        %v498 = vld [vmem:[%s3 + $0xf8] sm:$0xff]
        %v499 = vld [vmem:[%s3 + $0x100] sm:$0xff]
        %v500 = vld [vmem:[%s3 + $0x108] sm:$0xff]
        %v501 = vld [vmem:[%s3 + $0x110] sm:$0xff]
        %v502 = vld [vmem:[%s3 + $0x118] sm:$0xff]
        %v503 = vld [vmem:[%s3 + $0x120] sm:$0xff]
        %v504 = vld [vmem:[%s3 + $0x128] sm:$0xff]
        %v505 = vld [vmem:[%s3 + $0x130] sm:$0xff]
        %v506 = vld [vmem:[%s3 + $0x138] sm:$0xff]
        %v507 = vld [vmem:[%s3 + $0x140] sm:$0xff]
        %v508 = vld [vmem:[%s3 + $0x148] sm:$0xff]
        %v509 = vld [vmem:[%s3 + $0x150] sm:$0xff]
        %v510 = vld [vmem:[%s3 + $0x158] sm:$0xff]
        %v511 = vld [vmem:[%s3 + $0x160] sm:$0xff]
        %v512 = vld [vmem:[%s3 + $0x168] sm:$0xff]
        %v513 = vld [vmem:[%s3 + $0x170] sm:$0xff]
        %v514 = vld [vmem:[%s3 + $0x178] sm:$0xff]
        %v515 = vld [vmem:[%s3 + $0x180] sm:$0xff]
        %v516 = vld [vmem:[%s3 + $0x188] sm:$0xff]
        %v517 = vld [vmem:[%s3 + $0x190] sm:$0xff]
        %v518 = vld [vmem:[%s3 + $0x198] sm:$0xff]
        %v519 = vld [vmem:[%s3 + $0x1a0] sm:$0xff]
        %v520 = vld [vmem:[%s3 + $0x1a8] sm:$0xff]
        %v521 = vld [vmem:[%s3 + $0x1b0] sm:$0xff]
        %v522 = vld [vmem:[%s3 + $0x1b8] sm:$0xff]
        %v523 = vld [vmem:[%s3 + $0x1c0] sm:$0xff]
        %v524 = vld [vmem:[%s3 + $0x1c8] sm:$0xff]
        %v525 = vld [vmem:[%s3 + $0x1d0] sm:$0xff]
        %v526 = vld [vmem:[%s3 + $0x1d8] sm:$0xff]
        %v527 = vld [vmem:[%s3 + $0x1e0] sm:$0xff]
        %v528 = vld [vmem:[%s3 + $0x1e8] sm:$0xff]
        %v529 = vld [vmem:[%s3 + $0x1f0] sm:$0xff]
        %v530 = vld [vmem:[%s3 + $0x1f8] sm:$0xff]
        %v531 = vld [vmem:[%s3 + $0x200] sm:$0xff]
        %v532 = vld [vmem:[%s3 + $0x208] sm:$0xff]
        %v533 = vld [vmem:[%s3 + $0x210] sm:$0xff]
        %v534 = vld [vmem:[%s3 + $0x218] sm:$0xff]
        %v535 = vld [vmem:[%s3 + $0x220] sm:$0xff]
        %v536 = vld [vmem:[%s3 + $0x228] sm:$0xff]
        %v537 = vld [vmem:[%s3 + $0x230] sm:$0xff]
        %v538 = vld [vmem:[%s3 + $0x238] sm:$0xff]
        %v539 = vld [vmem:[%s3 + $0x240] sm:$0xff]
        %v540 = vld [vmem:[%s3 + $0x248] sm:$0xff]
        %v541 = vld [vmem:[%s3 + $0x250] sm:$0xff]
        %v542 = vld [vmem:[%s3 + $0x258] sm:$0xff]
        %v543 = vld [vmem:[%s3 + $0x260] sm:$0xff]
        %v544 = vld [vmem:[%s3 + $0x268] sm:$0xff]
        %v545 = vld [vmem:[%s3 + $0x270] sm:$0xff]
        %v546 = vld [vmem:[%s3 + $0x278] sm:$0xff]
        %v547 = vld [vmem:[%s3 + $0x280] sm:$0xff]
        %v548 = vld [vmem:[%s3 + $0x288] sm:$0xff]
        %v549 = vld [vmem:[%s3 + $0x290] sm:$0xff]
        %v550 = vld [vmem:[%s3 + $0x298] sm:$0xff]
        %v551 = vld [vmem:[%s3 + $0x2a0] sm:$0xff]
        %v552 = vld [vmem:[%s3 + $0x2a8] sm:$0xff]
        %v553 = vld [vmem:[%s3 + $0x2b0] sm:$0xff]
        %v554 = vld [vmem:[%s3 + $0x2b8] sm:$0xff]
        %v555 = vld [vmem:[%s3 + $0x2c0] sm:$0xff]
        %v556 = vld [vmem:[%s3 + $0x2c8] sm:$0xff]
        %v557 = vld [vmem:[%s3 + $0x2d0] sm:$0xff]
        %v558 = vld [vmem:[%s3 + $0x2d8] sm:$0xff]
        %v559 = vld [vmem:[%s3 + $0x2e0] sm:$0xff]
        %v560 = vld [vmem:[%s3 + $0x2e8] sm:$0xff]
        %v561 = vld [vmem:[%s3 + $0x2f0] sm:$0xff]
        %v562 = vld [vmem:[%s3 + $0x2f8] sm:$0xff]
        %v563 = vld [vmem:[%s3 + $0x300] sm:$0xff]
        %v564 = vld [vmem:[%s3 + $0x308] sm:$0xff]
        %v565 = vld [vmem:[%s3 + $0x310] sm:$0xff]
        %v566 = vld [vmem:[%s3 + $0x318] sm:$0xff]
        %v567 = vld [vmem:[%s3 + $0x320] sm:$0xff]
        %v568 = vld [vmem:[%s3 + $0x328] sm:$0xff]
        %v569 = vld [vmem:[%s3 + $0x330] sm:$0xff]
        %v570 = vld [vmem:[%s3 + $0x338] sm:$0xff]
        %v571 = vld [vmem:[%s3 + $0x340] sm:$0xff]
        %v572 = vld [vmem:[%s3 + $0x348] sm:$0xff]
        %v573 = vld [vmem:[%s3 + $0x350] sm:$0xff]
        %v574 = vld [vmem:[%s3 + $0x358] sm:$0xff]
        %v575 = vld [vmem:[%s3 + $0x360] sm:$0xff]
        %v576 = vld [vmem:[%s3 + $0x368] sm:$0xff]
        %v577 = vld [vmem:[%s3 + $0x370] sm:$0xff]
        %v578 = vld [vmem:[%s3 + $0x378] sm:$0xff]
        %v579 = vld [vmem:[%s3 + $0x380] sm:$0xff]
        %v580 = vld [vmem:[%s3 + $0x388] sm:$0xff]
        %v581 = vld [vmem:[%s3 + $0x390] sm:$0xff]
        %v582 = vld [vmem:[%s3 + $0x398] sm:$0xff]
        %v583 = vld [vmem:[%s3 + $0x3a0] sm:$0xff]
        %v584 = vld [vmem:[%s3 + $0x3a8] sm:$0xff]
        %v585 = vld [vmem:[%s3 + $0x3b0] sm:$0xff]
        %v586 = vld [vmem:[%s3 + $0x3b8] sm:$0xff]
        %v587 = vld [vmem:[%s3 + $0x3c0] sm:$0xff]
        %v588 = vld [vmem:[%s3 + $0x3c8] sm:$0xff]
        %v589 = vld [vmem:[%s3 + $0x3d0] sm:$0xff]
        %v590 = vld [vmem:[%s3 + $0x3d8] sm:$0xff]
        %v591 = vld [vmem:[%s3 + $0x3e0] sm:$0xff]
        %v592 = vld [vmem:[%s3 + $0x3e8] sm:$0xff]
        %v593 = vld [vmem:[%s3 + $0x3f0] sm:$0xff]
        %v594 = vld [vmem:[%s3 + $0x3f8] sm:$0xff]
        %596 = vrot.lane.b32.xlu0 %v420, 112
        %v597 = vpop.permute.xlu0 %596
        %599 = vrot.lane.b32.xlu0 %v420, 96
        %v600 = vpop.permute.xlu0 %599
        %602 = vrot.lane.b32.xlu0 %v420, 80
        %v603 = vpop.permute.xlu0 %602
        %605 = vrot.lane.b32.xlu0 %v420, 64
        %v606 = vpop.permute.xlu0 %605
        %608 = vrot.lane.b32.xlu0 %v420, 48
        %v609 = vpop.permute.xlu0 %608
        %611 = vrot.lane.b32.xlu0 %v420, 32
        %v612 = vpop.permute.xlu0 %611
        %614 = vrot.lane.b32.xlu0 %v420, 16
        %v615 = vpop.permute.xlu0 %614
        %v617 = vrot.slane %v600, 4
        %vm618 = vcmask 1047556
        %v619 = vsel %vm618, %v617, %v420
        %v620 = vrot.slane %v420, 4
        %v621 = vsel %vm618, %v600, %v620
        %v623 = vunpack.c.l.s4 1983009808
        %v624 = vunpack.c.0.s8 %v623
        %v625 = vperm.slane %v619, %v624
        %v627 = vunpack.c.l.s4 1983009808
        %v628 = vunpack.c.0.s8 %v627
        %v629 = vperm.slane %v621, %v628
        %v630 = vrot.slane %v603, 4
        %v631 = vsel %vm618, %v630, %v597
        %v632 = vrot.slane %v597, 4
        %v633 = vsel %vm618, %v603, %v632
        %v635 = vunpack.c.l.s4 1983009808
        %v636 = vunpack.c.0.s8 %v635
        %v637 = vperm.slane %v631, %v636
        %v639 = vunpack.c.l.s4 1983009808
        %v640 = vunpack.c.0.s8 %v639
        %v641 = vperm.slane %v633, %v640
        %v642 = vrot.slane %v612, 4
        %v643 = vsel %vm618, %v642, %v606
        %v644 = vrot.slane %v606, 4
        %v645 = vsel %vm618, %v612, %v644
        %v647 = vunpack.c.l.s4 1983009808
        %v648 = vunpack.c.0.s8 %v647
        %v649 = vperm.slane %v643, %v648
        %v651 = vunpack.c.l.s4 1983009808
        %v652 = vunpack.c.0.s8 %v651
        %v653 = vperm.slane %v645, %v652
        %v654 = vrot.slane %v615, 4
        %v655 = vsel %vm618, %v654, %v609
        %v656 = vrot.slane %v609, 4
        %v657 = vsel %vm618, %v615, %v656
        %v659 = vunpack.c.l.s4 1983009808
        %v660 = vunpack.c.0.s8 %v659
        %v661 = vperm.slane %v655, %v660
        %v663 = vunpack.c.l.s4 1983009808
        %v664 = vunpack.c.0.s8 %v663
        %v665 = vperm.slane %v657, %v664
        %v666 = vrot.slane %v637, 4
        %v667 = vsel %vm618, %v666, %v625
        %v668 = vrot.slane %v625, 4
        %v669 = vsel %vm618, %v637, %v668
        %v671 = vunpack.c.l.s4 1934713408
        %v672 = vunpack.c.0.s8 %v671
        %v673 = vperm.slane %v667, %v672
        %v675 = vunpack.c.l.s4 1934713408
        %v676 = vunpack.c.0.s8 %v675
        %v677 = vperm.slane %v669, %v676
        %v678 = vrot.slane %v641, 4
        %v679 = vsel %vm618, %v678, %v629
        %v680 = vrot.slane %v629, 4
        %v681 = vsel %vm618, %v641, %v680
        %v683 = vunpack.c.l.s4 1934713408
        %v684 = vunpack.c.0.s8 %v683
        %v685 = vperm.slane %v679, %v684
        %v687 = vunpack.c.l.s4 1934713408
        %v688 = vunpack.c.0.s8 %v687
        %v689 = vperm.slane %v681, %v688
        %v690 = vrot.slane %v661, 4
        %v691 = vsel %vm618, %v690, %v649
        %v692 = vrot.slane %v649, 4
        %v693 = vsel %vm618, %v661, %v692
        %v695 = vunpack.c.l.s4 1934713408
        %v696 = vunpack.c.0.s8 %v695
        %v697 = vperm.slane %v691, %v696
        %v699 = vunpack.c.l.s4 1934713408
        %v700 = vunpack.c.0.s8 %v699
        %v701 = vperm.slane %v693, %v700
        %v702 = vrot.slane %v665, 4
        %v703 = vsel %vm618, %v702, %v653
        %v704 = vrot.slane %v653, 4
        %v705 = vsel %vm618, %v665, %v704
        %v707 = vunpack.c.l.s4 1934713408
        %v708 = vunpack.c.0.s8 %v707
        %v709 = vperm.slane %v703, %v708
        %v711 = vunpack.c.l.s4 1934713408
        %v712 = vunpack.c.0.s8 %v711
        %v713 = vperm.slane %v705, %v712
        %v714 = vrot.slane %v697, 4
        %v715 = vsel %vm618, %v714, %v673
        %v716 = vrot.slane %v673, 4
        %v717 = vsel %vm618, %v697, %v716
        %v718 = vrot.slane %v701, 4
        %v719 = vsel %vm618, %v718, %v677
        %v720 = vrot.slane %v677, 4
        %v721 = vsel %vm618, %v701, %v720
        %v722 = vrot.slane %v709, 4
        %v723 = vsel %vm618, %v722, %v685
        %v724 = vrot.slane %v685, 4
        %v725 = vsel %vm618, %v709, %v724
        %v726 = vrot.slane %v713, 4
        %v727 = vsel %vm618, %v726, %v689
        %v728 = vrot.slane %v689, 4
        %v729 = vsel %vm618, %v713, %v728
        %v730 = vrot.slane %v719, 4
        %v731 = vsel %vm618, %v730, %v715
        %v732 = vrot.slane %v715, 4
        %v733 = vsel %vm618, %v719, %v732
        %v735 = vunpack.c.l.s4 1983009808
        %v736 = vunpack.c.0.s8 %v735
        %v737 = vperm.slane %v731, %v736
        %v739 = vunpack.c.l.s4 1983009808
        %v740 = vunpack.c.0.s8 %v739
        %v741 = vperm.slane %v733, %v740
        %v742 = vrot.slane %v721, 4
        %v743 = vsel %vm618, %v742, %v717
        %v744 = vrot.slane %v717, 4
        %v745 = vsel %vm618, %v721, %v744
        %v747 = vunpack.c.l.s4 1983009808
        %v748 = vunpack.c.0.s8 %v747
        %v749 = vperm.slane %v743, %v748
        %v751 = vunpack.c.l.s4 1983009808
        %v752 = vunpack.c.0.s8 %v751
        %v753 = vperm.slane %v745, %v752
        %v754 = vrot.slane %v727, 4
        %v755 = vsel %vm618, %v754, %v723
        %v756 = vrot.slane %v723, 4
        %v757 = vsel %vm618, %v727, %v756
        %v759 = vunpack.c.l.s4 1983009808
        %v760 = vunpack.c.0.s8 %v759
        %v761 = vperm.slane %v755, %v760
        %v763 = vunpack.c.l.s4 1983009808
        %v764 = vunpack.c.0.s8 %v763
        %v765 = vperm.slane %v757, %v764
        %v766 = vrot.slane %v729, 4
        %v767 = vsel %vm618, %v766, %v725
        %v768 = vrot.slane %v725, 4
        %v769 = vsel %vm618, %v729, %v768
        %v771 = vunpack.c.l.s4 1983009808
        %v772 = vunpack.c.0.s8 %v771
        %v773 = vperm.slane %v767, %v772
        %v775 = vunpack.c.l.s4 1983009808
        %v776 = vunpack.c.0.s8 %v775
        %v777 = vperm.slane %v769, %v776
        %v778 = vrot.slane %v749, 4
        %v779 = vsel %vm618, %v778, %v737
        %v780 = vrot.slane %v737, 4
        %v781 = vsel %vm618, %v749, %v780
        %v783 = vunpack.c.l.s4 1934713408
        %v784 = vunpack.c.0.s8 %v783
        %v785 = vperm.slane %v779, %v784
        %v787 = vunpack.c.l.s4 1934713408
        %v788 = vunpack.c.0.s8 %v787
        %v789 = vperm.slane %v781, %v788
        %v790 = vrot.slane %v753, 4
        %v791 = vsel %vm618, %v790, %v741
        %v792 = vrot.slane %v741, 4
        %v793 = vsel %vm618, %v753, %v792
        %v795 = vunpack.c.l.s4 1934713408
        %v796 = vunpack.c.0.s8 %v795
        %v797 = vperm.slane %v791, %v796
        %v799 = vunpack.c.l.s4 1934713408
        %v800 = vunpack.c.0.s8 %v799
        %v801 = vperm.slane %v793, %v800
        %v802 = vrot.slane %v773, 4
        %v803 = vsel %vm618, %v802, %v761
        %v804 = vrot.slane %v761, 4
        %v805 = vsel %vm618, %v773, %v804
        %v807 = vunpack.c.l.s4 1934713408
        %v808 = vunpack.c.0.s8 %v807
        %v809 = vperm.slane %v803, %v808
        %v811 = vunpack.c.l.s4 1934713408
        %v812 = vunpack.c.0.s8 %v811
        %v813 = vperm.slane %v805, %v812
        %v814 = vrot.slane %v777, 4
        %v815 = vsel %vm618, %v814, %v765
        %v816 = vrot.slane %v765, 4
        %v817 = vsel %vm618, %v777, %v816
        %v819 = vunpack.c.l.s4 1934713408
        %v820 = vunpack.c.0.s8 %v819
        %v821 = vperm.slane %v815, %v820
        %v823 = vunpack.c.l.s4 1934713408
        %v824 = vunpack.c.0.s8 %v823
        %v825 = vperm.slane %v817, %v824
        %v826 = vrot.slane %v809, 4
        %v827 = vsel %vm618, %v826, %v785
        %v828 = vrot.slane %v785, 4
        %v829 = vsel %vm618, %v809, %v828
        %v830 = vrot.slane %v813, 4
        %v831 = vsel %vm618, %v830, %v789
        %v832 = vrot.slane %v789, 4
        %v833 = vsel %vm618, %v813, %v832
        %v834 = vrot.slane %v821, 4
        %v835 = vsel %vm618, %v834, %v797
        %v836 = vrot.slane %v797, 4
        %v837 = vsel %vm618, %v821, %v836
        %v838 = vrot.slane %v825, 4
        %v839 = vsel %vm618, %v838, %v801
        %v840 = vrot.slane %v801, 4
        %v841 = vsel %vm618, %v825, %v840
        %843 = vrot.lane.b32.xlu0 %v440, 112
        %v844 = vpop.permute.xlu0 %843
        %846 = vrot.lane.b32.xlu0 %v440, 96
        %v847 = vpop.permute.xlu0 %846
        %849 = vrot.lane.b32.xlu0 %v440, 80
        %v850 = vpop.permute.xlu0 %849
        %852 = vrot.lane.b32.xlu0 %v440, 64
        %v853 = vpop.permute.xlu0 %852
        %855 = vrot.lane.b32.xlu0 %v440, 48
        %v856 = vpop.permute.xlu0 %855
        %858 = vrot.lane.b32.xlu0 %v440, 32
        %v859 = vpop.permute.xlu0 %858
        %861 = vrot.lane.b32.xlu0 %v440, 16
        %v862 = vpop.permute.xlu0 %861
        %v864 = vrot.slane %v847, 4
        %v865 = vsel %vm618, %v864, %v440
        %v866 = vrot.slane %v440, 4
        %v867 = vsel %vm618, %v847, %v866
        %v869 = vunpack.c.l.s4 1983009808
        %v870 = vunpack.c.0.s8 %v869
        %v871 = vperm.slane %v865, %v870
        %v873 = vunpack.c.l.s4 1983009808
        %v874 = vunpack.c.0.s8 %v873
        %v875 = vperm.slane %v867, %v874
        %v876 = vrot.slane %v850, 4
        %v877 = vsel %vm618, %v876, %v844
        %v878 = vrot.slane %v844, 4
        %v879 = vsel %vm618, %v850, %v878
        %v881 = vunpack.c.l.s4 1983009808
        %v882 = vunpack.c.0.s8 %v881
        %v883 = vperm.slane %v877, %v882
        %v885 = vunpack.c.l.s4 1983009808
        %v886 = vunpack.c.0.s8 %v885
        %v887 = vperm.slane %v879, %v886
        %v888 = vrot.slane %v859, 4
        %v889 = vsel %vm618, %v888, %v853
        %v890 = vrot.slane %v853, 4
        %v891 = vsel %vm618, %v859, %v890
        %v893 = vunpack.c.l.s4 1983009808
        %v894 = vunpack.c.0.s8 %v893
        %v895 = vperm.slane %v889, %v894
        %v897 = vunpack.c.l.s4 1983009808
        %v898 = vunpack.c.0.s8 %v897
        %v899 = vperm.slane %v891, %v898
        %v900 = vrot.slane %v862, 4
        %v901 = vsel %vm618, %v900, %v856
        %v902 = vrot.slane %v856, 4
        %v903 = vsel %vm618, %v862, %v902
        %v905 = vunpack.c.l.s4 1983009808
        %v906 = vunpack.c.0.s8 %v905
        %v907 = vperm.slane %v901, %v906
        %v909 = vunpack.c.l.s4 1983009808
        %v910 = vunpack.c.0.s8 %v909
        %v911 = vperm.slane %v903, %v910
        %v912 = vrot.slane %v883, 4
        %v913 = vsel %vm618, %v912, %v871
        %v914 = vrot.slane %v871, 4
        %v915 = vsel %vm618, %v883, %v914
        %v917 = vunpack.c.l.s4 1934713408
        %v918 = vunpack.c.0.s8 %v917
        %v919 = vperm.slane %v913, %v918
        %v921 = vunpack.c.l.s4 1934713408
        %v922 = vunpack.c.0.s8 %v921
        %v923 = vperm.slane %v915, %v922
        %v924 = vrot.slane %v887, 4
        %v925 = vsel %vm618, %v924, %v875
        %v926 = vrot.slane %v875, 4
        %v927 = vsel %vm618, %v887, %v926
        %v929 = vunpack.c.l.s4 1934713408
        %v930 = vunpack.c.0.s8 %v929
        %v931 = vperm.slane %v925, %v930
        %v933 = vunpack.c.l.s4 1934713408
        %v934 = vunpack.c.0.s8 %v933
        %v935 = vperm.slane %v927, %v934
        %v936 = vrot.slane %v907, 4
        %v937 = vsel %vm618, %v936, %v895
        %v938 = vrot.slane %v895, 4
        %v939 = vsel %vm618, %v907, %v938
        %v941 = vunpack.c.l.s4 1934713408
        %v942 = vunpack.c.0.s8 %v941
        %v943 = vperm.slane %v937, %v942
        %v945 = vunpack.c.l.s4 1934713408
        %v946 = vunpack.c.0.s8 %v945
        %v947 = vperm.slane %v939, %v946
        %v948 = vrot.slane %v911, 4
        %v949 = vsel %vm618, %v948, %v899
        %v950 = vrot.slane %v899, 4
        %v951 = vsel %vm618, %v911, %v950
        %v953 = vunpack.c.l.s4 1934713408
        %v954 = vunpack.c.0.s8 %v953
        %v955 = vperm.slane %v949, %v954
        %v957 = vunpack.c.l.s4 1934713408
        %v958 = vunpack.c.0.s8 %v957
        %v959 = vperm.slane %v951, %v958
        %v960 = vrot.slane %v943, 4
        %v961 = vsel %vm618, %v960, %v919
        %v962 = vrot.slane %v919, 4
        %v963 = vsel %vm618, %v943, %v962
        %v964 = vrot.slane %v947, 4
        %v965 = vsel %vm618, %v964, %v923
        %v966 = vrot.slane %v923, 4
        %v967 = vsel %vm618, %v947, %v966
        %v968 = vrot.slane %v955, 4
        %v969 = vsel %vm618, %v968, %v931
        %v970 = vrot.slane %v931, 4
        %v971 = vsel %vm618, %v955, %v970
        %v972 = vrot.slane %v959, 4
        %v973 = vsel %vm618, %v972, %v935
        %v974 = vrot.slane %v935, 4
        %v975 = vsel %vm618, %v959, %v974
        %v976 = vrot.slane %v965, 4
        %v977 = vsel %vm618, %v976, %v961
        %v978 = vrot.slane %v961, 4
        %v979 = vsel %vm618, %v965, %v978
        %v981 = vunpack.c.l.s4 1983009808
        %v982 = vunpack.c.0.s8 %v981
        %v983 = vperm.slane %v977, %v982
        %v985 = vunpack.c.l.s4 1983009808
        %v986 = vunpack.c.0.s8 %v985
        %v987 = vperm.slane %v979, %v986
        %v988 = vrot.slane %v967, 4
        %v989 = vsel %vm618, %v988, %v963
        %v990 = vrot.slane %v963, 4
        %v991 = vsel %vm618, %v967, %v990
        %v993 = vunpack.c.l.s4 1983009808
        %v994 = vunpack.c.0.s8 %v993
        %v995 = vperm.slane %v989, %v994
        %v997 = vunpack.c.l.s4 1983009808
        %v998 = vunpack.c.0.s8 %v997
        %v999 = vperm.slane %v991, %v998
        %v1000 = vrot.slane %v973, 4
        %v1001 = vsel %vm618, %v1000, %v969
        %v1002 = vrot.slane %v969, 4
        %v1003 = vsel %vm618, %v973, %v1002
        %v1005 = vunpack.c.l.s4 1983009808
        %v1006 = vunpack.c.0.s8 %v1005
        %v1007 = vperm.slane %v1001, %v1006
        %v1009 = vunpack.c.l.s4 1983009808
        %v1010 = vunpack.c.0.s8 %v1009
        %v1011 = vperm.slane %v1003, %v1010
        %v1012 = vrot.slane %v975, 4
        %v1013 = vsel %vm618, %v1012, %v971
        %v1014 = vrot.slane %v971, 4
        %v1015 = vsel %vm618, %v975, %v1014
        %v1017 = vunpack.c.l.s4 1983009808
        %v1018 = vunpack.c.0.s8 %v1017
        %v1019 = vperm.slane %v1013, %v1018
        %v1021 = vunpack.c.l.s4 1983009808
        %v1022 = vunpack.c.0.s8 %v1021
        %v1023 = vperm.slane %v1015, %v1022
        %v1024 = vrot.slane %v995, 4
        %v1025 = vsel %vm618, %v1024, %v983
        %v1026 = vrot.slane %v983, 4
        %v1027 = vsel %vm618, %v995, %v1026
        %v1029 = vunpack.c.l.s4 1934713408
        %v1030 = vunpack.c.0.s8 %v1029
        %v1031 = vperm.slane %v1025, %v1030
        %v1033 = vunpack.c.l.s4 1934713408
        %v1034 = vunpack.c.0.s8 %v1033
        %v1035 = vperm.slane %v1027, %v1034
        %v1036 = vrot.slane %v999, 4
        %v1037 = vsel %vm618, %v1036, %v987
        %v1038 = vrot.slane %v987, 4
        %v1039 = vsel %vm618, %v999, %v1038
        %v1041 = vunpack.c.l.s4 1934713408
        %v1042 = vunpack.c.0.s8 %v1041
        %v1043 = vperm.slane %v1037, %v1042
        %v1045 = vunpack.c.l.s4 1934713408
        %v1046 = vunpack.c.0.s8 %v1045
        %v1047 = vperm.slane %v1039, %v1046
        %v1048 = vrot.slane %v1019, 4
        %v1049 = vsel %vm618, %v1048, %v1007
        %v1050 = vrot.slane %v1007, 4
        %v1051 = vsel %vm618, %v1019, %v1050
        %v1053 = vunpack.c.l.s4 1934713408
        %v1054 = vunpack.c.0.s8 %v1053
        %v1055 = vperm.slane %v1049, %v1054
        %v1057 = vunpack.c.l.s4 1934713408
        %v1058 = vunpack.c.0.s8 %v1057
        %v1059 = vperm.slane %v1051, %v1058
        %v1060 = vrot.slane %v1023, 4
        %v1061 = vsel %vm618, %v1060, %v1011
        %v1062 = vrot.slane %v1011, 4
        %v1063 = vsel %vm618, %v1023, %v1062
        %v1065 = vunpack.c.l.s4 1934713408
        %v1066 = vunpack.c.0.s8 %v1065
        %v1067 = vperm.slane %v1061, %v1066
        %v1069 = vunpack.c.l.s4 1934713408
        %v1070 = vunpack.c.0.s8 %v1069
        %v1071 = vperm.slane %v1063, %v1070
        %v1072 = vrot.slane %v1055, 4
        %v1073 = vsel %vm618, %v1072, %v1031
        %v1074 = vrot.slane %v1031, 4
        %v1075 = vsel %vm618, %v1055, %v1074
        %v1076 = vrot.slane %v1059, 4
        %v1077 = vsel %vm618, %v1076, %v1035
        %v1078 = vrot.slane %v1035, 4
        %v1079 = vsel %vm618, %v1059, %v1078
        %v1080 = vrot.slane %v1067, 4
        %v1081 = vsel %vm618, %v1080, %v1043
        %v1082 = vrot.slane %v1043, 4
        %v1083 = vsel %vm618, %v1067, %v1082
        %v1084 = vrot.slane %v1071, 4
        %v1085 = vsel %vm618, %v1084, %v1047
        %v1086 = vrot.slane %v1047, 4
        %v1087 = vsel %vm618, %v1071, %v1086
        %vm1088 = vcmask 130048
        %v1090 = vsel %vm1088, %v827, 0
        %v1093 = vsel %vm1088, %v1073, 0
        %1095 = vmatpush.xpose.msra.mxu0 0.0
        %1096 = vmatpush.xpose.msra.mxu0 0.0
        %1097 = vmatpush.xpose.msra.mxu0 0.0
        %1098 = vmatpush.xpose.msra.mxu0 0.0
        %1099 = vmatpush.xpose.msra.mxu0 0.0
        %1100 = vmatpush.xpose.msra.mxu0 0.0
        %1101 = vmatpush.xpose.msra.mxu0 0.0
        %1102 = vmatpush.xpose.msra.mxu0 0.0
        %1103 = vmatpush.xpose.msra.mxu0 0.0
        %1104 = vmatpush.xpose.msra.mxu0 0.0
        %1105 = vmatpush.xpose.msra.mxu0 0.0
        %1106 = vmatpush.xpose.msra.mxu0 0.0
        %1107 = vmatpush.xpose.msra.mxu0 0.0
        %1108 = vmatpush.xpose.msra.mxu0 0.0
        %1109 = vmatpush.xpose.msra.mxu0 0.0
        %1110 = vmatpush.xpose.msra.mxu0 %v1093
        %1111 = vmatmul.f32.gmra.mxu0 %v1090
        %v1112 = vpop.f32.mrf.mxu0
        %v1113 = vadd.f32 0.0, %v1112
        %1114 = vdwg.mxu0
        %v1116 = vsel %vm1088, %v829, 0
        %v1119 = vsel %vm1088, %v1075, 0
        %1121 = vmatpush.xpose.msra.mxu0 0.0
        %1122 = vmatpush.xpose.msra.mxu0 0.0
        %1123 = vmatpush.xpose.msra.mxu0 0.0
        %1124 = vmatpush.xpose.msra.mxu0 0.0
        %1125 = vmatpush.xpose.msra.mxu0 0.0
        %1126 = vmatpush.xpose.msra.mxu0 0.0
        %1127 = vmatpush.xpose.msra.mxu0 0.0
        %1128 = vmatpush.xpose.msra.mxu0 0.0
        %1129 = vmatpush.xpose.msra.mxu0 0.0
        %1130 = vmatpush.xpose.msra.mxu0 0.0
        %1131 = vmatpush.xpose.msra.mxu0 0.0
        %1132 = vmatpush.xpose.msra.mxu0 0.0
        %1133 = vmatpush.xpose.msra.mxu0 0.0
        %1134 = vmatpush.xpose.msra.mxu0 0.0
        %1135 = vmatpush.xpose.msra.mxu0 0.0
        %1136 = vmatpush.xpose.msra.mxu0 %v1119
        %1137 = vmatmul.f32.gmra.mxu0 %v1116
        %v1138 = vpop.f32.mrf.mxu0
        %v1139 = vadd.f32 0.0, %v1138
        %1140 = vdwg.mxu0
        %v1142 = vsel %vm1088, %v831, 0
        %v1145 = vsel %vm1088, %v1077, 0
        %1147 = vmatpush.xpose.msra.mxu0 0.0
        %1148 = vmatpush.xpose.msra.mxu0 0.0
        %1149 = vmatpush.xpose.msra.mxu0 0.0
        %1150 = vmatpush.xpose.msra.mxu0 0.0
        %1151 = vmatpush.xpose.msra.mxu0 0.0
        %1152 = vmatpush.xpose.msra.mxu0 0.0
        %1153 = vmatpush.xpose.msra.mxu0 0.0
        %1154 = vmatpush.xpose.msra.mxu0 0.0
        %1155 = vmatpush.xpose.msra.mxu0 0.0
        %1156 = vmatpush.xpose.msra.mxu0 0.0
        %1157 = vmatpush.xpose.msra.mxu0 0.0
        %1158 = vmatpush.xpose.msra.mxu0 0.0
        %1159 = vmatpush.xpose.msra.mxu0 0.0
        %1160 = vmatpush.xpose.msra.mxu0 0.0
        %1161 = vmatpush.xpose.msra.mxu0 0.0
        %1162 = vmatpush.xpose.msra.mxu0 %v1145
        %1163 = vmatmul.f32.gmra.mxu0 %v1142
        %v1164 = vpop.f32.mrf.mxu0
        %v1165 = vadd.f32 0.0, %v1164
        %1166 = vdwg.mxu0
        %v1168 = vsel %vm1088, %v833, 0
        %v1171 = vsel %vm1088, %v1079, 0
        %1173 = vmatpush.xpose.msra.mxu0 0.0
        %1174 = vmatpush.xpose.msra.mxu0 0.0
        %1175 = vmatpush.xpose.msra.mxu0 0.0
        %1176 = vmatpush.xpose.msra.mxu0 0.0
        %1177 = vmatpush.xpose.msra.mxu0 0.0
        %1178 = vmatpush.xpose.msra.mxu0 0.0
        %1179 = vmatpush.xpose.msra.mxu0 0.0
        %1180 = vmatpush.xpose.msra.mxu0 0.0
        %1181 = vmatpush.xpose.msra.mxu0 0.0
        %1182 = vmatpush.xpose.msra.mxu0 0.0
        %1183 = vmatpush.xpose.msra.mxu0 0.0
        %1184 = vmatpush.xpose.msra.mxu0 0.0
        %1185 = vmatpush.xpose.msra.mxu0 0.0
        %1186 = vmatpush.xpose.msra.mxu0 0.0
        %1187 = vmatpush.xpose.msra.mxu0 0.0
        %1188 = vmatpush.xpose.msra.mxu0 %v1171
        %1189 = vmatmul.f32.gmra.mxu0 %v1168
        %v1190 = vpop.f32.mrf.mxu0
        %v1191 = vadd.f32 0.0, %v1190
        %1192 = vdwg.mxu0
        %v1194 = vsel %vm1088, %v835, 0
        %v1197 = vsel %vm1088, %v1081, 0
        %1199 = vmatpush.xpose.msra.mxu0 0.0
        %1200 = vmatpush.xpose.msra.mxu0 0.0
        %1201 = vmatpush.xpose.msra.mxu0 0.0
        %1202 = vmatpush.xpose.msra.mxu0 0.0
        %1203 = vmatpush.xpose.msra.mxu0 0.0
        %1204 = vmatpush.xpose.msra.mxu0 0.0
        %1205 = vmatpush.xpose.msra.mxu0 0.0
        %1206 = vmatpush.xpose.msra.mxu0 0.0
        %1207 = vmatpush.xpose.msra.mxu0 0.0
        %1208 = vmatpush.xpose.msra.mxu0 0.0
        %1209 = vmatpush.xpose.msra.mxu0 0.0
        %1210 = vmatpush.xpose.msra.mxu0 0.0
        %1211 = vmatpush.xpose.msra.mxu0 0.0
        %1212 = vmatpush.xpose.msra.mxu0 0.0
        %1213 = vmatpush.xpose.msra.mxu0 0.0
        %1214 = vmatpush.xpose.msra.mxu0 %v1197
        %1215 = vmatmul.f32.gmra.mxu0 %v1194
        %v1216 = vpop.f32.mrf.mxu0
        %v1217 = vadd.f32 0.0, %v1216
        %1218 = vdwg.mxu0
        %v1220 = vsel %vm1088, %v837, 0
        %v1223 = vsel %vm1088, %v1083, 0
        %1225 = vmatpush.xpose.msra.mxu0 0.0
        %1226 = vmatpush.xpose.msra.mxu0 0.0
        %1227 = vmatpush.xpose.msra.mxu0 0.0
        %1228 = vmatpush.xpose.msra.mxu0 0.0
        %1229 = vmatpush.xpose.msra.mxu0 0.0
        %1230 = vmatpush.xpose.msra.mxu0 0.0
        %1231 = vmatpush.xpose.msra.mxu0 0.0
        %1232 = vmatpush.xpose.msra.mxu0 0.0
        %1233 = vmatpush.xpose.msra.mxu0 0.0
        %1234 = vmatpush.xpose.msra.mxu0 0.0
        %1235 = vmatpush.xpose.msra.mxu0 0.0
        %1236 = vmatpush.xpose.msra.mxu0 0.0
        %1237 = vmatpush.xpose.msra.mxu0 0.0
        %1238 = vmatpush.xpose.msra.mxu0 0.0
        %1239 = vmatpush.xpose.msra.mxu0 0.0
        %1240 = vmatpush.xpose.msra.mxu0 %v1223
        %1241 = vmatmul.f32.gmra.mxu0 %v1220
        %v1242 = vpop.f32.mrf.mxu0
        %v1243 = vadd.f32 0.0, %v1242
        %1244 = vdwg.mxu0
        %v1246 = vsel %vm1088, %v839, 0
        %v1249 = vsel %vm1088, %v1085, 0
        %1251 = vmatpush.xpose.msra.mxu0 0.0
        %1252 = vmatpush.xpose.msra.mxu0 0.0
        %1253 = vmatpush.xpose.msra.mxu0 0.0
        %1254 = vmatpush.xpose.msra.mxu0 0.0
        %1255 = vmatpush.xpose.msra.mxu0 0.0
        %1256 = vmatpush.xpose.msra.mxu0 0.0
        %1257 = vmatpush.xpose.msra.mxu0 0.0
        %1258 = vmatpush.xpose.msra.mxu0 0.0
        %1259 = vmatpush.xpose.msra.mxu0 0.0
        %1260 = vmatpush.xpose.msra.mxu0 0.0
        %1261 = vmatpush.xpose.msra.mxu0 0.0
        %1262 = vmatpush.xpose.msra.mxu0 0.0
        %1263 = vmatpush.xpose.msra.mxu0 0.0
        %1264 = vmatpush.xpose.msra.mxu0 0.0
        %1265 = vmatpush.xpose.msra.mxu0 0.0
        %1266 = vmatpush.xpose.msra.mxu0 %v1249
        %1267 = vmatmul.f32.gmra.mxu0 %v1246
        %v1268 = vpop.f32.mrf.mxu0
        %v1269 = vadd.f32 0.0, %v1268
        %1270 = vdwg.mxu0
        %v1272 = vsel %vm1088, %v841, 0
        %v1275 = vsel %vm1088, %v1087, 0
        %1277 = vmatpush.xpose.msra.mxu0 0.0
        %1278 = vmatpush.xpose.msra.mxu0 0.0
        %1279 = vmatpush.xpose.msra.mxu0 0.0
        %1280 = vmatpush.xpose.msra.mxu0 0.0
        %1281 = vmatpush.xpose.msra.mxu0 0.0
        %1282 = vmatpush.xpose.msra.mxu0 0.0
        %1283 = vmatpush.xpose.msra.mxu0 0.0
        %1284 = vmatpush.xpose.msra.mxu0 0.0
        %1285 = vmatpush.xpose.msra.mxu0 0.0
        %1286 = vmatpush.xpose.msra.mxu0 0.0
        %1287 = vmatpush.xpose.msra.mxu0 0.0
        %1288 = vmatpush.xpose.msra.mxu0 0.0
        %1289 = vmatpush.xpose.msra.mxu0 0.0
        %1290 = vmatpush.xpose.msra.mxu0 0.0
        %1291 = vmatpush.xpose.msra.mxu0 0.0
        %1292 = vmatpush.xpose.msra.mxu0 %v1275
        %1293 = vmatmul.f32.gmra.mxu0 %v1272
        %v1294 = vpop.f32.mrf.mxu0
        %v1295 = vadd.f32 0.0, %v1294
        %1296 = vdwg.mxu0
        %vm1297 = vcmask 64512
        %v1298 = vsel %vm1297, %v1113, -inf
        %1299 = vmax.xlane.f32.xlu0 %v1298
        %v1300 = vpop.xlane.xlu0 %1299
        %v1301 = vsel %vm1297, %v1139, -inf
        %1302 = vmax.xlane.f32.xlu0 %v1301
        %v1303 = vpop.xlane.xlu0 %1302
        %v1304 = vsel %vm1297, %v1165, -inf
        %1305 = vmax.xlane.f32.xlu0 %v1304
        %v1306 = vpop.xlane.xlu0 %1305
        %v1307 = vsel %vm1297, %v1191, -inf
        %1308 = vmax.xlane.f32.xlu0 %v1307
        %v1309 = vpop.xlane.xlu0 %1308
        %v1310 = vsel %vm1297, %v1217, -inf
        %1311 = vmax.xlane.f32.xlu0 %v1310
        %v1312 = vpop.xlane.xlu0 %1311
        %v1313 = vsel %vm1297, %v1243, -inf
        %1314 = vmax.xlane.f32.xlu0 %v1313
        %v1315 = vpop.xlane.xlu0 %1314
        %v1316 = vsel %vm1297, %v1269, -inf
        %1317 = vmax.xlane.f32.xlu0 %v1316
        %v1318 = vpop.xlane.xlu0 %1317
        %v1319 = vsel %vm1297, %v1295, -inf
        %1320 = vmax.xlane.f32.xlu0 %v1319
        %v1321 = vpop.xlane.xlu0 %1320
        %v1322 = vsub.f32 %v1113, %v1300
        %v1323 = vsub.f32 %v1139, %v1303
        %v1324 = vsub.f32 %v1165, %v1306
        %v1325 = vsub.f32 %v1191, %v1309
        %v1326 = vsub.f32 %v1217, %v1312
        %v1327 = vsub.f32 %v1243, %v1315
        %v1328 = vsub.f32 %v1269, %v1318
        %v1329 = vsub.f32 %v1295, %v1321
        %v1330 = vmul.f32 %v1322, 1.442695
        %v1331 = vpow.pop %v1330
        %v1332 = vmul.f32 %v1323, 1.442695
        %v1333 = vpow.pop %v1332
        %v1334 = vmul.f32 %v1324, 1.442695
        %v1335 = vpow.pop %v1334
        %v1336 = vmul.f32 %v1325, 1.442695
        %v1337 = vpow.pop %v1336
        %v1338 = vmul.f32 %v1326, 1.442695
        %v1339 = vpow.pop %v1338
        %v1340 = vmul.f32 %v1327, 1.442695
        %v1341 = vpow.pop %v1340
        %v1342 = vmul.f32 %v1328, 1.442695
        %v1343 = vpow.pop %v1342
        %v1344 = vmul.f32 %v1329, 1.442695
        %v1345 = vpow.pop %v1344
        %v1346 = vsel %vm1297, %v1331, 0.0
        %1347 = vadd.xlane.f32.xlu0 %v1346
        %v1348 = vpop.xlane.xlu0 %1347
        %v1349 = vsel %vm1297, %v1333, 0.0
        %1350 = vadd.xlane.f32.xlu0 %v1349
        %v1351 = vpop.xlane.xlu0 %1350
        %v1352 = vsel %vm1297, %v1335, 0.0
        %1353 = vadd.xlane.f32.xlu0 %v1352
        %v1354 = vpop.xlane.xlu0 %1353
        %v1355 = vsel %vm1297, %v1337, 0.0
        %1356 = vadd.xlane.f32.xlu0 %v1355
        %v1357 = vpop.xlane.xlu0 %1356
        %v1358 = vsel %vm1297, %v1339, 0.0
        %1359 = vadd.xlane.f32.xlu0 %v1358
        %v1360 = vpop.xlane.xlu0 %1359
        %v1361 = vsel %vm1297, %v1341, 0.0
        %1362 = vadd.xlane.f32.xlu0 %v1361
        %v1363 = vpop.xlane.xlu0 %1362
        %v1364 = vsel %vm1297, %v1343, 0.0
        %1365 = vadd.xlane.f32.xlu0 %v1364
        %v1366 = vpop.xlane.xlu0 %1365
        %v1367 = vsel %vm1297, %v1345, 0.0
        %1368 = vadd.xlane.f32.xlu0 %v1367
        %v1369 = vpop.xlane.xlu0 %1368
        %v1370 = vrcp.pop %v1348
        %v1371 = vrcp.pop %v1351
        %v1372 = vrcp.pop %v1354
        %v1373 = vrcp.pop %v1357
        %v1374 = vrcp.pop %v1360
        %v1375 = vrcp.pop %v1363
        %v1376 = vrcp.pop %v1366
        %v1377 = vrcp.pop %v1369
        %v1378 = vmul.f32 %v1331, %v1370
        %v1379 = vmul.f32 %v1333, %v1371
        %v1380 = vmul.f32 %v1335, %v1372
        %v1381 = vmul.f32 %v1337, %v1373
        %v1382 = vmul.f32 %v1339, %v1374
        %v1383 = vmul.f32 %v1341, %v1375
        %v1384 = vmul.f32 %v1343, %v1376
        %v1385 = vmul.f32 %v1345, %v1377
        %v1387 = vsel %vm1297, %v1378, 0
        %v1390 = vsel %vm1297, %v1379, 0
        %v1393 = vsel %vm1297, %v1380, 0
        %v1396 = vsel %vm1297, %v1381, 0
        %v1399 = vsel %vm1297, %v1382, 0
        %v1402 = vsel %vm1297, %v1383, 0
        %v1405 = vsel %vm1297, %v1384, 0
        %v1408 = vsel %vm1297, %v1385, 0
        %1410 = vmatpush.msra.mxu0 0.0
        %1411 = vmatpush.msra.mxu0 0.0
        %1412 = vmatpush.msra.mxu0 0.0
        %1413 = vmatpush.msra.mxu0 0.0
        %1414 = vmatpush.msra.mxu0 0.0
        %1415 = vmatpush.msra.mxu0 0.0
        %1416 = vmatpush.msra.mxu0 0.0
        %1417 = vmatpush.msra.mxu0 0.0
        %1418 = vmatpush.msra.mxu0 0.0
        %1419 = vmatpush.msra.mxu0 0.0
        %1420 = vmatpush.msra.mxu0 0.0
        %1421 = vmatpush.msra.mxu0 0.0
        %1422 = vmatpush.msra.mxu0 0.0
        %1423 = vmatpush.msra.mxu0 0.0
        %1424 = vmatpush.msra.mxu0 0.0
        %1425 = vmatpush.msra.mxu0 %v466
        %1426 = vmatmul.f32.gmra.mxu0 %v1387
        %v1427 = vpop.f32.mrf.mxu0
        %v1428 = vadd.f32 0.0, %v1427
        %1429 = vmatmul.f32.gmra.mxu0 %v1390
        %v1430 = vpop.f32.mrf.mxu0
        %v1431 = vadd.f32 0.0, %v1430
        %1432 = vmatmul.f32.gmra.mxu0 %v1393
        %v1433 = vpop.f32.mrf.mxu0
        %v1434 = vadd.f32 0.0, %v1433
        %1435 = vmatmul.f32.gmra.mxu0 %v1396
        %v1436 = vpop.f32.mrf.mxu0
        %v1437 = vadd.f32 0.0, %v1436
        %1438 = vmatmul.f32.gmra.mxu0 %v1399
        %v1439 = vpop.f32.mrf.mxu0
        %v1440 = vadd.f32 0.0, %v1439
        %1441 = vmatmul.f32.gmra.mxu0 %v1402
        %v1442 = vpop.f32.mrf.mxu0
        %v1443 = vadd.f32 0.0, %v1442
        %1444 = vmatmul.f32.gmra.mxu0 %v1405
        %v1445 = vpop.f32.mrf.mxu0
        %v1446 = vadd.f32 0.0, %v1445
        %1447 = vmatmul.f32.gmra.mxu0 %v1408
        %v1448 = vpop.f32.mrf.mxu0
        %v1449 = vadd.f32 0.0, %v1448
        %1450 = vdwg.mxu0
        %1451 = vmatpush.msra.mxu0 %v482
        %1452 = vmatpush.msra.mxu0 %v481
        %1453 = vmatpush.msra.mxu0 %v480
        %1454 = vmatpush.msra.mxu0 %v479
        %1455 = vmatpush.msra.mxu0 %v478
        %1456 = vmatpush.msra.mxu0 %v477
        %1457 = vmatpush.msra.mxu0 %v476
        %1458 = vmatpush.msra.mxu0 %v475
        %1459 = vmatpush.msra.mxu0 %v474
        %1460 = vmatpush.msra.mxu0 %v473
        %1461 = vmatpush.msra.mxu0 %v472
        %1462 = vmatpush.msra.mxu0 %v471
        %1463 = vmatpush.msra.mxu0 %v470
        %1464 = vmatpush.msra.mxu0 %v469
        %1465 = vmatpush.msra.mxu0 %v468
        %1466 = vmatpush.msra.mxu0 %v467
        %1467 = vmatmul.f32.gmra.mxu0 %v1428
        %v1468 = vpop.f32.mrf.mxu0
        %v1469 = vadd.f32 0.0, %v1468
        %1470 = vdwg.mxu0
        %1471 = vmatpush.msra.mxu0 %v498
        %1472 = vmatpush.msra.mxu0 %v497
        %1473 = vmatpush.msra.mxu0 %v496
        %1474 = vmatpush.msra.mxu0 %v495
        %1475 = vmatpush.msra.mxu0 %v494
        %1476 = vmatpush.msra.mxu0 %v493
        %1477 = vmatpush.msra.mxu0 %v492
        %1478 = vmatpush.msra.mxu0 %v491
        %1479 = vmatpush.msra.mxu0 %v490
        %1480 = vmatpush.msra.mxu0 %v489
        %1481 = vmatpush.msra.mxu0 %v488
        %1482 = vmatpush.msra.mxu0 %v487
        %1483 = vmatpush.msra.mxu0 %v486
        %1484 = vmatpush.msra.mxu0 %v485
        %1485 = vmatpush.msra.mxu0 %v484
        %1486 = vmatpush.msra.mxu0 %v483
        %1487 = vmatmul.f32.gmra.mxu0 %v1431
        %v1488 = vpop.f32.mrf.mxu0
        %v1489 = vadd.f32 0.0, %v1488
        %1490 = vdwg.mxu0
        %1491 = vmatpush.msra.mxu0 %v514
        %1492 = vmatpush.msra.mxu0 %v513
        %1493 = vmatpush.msra.mxu0 %v512
        %1494 = vmatpush.msra.mxu0 %v511
        %1495 = vmatpush.msra.mxu0 %v510
        %1496 = vmatpush.msra.mxu0 %v509
        %1497 = vmatpush.msra.mxu0 %v508
        %1498 = vmatpush.msra.mxu0 %v507
        %1499 = vmatpush.msra.mxu0 %v506
        %1500 = vmatpush.msra.mxu0 %v505
        %1501 = vmatpush.msra.mxu0 %v504
        %1502 = vmatpush.msra.mxu0 %v503
        %1503 = vmatpush.msra.mxu0 %v502
        %1504 = vmatpush.msra.mxu0 %v501
        %1505 = vmatpush.msra.mxu0 %v500
        %1506 = vmatpush.msra.mxu0 %v499
        %1507 = vmatmul.f32.gmra.mxu0 %v1434
        %v1508 = vpop.f32.mrf.mxu0
        %v1509 = vadd.f32 0.0, %v1508
        %1510 = vdwg.mxu0
        %1511 = vmatpush.msra.mxu0 %v530
        %1512 = vmatpush.msra.mxu0 %v529
        %1513 = vmatpush.msra.mxu0 %v528
        %1514 = vmatpush.msra.mxu0 %v527
        %1515 = vmatpush.msra.mxu0 %v526
        %1516 = vmatpush.msra.mxu0 %v525
        %1517 = vmatpush.msra.mxu0 %v524
        %1518 = vmatpush.msra.mxu0 %v523
        %1519 = vmatpush.msra.mxu0 %v522
        %1520 = vmatpush.msra.mxu0 %v521
        %1521 = vmatpush.msra.mxu0 %v520
        %1522 = vmatpush.msra.mxu0 %v519
        %1523 = vmatpush.msra.mxu0 %v518
        %1524 = vmatpush.msra.mxu0 %v517
        %1525 = vmatpush.msra.mxu0 %v516
        %1526 = vmatpush.msra.mxu0 %v515
        %1527 = vmatmul.f32.gmra.mxu0 %v1437
        %v1528 = vpop.f32.mrf.mxu0
        %v1529 = vadd.f32 0.0, %v1528
        %1530 = vdwg.mxu0
        %1531 = vmatpush.msra.mxu0 %v546
        %1532 = vmatpush.msra.mxu0 %v545
        %1533 = vmatpush.msra.mxu0 %v544
        %1534 = vmatpush.msra.mxu0 %v543
        %1535 = vmatpush.msra.mxu0 %v542
        %1536 = vmatpush.msra.mxu0 %v541
        %1537 = vmatpush.msra.mxu0 %v540
        %1538 = vmatpush.msra.mxu0 %v539
        %1539 = vmatpush.msra.mxu0 %v538
        %1540 = vmatpush.msra.mxu0 %v537
        %1541 = vmatpush.msra.mxu0 %v536
        %1542 = vmatpush.msra.mxu0 %v535
        %1543 = vmatpush.msra.mxu0 %v534
        %1544 = vmatpush.msra.mxu0 %v533
        %1545 = vmatpush.msra.mxu0 %v532
        %1546 = vmatpush.msra.mxu0 %v531
        %1547 = vmatmul.f32.gmra.mxu0 %v1440
        %v1548 = vpop.f32.mrf.mxu0
        %v1549 = vadd.f32 0.0, %v1548
        %1550 = vdwg.mxu0
        %1551 = vmatpush.msra.mxu0 %v562
        %1552 = vmatpush.msra.mxu0 %v561
        %1553 = vmatpush.msra.mxu0 %v560
        %1554 = vmatpush.msra.mxu0 %v559
        %1555 = vmatpush.msra.mxu0 %v558
        %1556 = vmatpush.msra.mxu0 %v557
        %1557 = vmatpush.msra.mxu0 %v556
        %1558 = vmatpush.msra.mxu0 %v555
        %1559 = vmatpush.msra.mxu0 %v554
        %1560 = vmatpush.msra.mxu0 %v553
        %1561 = vmatpush.msra.mxu0 %v552
        %1562 = vmatpush.msra.mxu0 %v551
        %1563 = vmatpush.msra.mxu0 %v550
        %1564 = vmatpush.msra.mxu0 %v549
        %1565 = vmatpush.msra.mxu0 %v548
        %1566 = vmatpush.msra.mxu0 %v547
        %1567 = vmatmul.f32.gmra.mxu0 %v1443
        %v1568 = vpop.f32.mrf.mxu0
        %v1569 = vadd.f32 0.0, %v1568
        %1570 = vdwg.mxu0
        %1571 = vmatpush.msra.mxu0 %v578
        %1572 = vmatpush.msra.mxu0 %v577
        %1573 = vmatpush.msra.mxu0 %v576
        %1574 = vmatpush.msra.mxu0 %v575
        %1575 = vmatpush.msra.mxu0 %v574
        %1576 = vmatpush.msra.mxu0 %v573
        %1577 = vmatpush.msra.mxu0 %v572
        %1578 = vmatpush.msra.mxu0 %v571
        %1579 = vmatpush.msra.mxu0 %v570
        %1580 = vmatpush.msra.mxu0 %v569
        %1581 = vmatpush.msra.mxu0 %v568
        %1582 = vmatpush.msra.mxu0 %v567
        %1583 = vmatpush.msra.mxu0 %v566
        %1584 = vmatpush.msra.mxu0 %v565
        %1585 = vmatpush.msra.mxu0 %v564
        %1586 = vmatpush.msra.mxu0 %v563
        %1587 = vmatmul.f32.gmra.mxu0 %v1446
        %v1588 = vpop.f32.mrf.mxu0
        %v1589 = vadd.f32 0.0, %v1588
        %1590 = vdwg.mxu0
        %1591 = vmatpush.msra.mxu0 %v594
        %1592 = vmatpush.msra.mxu0 %v593
        %1593 = vmatpush.msra.mxu0 %v592
        %1594 = vmatpush.msra.mxu0 %v591
        %1595 = vmatpush.msra.mxu0 %v590
        %1596 = vmatpush.msra.mxu0 %v589
        %1597 = vmatpush.msra.mxu0 %v588
        %1598 = vmatpush.msra.mxu0 %v587
        %1599 = vmatpush.msra.mxu0 %v586
        %1600 = vmatpush.msra.mxu0 %v585
        %1601 = vmatpush.msra.mxu0 %v584
        %1602 = vmatpush.msra.mxu0 %v583
        %1603 = vmatpush.msra.mxu0 %v582
        %1604 = vmatpush.msra.mxu0 %v581
        %1605 = vmatpush.msra.mxu0 %v580
        %1606 = vmatpush.msra.mxu0 %v579
        %1607 = vmatmul.f32.gmra.mxu0 %v1449
        %v1608 = vpop.f32.mrf.mxu0
        %v1609 = vadd.f32 0.0, %v1608
        %1610 = vdwg.mxu0
        %v1611 = vsel %vm341, %v1469, 0.0
        %v1612 = vsel %vm341, %v1489, 0.0
        %v1613 = vadd.f32 %v1611, %v1612
        %v1614 = vsel %vm341, %v1509, 0.0
        %v1615 = vadd.f32 %v1613, %v1614
        %v1616 = vsel %vm341, %v1529, 0.0
        %v1617 = vadd.f32 %v1615, %v1616
        %v1618 = vsel %vm341, %v1549, 0.0
        %v1619 = vadd.f32 %v1617, %v1618
        %v1620 = vsel %vm341, %v1569, 0.0
        %v1621 = vadd.f32 %v1619, %v1620
        %v1622 = vsel %vm341, %v1589, 0.0
        %v1623 = vadd.f32 %v1621, %v1622
        %v1624 = vsel %vm341, %v1609, 0.0
        %v1625 = vadd.f32 %v1623, %v1624
        %v1626 = vperm.slane %v340, 2
        %v1627 = vadd.f32 %v1625, %v1626
        %v1628 = vadd.f32 %v1627, %v339
        %v1629 = vsel %vm341, %v1628, 0.0
        %1630 = vadd.xlane.f32.xlu0 %v1629
        %v1631 = vpop.xlane.xlu0 %1630
        %v1632 = vmul.f32 %v1631, %v351
        %v1633 = vsub.f32 %v1628, %v1632
        %v1634 = vmul.f32 %v1633, %v1633
        %v1635 = vsel %vm341, %v1634, 0.0
        %1636 = vadd.xlane.f32.xlu0 %v1635
        %v1637 = vpop.xlane.xlu0 %1636
        %v1638 = vmul.f32 %v1637, %v351
        %v1639 = vadd.f32 %v1638, 1e-05
        %v1640 = vrsqrt.pop %v1639
        %v1641 = vmul.f32 %v1640, %v1639
        %v1642 = vmul.f32 %v1641, %v1640
        %v1643 = vmul.f32 0.5, %v1642
        %v1644 = vsub.f32 1.5, %v1643
        %v1645 = vmul.f32 %v1640, %v1644
        %vm1646 = vweird.f32 %v1639
        %vm1647 = vweird.f32 %v1640
        %vm1648 = vmor %vm1646, %vm1647
        %v1649 = vsel %vm1648, %v1640, %v1645
        %v1650 = vmul.f32 %v1633, %v1649
        %v1651 = vperm.slane %v340, 3
        %v1652 = vmul.f32 %v1650, %v1651
        %v1653 = vperm.slane %v340, 4
        %v1654 = vadd.f32 %v1652, %v1653
        %v1655 = vld [vmem:[%s4] sm:$0xff]
        %v1656 = vld [vmem:[%s4 + $0x8] sm:$0xff]
        %v1657 = vld [vmem:[%s4 + $0x10] sm:$0xff]
        %v1658 = vld [vmem:[%s4 + $0x18] sm:$0xff]
        %v1659 = vld [vmem:[%s4 + $0x20] sm:$0xff]
        %v1660 = vld [vmem:[%s4 + $0x28] sm:$0xff]
        %v1661 = vld [vmem:[%s4 + $0x30] sm:$0xff]
        %v1662 = vld [vmem:[%s4 + $0x38] sm:$0xff]
        %v1663 = vld [vmem:[%s5] sm:$0x1]
        %v1665 = vperm.slane %v1663, 0
        %v1668 = vsel %vm341, %v1654, 0
        %1670 = vmatpush.msra.mxu0 0.0
        %1671 = vmatpush.msra.mxu0 0.0
        %1672 = vmatpush.msra.mxu0 0.0
        %1673 = vmatpush.msra.mxu0 0.0
        %1674 = vmatpush.msra.mxu0 0.0
        %1675 = vmatpush.msra.mxu0 0.0
        %1676 = vmatpush.msra.mxu0 0.0
        %1677 = vmatpush.msra.mxu0 0.0
        %1678 = vmatpush.msra.mxu0 %v1662
        %1679 = vmatpush.msra.mxu0 %v1661
        %1680 = vmatpush.msra.mxu0 %v1660
        %1681 = vmatpush.msra.mxu0 %v1659
        %1682 = vmatpush.msra.mxu0 %v1658
        %1683 = vmatpush.msra.mxu0 %v1657
        %1684 = vmatpush.msra.mxu0 %v1656
        %1685 = vmatpush.msra.mxu0 %v1655
        %1686 = vmatmul.f32.gmra.mxu0 %v1668
        %v1687 = vpop.f32.mrf.mxu0
        %v1688 = vadd.f32 %v1665, %v1687
        %1689 = vdwg.mxu0
        %v1690 = vmul.f32 %v1688, 0.5
        %v1691 = vmul.f32 %v1688, 0.044715
        %v1692 = vmul.f32 %v1691, %v1688
        %v1693 = vmul.f32 %v1692, %v1688
        %v1694 = vadd.f32 %v1688, %v1693
        %v1695 = vmul.f32 %v1694, 0.7978846
        %v1696 = vtanh.pop %v1695
        %v1697 = vadd.f32 %v1696, 1.0
        %v1698 = vmul.f32 %v1690, %v1697
        %v1699 = vld [vmem:[%s6] sm:$0xff]
        %v1700 = vld [vmem:[%s6 + $0x8] sm:$0xff]
        %v1701 = vld [vmem:[%s6 + $0x10] sm:$0xff]
        %v1702 = vld [vmem:[%s6 + $0x18] sm:$0xff]
        %v1703 = vld [vmem:[%s6 + $0x20] sm:$0xff]
        %v1704 = vld [vmem:[%s6 + $0x28] sm:$0xff]
        %v1705 = vld [vmem:[%s6 + $0x30] sm:$0xff]
        %v1706 = vld [vmem:[%s6 + $0x38] sm:$0xff]
        %v1707 = vperm.slane %v340, 5
        %v1709 = vsel %vm341, %v1698, 0
        %1711 = vmatpush.msra.mxu0 0.0
        %1712 = vmatpush.msra.mxu0 0.0
        %1713 = vmatpush.msra.mxu0 0.0
        %1714 = vmatpush.msra.mxu0 0.0
        %1715 = vmatpush.msra.mxu0 0.0
        %1716 = vmatpush.msra.mxu0 0.0
        %1717 = vmatpush.msra.mxu0 0.0
        %1718 = vmatpush.msra.mxu0 0.0
        %1719 = vmatpush.msra.mxu0 %v1706
        %1720 = vmatpush.msra.mxu0 %v1705
        %1721 = vmatpush.msra.mxu0 %v1704
        %1722 = vmatpush.msra.mxu0 %v1703
        %1723 = vmatpush.msra.mxu0 %v1702
        %1724 = vmatpush.msra.mxu0 %v1701
        %1725 = vmatpush.msra.mxu0 %v1700
        %1726 = vmatpush.msra.mxu0 %v1699
        %1727 = vmatmul.f32.gmra.mxu0 %v1709
        %v1728 = vpop.f32.mrf.mxu0
        %v1729 = vadd.f32 %v1707, %v1728
        %1730 = vdwg.mxu0
        %v1731 = vadd.f32 %v1729, %v1628
        %s1732 = scalar_lea.vmem %s7, 8
        %v1733 = vld [vmem:[%s1732] sm:$0x3f]
        %v1734 = vsel %vm341, %v1731, 0.0
        %1735 = vadd.xlane.f32.xlu0 %v1734
        %v1736 = vpop.xlane.xlu0 %1735
        %v1737 = vmul.f32 %v1736, %v351
        %v1738 = vsub.f32 %v1731, %v1737
        %v1739 = vmul.f32 %v1738, %v1738
        %v1740 = vsel %vm341, %v1739, 0.0
        %1741 = vadd.xlane.f32.xlu0 %v1740
        %v1742 = vpop.xlane.xlu0 %1741
        %v1743 = vmul.f32 %v1742, %v351
        %v1744 = vadd.f32 %v1743, 1e-05
        %v1745 = vrsqrt.pop %v1744
        %v1746 = vmul.f32 %v1745, %v1744
        %v1747 = vmul.f32 %v1746, %v1745
        %v1748 = vmul.f32 0.5, %v1747
        %v1749 = vsub.f32 1.5, %v1748
        %v1750 = vmul.f32 %v1745, %v1749
        %vm1751 = vweird.f32 %v1744
        %vm1752 = vweird.f32 %v1745
        %vm1753 = vmor %vm1751, %vm1752
        %v1754 = vsel %vm1753, %v1745, %v1750
        %v1755 = vmul.f32 %v1738, %v1754
        %v1756 = vperm.slane %v1733, 0
        %v1757 = vmul.f32 %v1755, %v1756
        %v1758 = vperm.slane %v1733, 1
        %v1759 = vadd.f32 %v1757, %v1758
        %s1760 = scalar_lea.vmem %s1, 192
        %v1761 = vld [vmem:[%s1760] sm:$0xff]
        %v1762 = vld [vmem:[%s1760 + $0x8] sm:$0xff]
        %v1763 = vld [vmem:[%s1760 + $0x10] sm:$0xff]
        %v1764 = vld [vmem:[%s1760 + $0x18] sm:$0xff]
        %v1765 = vld [vmem:[%s1760 + $0x20] sm:$0xff]
        %v1766 = vld [vmem:[%s1760 + $0x28] sm:$0xff]
        %v1767 = vld [vmem:[%s1760 + $0x30] sm:$0xff]
        %v1768 = vld [vmem:[%s1760 + $0x38] sm:$0xff]
        %v1769 = vld [vmem:[%s1760 + $0x40] sm:$0xff]
        %v1770 = vld [vmem:[%s1760 + $0x48] sm:$0xff]
        %v1771 = vld [vmem:[%s1760 + $0x50] sm:$0xff]
        %v1772 = vld [vmem:[%s1760 + $0x58] sm:$0xff]
        %v1773 = vld [vmem:[%s1760 + $0x60] sm:$0xff]
        %v1774 = vld [vmem:[%s1760 + $0x68] sm:$0xff]
        %v1775 = vld [vmem:[%s1760 + $0x70] sm:$0xff]
        %v1776 = vld [vmem:[%s1760 + $0x78] sm:$0xff]
        %v1777 = vld [vmem:[%s1760 + $0x80] sm:$0xff]
        %v1778 = vld [vmem:[%s1760 + $0x88] sm:$0xff]
        %v1779 = vld [vmem:[%s1760 + $0x90] sm:$0xff]
        %v1780 = vld [vmem:[%s1760 + $0x98] sm:$0xff]
        %v1781 = vld [vmem:[%s1760 + $0xa0] sm:$0xff]
        %v1782 = vld [vmem:[%s1760 + $0xa8] sm:$0xff]
        %v1783 = vld [vmem:[%s1760 + $0xb0] sm:$0xff]
        %v1784 = vld [vmem:[%s1760 + $0xb8] sm:$0xff]
        %v1786 = vsel %vm341, %v1759, 0
        %1788 = vmatpush.msra.mxu0 0.0
        %1789 = vmatpush.msra.mxu0 0.0
        %1790 = vmatpush.msra.mxu0 0.0
        %1791 = vmatpush.msra.mxu0 0.0
        %1792 = vmatpush.msra.mxu0 0.0
        %1793 = vmatpush.msra.mxu0 0.0
        %1794 = vmatpush.msra.mxu0 0.0
        %1795 = vmatpush.msra.mxu0 0.0
        %1796 = vmatpush.msra.mxu0 %v1782
        %1797 = vmatpush.msra.mxu0 %v1779
        %1798 = vmatpush.msra.mxu0 %v1776
        %1799 = vmatpush.msra.mxu0 %v1773
        %1800 = vmatpush.msra.mxu0 %v1770
        %1801 = vmatpush.msra.mxu0 %v1767
        %1802 = vmatpush.msra.mxu0 %v1764
        %1803 = vmatpush.msra.mxu0 %v1761
        %1804 = vmatmul.f32.gmra.mxu0 %v1786
        %v1805 = vpop.f32.mrf.mxu0
        %v1806 = vadd.f32 0.0, %v1805
        %1807 = vdwg.mxu0
        %1808 = vmatpush.msra.mxu0 0.0
        %1809 = vmatpush.msra.mxu0 0.0
        %1810 = vmatpush.msra.mxu0 0.0
        %1811 = vmatpush.msra.mxu0 0.0
        %1812 = vmatpush.msra.mxu0 0.0
        %1813 = vmatpush.msra.mxu0 0.0
        %1814 = vmatpush.msra.mxu0 0.0
        %1815 = vmatpush.msra.mxu0 0.0
        %1816 = vmatpush.msra.mxu0 %v1783
        %1817 = vmatpush.msra.mxu0 %v1780
        %1818 = vmatpush.msra.mxu0 %v1777
        %1819 = vmatpush.msra.mxu0 %v1774
        %1820 = vmatpush.msra.mxu0 %v1771
        %1821 = vmatpush.msra.mxu0 %v1768
        %1822 = vmatpush.msra.mxu0 %v1765
        %1823 = vmatpush.msra.mxu0 %v1762
        %1824 = vmatmul.f32.gmra.mxu0 %v1786
        %v1825 = vpop.f32.mrf.mxu0
        %v1826 = vadd.f32 0.0, %v1825
        %1827 = vdwg.mxu0
        %1828 = vmatpush.msra.mxu0 0.0
        %1829 = vmatpush.msra.mxu0 0.0
        %1830 = vmatpush.msra.mxu0 0.0
        %1831 = vmatpush.msra.mxu0 0.0
        %1832 = vmatpush.msra.mxu0 0.0
        %1833 = vmatpush.msra.mxu0 0.0
        %1834 = vmatpush.msra.mxu0 0.0
        %1835 = vmatpush.msra.mxu0 0.0
        %1836 = vmatpush.msra.mxu0 %v1784
        %1837 = vmatpush.msra.mxu0 %v1781
        %1838 = vmatpush.msra.mxu0 %v1778
        %1839 = vmatpush.msra.mxu0 %v1775
        %1840 = vmatpush.msra.mxu0 %v1772
        %1841 = vmatpush.msra.mxu0 %v1769
        %1842 = vmatpush.msra.mxu0 %v1766
        %1843 = vmatpush.msra.mxu0 %v1763
        %1844 = vmatmul.f32.gmra.mxu0 %v1786
        %v1845 = vpop.f32.mrf.mxu0
        %v1846 = vadd.f32 0.0, %v1845
        %1847 = vdwg.mxu0
        %s1848 = scalar_lea.vmem %s2, 1
        %v1849 = vld [vmem:[%s1848] sm:$0x1]
        %v1851 = vperm.slane %v1849, 0
        %v1853 = vadd.f32 %v1846, %v1851
        %s1854 = scalar_lea.vmem %s3, 1024
        %v1855 = vld [vmem:[%s1854] sm:$0xff]
        %v1856 = vld [vmem:[%s1854 + $0x8] sm:$0xff]
        %v1857 = vld [vmem:[%s1854 + $0x10] sm:$0xff]
        %v1858 = vld [vmem:[%s1854 + $0x18] sm:$0xff]
        %v1859 = vld [vmem:[%s1854 + $0x20] sm:$0xff]
        %v1860 = vld [vmem:[%s1854 + $0x28] sm:$0xff]
        %v1861 = vld [vmem:[%s1854 + $0x30] sm:$0xff]
        %v1862 = vld [vmem:[%s1854 + $0x38] sm:$0xff]
        %v1863 = vld [vmem:[%s1854 + $0x40] sm:$0xff]
        %v1864 = vld [vmem:[%s1854 + $0x48] sm:$0xff]
        %v1865 = vld [vmem:[%s1854 + $0x50] sm:$0xff]
        %v1866 = vld [vmem:[%s1854 + $0x58] sm:$0xff]
        %v1867 = vld [vmem:[%s1854 + $0x60] sm:$0xff]
        %v1868 = vld [vmem:[%s1854 + $0x68] sm:$0xff]
        %v1869 = vld [vmem:[%s1854 + $0x70] sm:$0xff]
        %v1870 = vld [vmem:[%s1854 + $0x78] sm:$0xff]
        %v1871 = vld [vmem:[%s1854 + $0x80] sm:$0xff]
        %v1872 = vld [vmem:[%s1854 + $0x88] sm:$0xff]
        %v1873 = vld [vmem:[%s1854 + $0x90] sm:$0xff]
        %v1874 = vld [vmem:[%s1854 + $0x98] sm:$0xff]
        %v1875 = vld [vmem:[%s1854 + $0xa0] sm:$0xff]
        %v1876 = vld [vmem:[%s1854 + $0xa8] sm:$0xff]
        %v1877 = vld [vmem:[%s1854 + $0xb0] sm:$0xff]
        %v1878 = vld [vmem:[%s1854 + $0xb8] sm:$0xff]
        %v1879 = vld [vmem:[%s1854 + $0xc0] sm:$0xff]
        %v1880 = vld [vmem:[%s1854 + $0xc8] sm:$0xff]
        %v1881 = vld [vmem:[%s1854 + $0xd0] sm:$0xff]
        %v1882 = vld [vmem:[%s1854 + $0xd8] sm:$0xff]
        %v1883 = vld [vmem:[%s1854 + $0xe0] sm:$0xff]
        %v1884 = vld [vmem:[%s1854 + $0xe8] sm:$0xff]
        %v1885 = vld [vmem:[%s1854 + $0xf0] sm:$0xff]
        %v1886 = vld [vmem:[%s1854 + $0xf8] sm:$0xff]
        %v1887 = vld [vmem:[%s1854 + $0x100] sm:$0xff]
        %v1888 = vld [vmem:[%s1854 + $0x108] sm:$0xff]
        %v1889 = vld [vmem:[%s1854 + $0x110] sm:$0xff]
        %v1890 = vld [vmem:[%s1854 + $0x118] sm:$0xff]
        %v1891 = vld [vmem:[%s1854 + $0x120] sm:$0xff]
        %v1892 = vld [vmem:[%s1854 + $0x128] sm:$0xff]
        %v1893 = vld [vmem:[%s1854 + $0x130] sm:$0xff]
        %v1894 = vld [vmem:[%s1854 + $0x138] sm:$0xff]
        %v1895 = vld [vmem:[%s1854 + $0x140] sm:$0xff]
        %v1896 = vld [vmem:[%s1854 + $0x148] sm:$0xff]
        %v1897 = vld [vmem:[%s1854 + $0x150] sm:$0xff]
        %v1898 = vld [vmem:[%s1854 + $0x158] sm:$0xff]
        %v1899 = vld [vmem:[%s1854 + $0x160] sm:$0xff]
        %v1900 = vld [vmem:[%s1854 + $0x168] sm:$0xff]
        %v1901 = vld [vmem:[%s1854 + $0x170] sm:$0xff]
        %v1902 = vld [vmem:[%s1854 + $0x178] sm:$0xff]
        %v1903 = vld [vmem:[%s1854 + $0x180] sm:$0xff]
        %v1904 = vld [vmem:[%s1854 + $0x188] sm:$0xff]
        %v1905 = vld [vmem:[%s1854 + $0x190] sm:$0xff]
        %v1906 = vld [vmem:[%s1854 + $0x198] sm:$0xff]
        %v1907 = vld [vmem:[%s1854 + $0x1a0] sm:$0xff]
        %v1908 = vld [vmem:[%s1854 + $0x1a8] sm:$0xff]
        %v1909 = vld [vmem:[%s1854 + $0x1b0] sm:$0xff]
        %v1910 = vld [vmem:[%s1854 + $0x1b8] sm:$0xff]
        %v1911 = vld [vmem:[%s1854 + $0x1c0] sm:$0xff]
        %v1912 = vld [vmem:[%s1854 + $0x1c8] sm:$0xff]
        %v1913 = vld [vmem:[%s1854 + $0x1d0] sm:$0xff]
        %v1914 = vld [vmem:[%s1854 + $0x1d8] sm:$0xff]
        %v1915 = vld [vmem:[%s1854 + $0x1e0] sm:$0xff]
        %v1916 = vld [vmem:[%s1854 + $0x1e8] sm:$0xff]
        %v1917 = vld [vmem:[%s1854 + $0x1f0] sm:$0xff]
        %v1918 = vld [vmem:[%s1854 + $0x1f8] sm:$0xff]
        %v1919 = vld [vmem:[%s1854 + $0x200] sm:$0xff]
        %v1920 = vld [vmem:[%s1854 + $0x208] sm:$0xff]
        %v1921 = vld [vmem:[%s1854 + $0x210] sm:$0xff]
        %v1922 = vld [vmem:[%s1854 + $0x218] sm:$0xff]
        %v1923 = vld [vmem:[%s1854 + $0x220] sm:$0xff]
        %v1924 = vld [vmem:[%s1854 + $0x228] sm:$0xff]
        %v1925 = vld [vmem:[%s1854 + $0x230] sm:$0xff]
        %v1926 = vld [vmem:[%s1854 + $0x238] sm:$0xff]
        %v1927 = vld [vmem:[%s1854 + $0x240] sm:$0xff]
        %v1928 = vld [vmem:[%s1854 + $0x248] sm:$0xff]
        %v1929 = vld [vmem:[%s1854 + $0x250] sm:$0xff]
        %v1930 = vld [vmem:[%s1854 + $0x258] sm:$0xff]
        %v1931 = vld [vmem:[%s1854 + $0x260] sm:$0xff]
        %v1932 = vld [vmem:[%s1854 + $0x268] sm:$0xff]
        %v1933 = vld [vmem:[%s1854 + $0x270] sm:$0xff]
        %v1934 = vld [vmem:[%s1854 + $0x278] sm:$0xff]
        %v1935 = vld [vmem:[%s1854 + $0x280] sm:$0xff]
        %v1936 = vld [vmem:[%s1854 + $0x288] sm:$0xff]
        %v1937 = vld [vmem:[%s1854 + $0x290] sm:$0xff]
        %v1938 = vld [vmem:[%s1854 + $0x298] sm:$0xff]
        %v1939 = vld [vmem:[%s1854 + $0x2a0] sm:$0xff]
        %v1940 = vld [vmem:[%s1854 + $0x2a8] sm:$0xff]
        %v1941 = vld [vmem:[%s1854 + $0x2b0] sm:$0xff]
        %v1942 = vld [vmem:[%s1854 + $0x2b8] sm:$0xff]
        %v1943 = vld [vmem:[%s1854 + $0x2c0] sm:$0xff]
        %v1944 = vld [vmem:[%s1854 + $0x2c8] sm:$0xff]
        %v1945 = vld [vmem:[%s1854 + $0x2d0] sm:$0xff]
        %v1946 = vld [vmem:[%s1854 + $0x2d8] sm:$0xff]
        %v1947 = vld [vmem:[%s1854 + $0x2e0] sm:$0xff]
        %v1948 = vld [vmem:[%s1854 + $0x2e8] sm:$0xff]
        %v1949 = vld [vmem:[%s1854 + $0x2f0] sm:$0xff]
        %v1950 = vld [vmem:[%s1854 + $0x2f8] sm:$0xff]
        %v1951 = vld [vmem:[%s1854 + $0x300] sm:$0xff]
        %v1952 = vld [vmem:[%s1854 + $0x308] sm:$0xff]
        %v1953 = vld [vmem:[%s1854 + $0x310] sm:$0xff]
        %v1954 = vld [vmem:[%s1854 + $0x318] sm:$0xff]
        %v1955 = vld [vmem:[%s1854 + $0x320] sm:$0xff]
        %v1956 = vld [vmem:[%s1854 + $0x328] sm:$0xff]
        %v1957 = vld [vmem:[%s1854 + $0x330] sm:$0xff]
        %v1958 = vld [vmem:[%s1854 + $0x338] sm:$0xff]
        %v1959 = vld [vmem:[%s1854 + $0x340] sm:$0xff]
        %v1960 = vld [vmem:[%s1854 + $0x348] sm:$0xff]
        %v1961 = vld [vmem:[%s1854 + $0x350] sm:$0xff]
        %v1962 = vld [vmem:[%s1854 + $0x358] sm:$0xff]
        %v1963 = vld [vmem:[%s1854 + $0x360] sm:$0xff]
        %v1964 = vld [vmem:[%s1854 + $0x368] sm:$0xff]
        %v1965 = vld [vmem:[%s1854 + $0x370] sm:$0xff]
        %v1966 = vld [vmem:[%s1854 + $0x378] sm:$0xff]
        %v1967 = vld [vmem:[%s1854 + $0x380] sm:$0xff]
        %v1968 = vld [vmem:[%s1854 + $0x388] sm:$0xff]
        %v1969 = vld [vmem:[%s1854 + $0x390] sm:$0xff]
        %v1970 = vld [vmem:[%s1854 + $0x398] sm:$0xff]
        %v1971 = vld [vmem:[%s1854 + $0x3a0] sm:$0xff]
        %v1972 = vld [vmem:[%s1854 + $0x3a8] sm:$0xff]
        %v1973 = vld [vmem:[%s1854 + $0x3b0] sm:$0xff]
        %v1974 = vld [vmem:[%s1854 + $0x3b8] sm:$0xff]
        %v1975 = vld [vmem:[%s1854 + $0x3c0] sm:$0xff]
        %v1976 = vld [vmem:[%s1854 + $0x3c8] sm:$0xff]
        %v1977 = vld [vmem:[%s1854 + $0x3d0] sm:$0xff]
        %v1978 = vld [vmem:[%s1854 + $0x3d8] sm:$0xff]
        %v1979 = vld [vmem:[%s1854 + $0x3e0] sm:$0xff]
        %v1980 = vld [vmem:[%s1854 + $0x3e8] sm:$0xff]
        %v1981 = vld [vmem:[%s1854 + $0x3f0] sm:$0xff]
        %v1982 = vld [vmem:[%s1854 + $0x3f8] sm:$0xff]
        %1984 = vrot.lane.b32.xlu0 %v1806, 112
        %v1985 = vpop.permute.xlu0 %1984
        %1987 = vrot.lane.b32.xlu0 %v1806, 96
        %v1988 = vpop.permute.xlu0 %1987
        %1990 = vrot.lane.b32.xlu0 %v1806, 80
        %v1991 = vpop.permute.xlu0 %1990
        %1993 = vrot.lane.b32.xlu0 %v1806, 64
        %v1994 = vpop.permute.xlu0 %1993
        %1996 = vrot.lane.b32.xlu0 %v1806, 48
        %v1997 = vpop.permute.xlu0 %1996
        %1999 = vrot.lane.b32.xlu0 %v1806, 32
        %v2000 = vpop.permute.xlu0 %1999
        %2002 = vrot.lane.b32.xlu0 %v1806, 16
        %v2003 = vpop.permute.xlu0 %2002
        %v2005 = vrot.slane %v1988, 4
        %v2006 = vsel %vm618, %v2005, %v1806
        %v2007 = vrot.slane %v1806, 4
        %v2008 = vsel %vm618, %v1988, %v2007
        %v2010 = vunpack.c.l.s4 1983009808
        %v2011 = vunpack.c.0.s8 %v2010
        %v2012 = vperm.slane %v2006, %v2011
        %v2014 = vunpack.c.l.s4 1983009808
        %v2015 = vunpack.c.0.s8 %v2014
        %v2016 = vperm.slane %v2008, %v2015
        %v2017 = vrot.slane %v1991, 4
        %v2018 = vsel %vm618, %v2017, %v1985
        %v2019 = vrot.slane %v1985, 4
        %v2020 = vsel %vm618, %v1991, %v2019
        %v2022 = vunpack.c.l.s4 1983009808
        %v2023 = vunpack.c.0.s8 %v2022
        %v2024 = vperm.slane %v2018, %v2023
        %v2026 = vunpack.c.l.s4 1983009808
        %v2027 = vunpack.c.0.s8 %v2026
        %v2028 = vperm.slane %v2020, %v2027
        %v2029 = vrot.slane %v2000, 4
        %v2030 = vsel %vm618, %v2029, %v1994
        %v2031 = vrot.slane %v1994, 4
        %v2032 = vsel %vm618, %v2000, %v2031
        %v2034 = vunpack.c.l.s4 1983009808
        %v2035 = vunpack.c.0.s8 %v2034
        %v2036 = vperm.slane %v2030, %v2035
        %v2038 = vunpack.c.l.s4 1983009808
        %v2039 = vunpack.c.0.s8 %v2038
        %v2040 = vperm.slane %v2032, %v2039
        %v2041 = vrot.slane %v2003, 4
        %v2042 = vsel %vm618, %v2041, %v1997
        %v2043 = vrot.slane %v1997, 4
        %v2044 = vsel %vm618, %v2003, %v2043
        %v2046 = vunpack.c.l.s4 1983009808
        %v2047 = vunpack.c.0.s8 %v2046
        %v2048 = vperm.slane %v2042, %v2047
        %v2050 = vunpack.c.l.s4 1983009808
        %v2051 = vunpack.c.0.s8 %v2050
        %v2052 = vperm.slane %v2044, %v2051
        %v2053 = vrot.slane %v2024, 4
        %v2054 = vsel %vm618, %v2053, %v2012
        %v2055 = vrot.slane %v2012, 4
        %v2056 = vsel %vm618, %v2024, %v2055
        %v2058 = vunpack.c.l.s4 1934713408
        %v2059 = vunpack.c.0.s8 %v2058
        %v2060 = vperm.slane %v2054, %v2059
        %v2062 = vunpack.c.l.s4 1934713408
        %v2063 = vunpack.c.0.s8 %v2062
        %v2064 = vperm.slane %v2056, %v2063
        %v2065 = vrot.slane %v2028, 4
        %v2066 = vsel %vm618, %v2065, %v2016
        %v2067 = vrot.slane %v2016, 4
        %v2068 = vsel %vm618, %v2028, %v2067
        %v2070 = vunpack.c.l.s4 1934713408
        %v2071 = vunpack.c.0.s8 %v2070
        %v2072 = vperm.slane %v2066, %v2071
        %v2074 = vunpack.c.l.s4 1934713408
        %v2075 = vunpack.c.0.s8 %v2074
        %v2076 = vperm.slane %v2068, %v2075
        %v2077 = vrot.slane %v2048, 4
        %v2078 = vsel %vm618, %v2077, %v2036
        %v2079 = vrot.slane %v2036, 4
        %v2080 = vsel %vm618, %v2048, %v2079
        %v2082 = vunpack.c.l.s4 1934713408
        %v2083 = vunpack.c.0.s8 %v2082
        %v2084 = vperm.slane %v2078, %v2083
        %v2086 = vunpack.c.l.s4 1934713408
        %v2087 = vunpack.c.0.s8 %v2086
        %v2088 = vperm.slane %v2080, %v2087
        %v2089 = vrot.slane %v2052, 4
        %v2090 = vsel %vm618, %v2089, %v2040
        %v2091 = vrot.slane %v2040, 4
        %v2092 = vsel %vm618, %v2052, %v2091
        %v2094 = vunpack.c.l.s4 1934713408
        %v2095 = vunpack.c.0.s8 %v2094
        %v2096 = vperm.slane %v2090, %v2095
        %v2098 = vunpack.c.l.s4 1934713408
        %v2099 = vunpack.c.0.s8 %v2098
        %v2100 = vperm.slane %v2092, %v2099
        %v2101 = vrot.slane %v2084, 4
        %v2102 = vsel %vm618, %v2101, %v2060
        %v2103 = vrot.slane %v2060, 4
        %v2104 = vsel %vm618, %v2084, %v2103
        %v2105 = vrot.slane %v2088, 4
        %v2106 = vsel %vm618, %v2105, %v2064
        %v2107 = vrot.slane %v2064, 4
        %v2108 = vsel %vm618, %v2088, %v2107
        %v2109 = vrot.slane %v2096, 4
        %v2110 = vsel %vm618, %v2109, %v2072
        %v2111 = vrot.slane %v2072, 4
        %v2112 = vsel %vm618, %v2096, %v2111
        %v2113 = vrot.slane %v2100, 4
        %v2114 = vsel %vm618, %v2113, %v2076
        %v2115 = vrot.slane %v2076, 4
        %v2116 = vsel %vm618, %v2100, %v2115
        %v2117 = vrot.slane %v2106, 4
        %v2118 = vsel %vm618, %v2117, %v2102
        %v2119 = vrot.slane %v2102, 4
        %v2120 = vsel %vm618, %v2106, %v2119
        %v2122 = vunpack.c.l.s4 1983009808
        %v2123 = vunpack.c.0.s8 %v2122
        %v2124 = vperm.slane %v2118, %v2123
        %v2126 = vunpack.c.l.s4 1983009808
        %v2127 = vunpack.c.0.s8 %v2126
        %v2128 = vperm.slane %v2120, %v2127
        %v2129 = vrot.slane %v2108, 4
        %v2130 = vsel %vm618, %v2129, %v2104
        %v2131 = vrot.slane %v2104, 4
        %v2132 = vsel %vm618, %v2108, %v2131
        %v2134 = vunpack.c.l.s4 1983009808
        %v2135 = vunpack.c.0.s8 %v2134
        %v2136 = vperm.slane %v2130, %v2135
        %v2138 = vunpack.c.l.s4 1983009808
        %v2139 = vunpack.c.0.s8 %v2138
        %v2140 = vperm.slane %v2132, %v2139
        %v2141 = vrot.slane %v2114, 4
        %v2142 = vsel %vm618, %v2141, %v2110
        %v2143 = vrot.slane %v2110, 4
        %v2144 = vsel %vm618, %v2114, %v2143
        %v2146 = vunpack.c.l.s4 1983009808
        %v2147 = vunpack.c.0.s8 %v2146
        %v2148 = vperm.slane %v2142, %v2147
        %v2150 = vunpack.c.l.s4 1983009808
        %v2151 = vunpack.c.0.s8 %v2150
        %v2152 = vperm.slane %v2144, %v2151
        %v2153 = vrot.slane %v2116, 4
        %v2154 = vsel %vm618, %v2153, %v2112
        %v2155 = vrot.slane %v2112, 4
        %v2156 = vsel %vm618, %v2116, %v2155
        %v2158 = vunpack.c.l.s4 1983009808
        %v2159 = vunpack.c.0.s8 %v2158
        %v2160 = vperm.slane %v2154, %v2159
        %v2162 = vunpack.c.l.s4 1983009808
        %v2163 = vunpack.c.0.s8 %v2162
        %v2164 = vperm.slane %v2156, %v2163
        %v2165 = vrot.slane %v2136, 4
        %v2166 = vsel %vm618, %v2165, %v2124
        %v2167 = vrot.slane %v2124, 4
        %v2168 = vsel %vm618, %v2136, %v2167
        %v2170 = vunpack.c.l.s4 1934713408
        %v2171 = vunpack.c.0.s8 %v2170
        %v2172 = vperm.slane %v2166, %v2171
        %v2174 = vunpack.c.l.s4 1934713408
        %v2175 = vunpack.c.0.s8 %v2174
        %v2176 = vperm.slane %v2168, %v2175
        %v2177 = vrot.slane %v2140, 4
        %v2178 = vsel %vm618, %v2177, %v2128
        %v2179 = vrot.slane %v2128, 4
        %v2180 = vsel %vm618, %v2140, %v2179
        %v2182 = vunpack.c.l.s4 1934713408
        %v2183 = vunpack.c.0.s8 %v2182
        %v2184 = vperm.slane %v2178, %v2183
        %v2186 = vunpack.c.l.s4 1934713408
        %v2187 = vunpack.c.0.s8 %v2186
        %v2188 = vperm.slane %v2180, %v2187
        %v2189 = vrot.slane %v2160, 4
        %v2190 = vsel %vm618, %v2189, %v2148
        %v2191 = vrot.slane %v2148, 4
        %v2192 = vsel %vm618, %v2160, %v2191
        %v2194 = vunpack.c.l.s4 1934713408
        %v2195 = vunpack.c.0.s8 %v2194
        %v2196 = vperm.slane %v2190, %v2195
        %v2198 = vunpack.c.l.s4 1934713408
        %v2199 = vunpack.c.0.s8 %v2198
        %v2200 = vperm.slane %v2192, %v2199
        %v2201 = vrot.slane %v2164, 4
        %v2202 = vsel %vm618, %v2201, %v2152
        %v2203 = vrot.slane %v2152, 4
        %v2204 = vsel %vm618, %v2164, %v2203
        %v2206 = vunpack.c.l.s4 1934713408
        %v2207 = vunpack.c.0.s8 %v2206
        %v2208 = vperm.slane %v2202, %v2207
        %v2210 = vunpack.c.l.s4 1934713408
        %v2211 = vunpack.c.0.s8 %v2210
        %v2212 = vperm.slane %v2204, %v2211
        %v2213 = vrot.slane %v2196, 4
        %v2214 = vsel %vm618, %v2213, %v2172
        %v2215 = vrot.slane %v2172, 4
        %v2216 = vsel %vm618, %v2196, %v2215
        %v2217 = vrot.slane %v2200, 4
        %v2218 = vsel %vm618, %v2217, %v2176
        %v2219 = vrot.slane %v2176, 4
        %v2220 = vsel %vm618, %v2200, %v2219
        %v2221 = vrot.slane %v2208, 4
        %v2222 = vsel %vm618, %v2221, %v2184
        %v2223 = vrot.slane %v2184, 4
        %v2224 = vsel %vm618, %v2208, %v2223
        %v2225 = vrot.slane %v2212, 4
        %v2226 = vsel %vm618, %v2225, %v2188
        %v2227 = vrot.slane %v2188, 4
        %v2228 = vsel %vm618, %v2212, %v2227
        %2230 = vrot.lane.b32.xlu0 %v1826, 112
        %v2231 = vpop.permute.xlu0 %2230
        %2233 = vrot.lane.b32.xlu0 %v1826, 96
        %v2234 = vpop.permute.xlu0 %2233
        %2236 = vrot.lane.b32.xlu0 %v1826, 80
        %v2237 = vpop.permute.xlu0 %2236
        %2239 = vrot.lane.b32.xlu0 %v1826, 64
        %v2240 = vpop.permute.xlu0 %2239
        %2242 = vrot.lane.b32.xlu0 %v1826, 48
        %v2243 = vpop.permute.xlu0 %2242
        %2245 = vrot.lane.b32.xlu0 %v1826, 32
        %v2246 = vpop.permute.xlu0 %2245
        %2248 = vrot.lane.b32.xlu0 %v1826, 16
        %v2249 = vpop.permute.xlu0 %2248
        %v2251 = vrot.slane %v2234, 4
        %v2252 = vsel %vm618, %v2251, %v1826
        %v2253 = vrot.slane %v1826, 4
        %v2254 = vsel %vm618, %v2234, %v2253
        %v2256 = vunpack.c.l.s4 1983009808
        %v2257 = vunpack.c.0.s8 %v2256
        %v2258 = vperm.slane %v2252, %v2257
        %v2260 = vunpack.c.l.s4 1983009808
        %v2261 = vunpack.c.0.s8 %v2260
        %v2262 = vperm.slane %v2254, %v2261
        %v2263 = vrot.slane %v2237, 4
        %v2264 = vsel %vm618, %v2263, %v2231
        %v2265 = vrot.slane %v2231, 4
        %v2266 = vsel %vm618, %v2237, %v2265
        %v2268 = vunpack.c.l.s4 1983009808
        %v2269 = vunpack.c.0.s8 %v2268
        %v2270 = vperm.slane %v2264, %v2269
        %v2272 = vunpack.c.l.s4 1983009808
        %v2273 = vunpack.c.0.s8 %v2272
        %v2274 = vperm.slane %v2266, %v2273
        %v2275 = vrot.slane %v2246, 4
        %v2276 = vsel %vm618, %v2275, %v2240
        %v2277 = vrot.slane %v2240, 4
        %v2278 = vsel %vm618, %v2246, %v2277
        %v2280 = vunpack.c.l.s4 1983009808
        %v2281 = vunpack.c.0.s8 %v2280
        %v2282 = vperm.slane %v2276, %v2281
        %v2284 = vunpack.c.l.s4 1983009808
        %v2285 = vunpack.c.0.s8 %v2284
        %v2286 = vperm.slane %v2278, %v2285
        %v2287 = vrot.slane %v2249, 4
        %v2288 = vsel %vm618, %v2287, %v2243
        %v2289 = vrot.slane %v2243, 4
        %v2290 = vsel %vm618, %v2249, %v2289
        %v2292 = vunpack.c.l.s4 1983009808
        %v2293 = vunpack.c.0.s8 %v2292
        %v2294 = vperm.slane %v2288, %v2293
        %v2296 = vunpack.c.l.s4 1983009808
        %v2297 = vunpack.c.0.s8 %v2296
        %v2298 = vperm.slane %v2290, %v2297
        %v2299 = vrot.slane %v2270, 4
        %v2300 = vsel %vm618, %v2299, %v2258
        %v2301 = vrot.slane %v2258, 4
        %v2302 = vsel %vm618, %v2270, %v2301
        %v2304 = vunpack.c.l.s4 1934713408
        %v2305 = vunpack.c.0.s8 %v2304
        %v2306 = vperm.slane %v2300, %v2305
        %v2308 = vunpack.c.l.s4 1934713408
        %v2309 = vunpack.c.0.s8 %v2308
        %v2310 = vperm.slane %v2302, %v2309
        %v2311 = vrot.slane %v2274, 4
        %v2312 = vsel %vm618, %v2311, %v2262
        %v2313 = vrot.slane %v2262, 4
        %v2314 = vsel %vm618, %v2274, %v2313
        %v2316 = vunpack.c.l.s4 1934713408
        %v2317 = vunpack.c.0.s8 %v2316
        %v2318 = vperm.slane %v2312, %v2317
        %v2320 = vunpack.c.l.s4 1934713408
        %v2321 = vunpack.c.0.s8 %v2320
        %v2322 = vperm.slane %v2314, %v2321
        %v2323 = vrot.slane %v2294, 4
        %v2324 = vsel %vm618, %v2323, %v2282
        %v2325 = vrot.slane %v2282, 4
        %v2326 = vsel %vm618, %v2294, %v2325
        %v2328 = vunpack.c.l.s4 1934713408
        %v2329 = vunpack.c.0.s8 %v2328
        %v2330 = vperm.slane %v2324, %v2329
        %v2332 = vunpack.c.l.s4 1934713408
        %v2333 = vunpack.c.0.s8 %v2332
        %v2334 = vperm.slane %v2326, %v2333
        %v2335 = vrot.slane %v2298, 4
        %v2336 = vsel %vm618, %v2335, %v2286
        %v2337 = vrot.slane %v2286, 4
        %v2338 = vsel %vm618, %v2298, %v2337
        %v2340 = vunpack.c.l.s4 1934713408
        %v2341 = vunpack.c.0.s8 %v2340
        %v2342 = vperm.slane %v2336, %v2341
        %v2344 = vunpack.c.l.s4 1934713408
        %v2345 = vunpack.c.0.s8 %v2344
        %v2346 = vperm.slane %v2338, %v2345
        %v2347 = vrot.slane %v2330, 4
        %v2348 = vsel %vm618, %v2347, %v2306
        %v2349 = vrot.slane %v2306, 4
        %v2350 = vsel %vm618, %v2330, %v2349
        %v2351 = vrot.slane %v2334, 4
        %v2352 = vsel %vm618, %v2351, %v2310
        %v2353 = vrot.slane %v2310, 4
        %v2354 = vsel %vm618, %v2334, %v2353
        %v2355 = vrot.slane %v2342, 4
        %v2356 = vsel %vm618, %v2355, %v2318
        %v2357 = vrot.slane %v2318, 4
        %v2358 = vsel %vm618, %v2342, %v2357
        %v2359 = vrot.slane %v2346, 4
        %v2360 = vsel %vm618, %v2359, %v2322
        %v2361 = vrot.slane %v2322, 4
        %v2362 = vsel %vm618, %v2346, %v2361
        %v2363 = vrot.slane %v2352, 4
        %v2364 = vsel %vm618, %v2363, %v2348
        %v2365 = vrot.slane %v2348, 4
        %v2366 = vsel %vm618, %v2352, %v2365
        %v2368 = vunpack.c.l.s4 1983009808
        %v2369 = vunpack.c.0.s8 %v2368
        %v2370 = vperm.slane %v2364, %v2369
        %v2372 = vunpack.c.l.s4 1983009808
        %v2373 = vunpack.c.0.s8 %v2372
        %v2374 = vperm.slane %v2366, %v2373
        %v2375 = vrot.slane %v2354, 4
        %v2376 = vsel %vm618, %v2375, %v2350
        %v2377 = vrot.slane %v2350, 4
        %v2378 = vsel %vm618, %v2354, %v2377
        %v2380 = vunpack.c.l.s4 1983009808
        %v2381 = vunpack.c.0.s8 %v2380
        %v2382 = vperm.slane %v2376, %v2381
        %v2384 = vunpack.c.l.s4 1983009808
        %v2385 = vunpack.c.0.s8 %v2384
        %v2386 = vperm.slane %v2378, %v2385
        %v2387 = vrot.slane %v2360, 4
        %v2388 = vsel %vm618, %v2387, %v2356
        %v2389 = vrot.slane %v2356, 4
        %v2390 = vsel %vm618, %v2360, %v2389
        %v2392 = vunpack.c.l.s4 1983009808
        %v2393 = vunpack.c.0.s8 %v2392
        %v2394 = vperm.slane %v2388, %v2393
        %v2396 = vunpack.c.l.s4 1983009808
        %v2397 = vunpack.c.0.s8 %v2396
        %v2398 = vperm.slane %v2390, %v2397
        %v2399 = vrot.slane %v2362, 4
        %v2400 = vsel %vm618, %v2399, %v2358
        %v2401 = vrot.slane %v2358, 4
        %v2402 = vsel %vm618, %v2362, %v2401
        %v2404 = vunpack.c.l.s4 1983009808
        %v2405 = vunpack.c.0.s8 %v2404
        %v2406 = vperm.slane %v2400, %v2405
        %v2408 = vunpack.c.l.s4 1983009808
        %v2409 = vunpack.c.0.s8 %v2408
        %v2410 = vperm.slane %v2402, %v2409
        %v2411 = vrot.slane %v2382, 4
        %v2412 = vsel %vm618, %v2411, %v2370
        %v2413 = vrot.slane %v2370, 4
        %v2414 = vsel %vm618, %v2382, %v2413
        %v2416 = vunpack.c.l.s4 1934713408
        %v2417 = vunpack.c.0.s8 %v2416
        %v2418 = vperm.slane %v2412, %v2417
        %v2420 = vunpack.c.l.s4 1934713408
        %v2421 = vunpack.c.0.s8 %v2420
        %v2422 = vperm.slane %v2414, %v2421
        %v2423 = vrot.slane %v2386, 4
        %v2424 = vsel %vm618, %v2423, %v2374
        %v2425 = vrot.slane %v2374, 4
        %v2426 = vsel %vm618, %v2386, %v2425
        %v2428 = vunpack.c.l.s4 1934713408
        %v2429 = vunpack.c.0.s8 %v2428
        %v2430 = vperm.slane %v2424, %v2429
        %v2432 = vunpack.c.l.s4 1934713408
        %v2433 = vunpack.c.0.s8 %v2432
        %v2434 = vperm.slane %v2426, %v2433
        %v2435 = vrot.slane %v2406, 4
        %v2436 = vsel %vm618, %v2435, %v2394
        %v2437 = vrot.slane %v2394, 4
        %v2438 = vsel %vm618, %v2406, %v2437
        %v2440 = vunpack.c.l.s4 1934713408
        %v2441 = vunpack.c.0.s8 %v2440
        %v2442 = vperm.slane %v2436, %v2441
        %v2444 = vunpack.c.l.s4 1934713408
        %v2445 = vunpack.c.0.s8 %v2444
        %v2446 = vperm.slane %v2438, %v2445
        %v2447 = vrot.slane %v2410, 4
        %v2448 = vsel %vm618, %v2447, %v2398
        %v2449 = vrot.slane %v2398, 4
        %v2450 = vsel %vm618, %v2410, %v2449
        %v2452 = vunpack.c.l.s4 1934713408
        %v2453 = vunpack.c.0.s8 %v2452
        %v2454 = vperm.slane %v2448, %v2453
        %v2456 = vunpack.c.l.s4 1934713408
        %v2457 = vunpack.c.0.s8 %v2456
        %v2458 = vperm.slane %v2450, %v2457
        %v2459 = vrot.slane %v2442, 4
        %v2460 = vsel %vm618, %v2459, %v2418
        %v2461 = vrot.slane %v2418, 4
        %v2462 = vsel %vm618, %v2442, %v2461
        %v2463 = vrot.slane %v2446, 4
        %v2464 = vsel %vm618, %v2463, %v2422
        %v2465 = vrot.slane %v2422, 4
        %v2466 = vsel %vm618, %v2446, %v2465
        %v2467 = vrot.slane %v2454, 4
        %v2468 = vsel %vm618, %v2467, %v2430
        %v2469 = vrot.slane %v2430, 4
        %v2470 = vsel %vm618, %v2454, %v2469
        %v2471 = vrot.slane %v2458, 4
        %v2472 = vsel %vm618, %v2471, %v2434
        %v2473 = vrot.slane %v2434, 4
        %v2474 = vsel %vm618, %v2458, %v2473
        %v2476 = vsel %vm1088, %v2214, 0
        %v2479 = vsel %vm1088, %v2460, 0
        %2481 = vmatpush.xpose.msra.mxu0 0.0
        %2482 = vmatpush.xpose.msra.mxu0 0.0
        %2483 = vmatpush.xpose.msra.mxu0 0.0
        %2484 = vmatpush.xpose.msra.mxu0 0.0
        %2485 = vmatpush.xpose.msra.mxu0 0.0
        %2486 = vmatpush.xpose.msra.mxu0 0.0
        %2487 = vmatpush.xpose.msra.mxu0 0.0
        %2488 = vmatpush.xpose.msra.mxu0 0.0
        %2489 = vmatpush.xpose.msra.mxu0 0.0
        %2490 = vmatpush.xpose.msra.mxu0 0.0
        %2491 = vmatpush.xpose.msra.mxu0 0.0
        %2492 = vmatpush.xpose.msra.mxu0 0.0
        %2493 = vmatpush.xpose.msra.mxu0 0.0
        %2494 = vmatpush.xpose.msra.mxu0 0.0
        %2495 = vmatpush.xpose.msra.mxu0 0.0
        %2496 = vmatpush.xpose.msra.mxu0 %v2479
        %2497 = vmatmul.f32.gmra.mxu0 %v2476
        %v2498 = vpop.f32.mrf.mxu0
        %v2499 = vadd.f32 0.0, %v2498
        %2500 = vdwg.mxu0
        %v2502 = vsel %vm1088, %v2216, 0
        %v2505 = vsel %vm1088, %v2462, 0
        %2507 = vmatpush.xpose.msra.mxu0 0.0
        %2508 = vmatpush.xpose.msra.mxu0 0.0
        %2509 = vmatpush.xpose.msra.mxu0 0.0
        %2510 = vmatpush.xpose.msra.mxu0 0.0
        %2511 = vmatpush.xpose.msra.mxu0 0.0
        %2512 = vmatpush.xpose.msra.mxu0 0.0
        %2513 = vmatpush.xpose.msra.mxu0 0.0
        %2514 = vmatpush.xpose.msra.mxu0 0.0
        %2515 = vmatpush.xpose.msra.mxu0 0.0
        %2516 = vmatpush.xpose.msra.mxu0 0.0
        %2517 = vmatpush.xpose.msra.mxu0 0.0
        %2518 = vmatpush.xpose.msra.mxu0 0.0
        %2519 = vmatpush.xpose.msra.mxu0 0.0
        %2520 = vmatpush.xpose.msra.mxu0 0.0
        %2521 = vmatpush.xpose.msra.mxu0 0.0
        %2522 = vmatpush.xpose.msra.mxu0 %v2505
        %2523 = vmatmul.f32.gmra.mxu0 %v2502
        %v2524 = vpop.f32.mrf.mxu0
        %v2525 = vadd.f32 0.0, %v2524
        %2526 = vdwg.mxu0
        %v2528 = vsel %vm1088, %v2218, 0
        %v2531 = vsel %vm1088, %v2464, 0
        %2533 = vmatpush.xpose.msra.mxu0 0.0
        %2534 = vmatpush.xpose.msra.mxu0 0.0
        %2535 = vmatpush.xpose.msra.mxu0 0.0
        %2536 = vmatpush.xpose.msra.mxu0 0.0
        %2537 = vmatpush.xpose.msra.mxu0 0.0
        %2538 = vmatpush.xpose.msra.mxu0 0.0
        %2539 = vmatpush.xpose.msra.mxu0 0.0
        %2540 = vmatpush.xpose.msra.mxu0 0.0
        %2541 = vmatpush.xpose.msra.mxu0 0.0
        %2542 = vmatpush.xpose.msra.mxu0 0.0
        %2543 = vmatpush.xpose.msra.mxu0 0.0
        %2544 = vmatpush.xpose.msra.mxu0 0.0
        %2545 = vmatpush.xpose.msra.mxu0 0.0
        %2546 = vmatpush.xpose.msra.mxu0 0.0
        %2547 = vmatpush.xpose.msra.mxu0 0.0
        %2548 = vmatpush.xpose.msra.mxu0 %v2531
        %2549 = vmatmul.f32.gmra.mxu0 %v2528
        %v2550 = vpop.f32.mrf.mxu0
        %v2551 = vadd.f32 0.0, %v2550
        %2552 = vdwg.mxu0
        %v2554 = vsel %vm1088, %v2220, 0
        %v2557 = vsel %vm1088, %v2466, 0
        %2559 = vmatpush.xpose.msra.mxu0 0.0
        %2560 = vmatpush.xpose.msra.mxu0 0.0
        %2561 = vmatpush.xpose.msra.mxu0 0.0
        %2562 = vmatpush.xpose.msra.mxu0 0.0
        %2563 = vmatpush.xpose.msra.mxu0 0.0
        %2564 = vmatpush.xpose.msra.mxu0 0.0
        %2565 = vmatpush.xpose.msra.mxu0 0.0
        %2566 = vmatpush.xpose.msra.mxu0 0.0
        %2567 = vmatpush.xpose.msra.mxu0 0.0
        %2568 = vmatpush.xpose.msra.mxu0 0.0
        %2569 = vmatpush.xpose.msra.mxu0 0.0
        %2570 = vmatpush.xpose.msra.mxu0 0.0
        %2571 = vmatpush.xpose.msra.mxu0 0.0
        %2572 = vmatpush.xpose.msra.mxu0 0.0
        %2573 = vmatpush.xpose.msra.mxu0 0.0
        %2574 = vmatpush.xpose.msra.mxu0 %v2557
        %2575 = vmatmul.f32.gmra.mxu0 %v2554
        %v2576 = vpop.f32.mrf.mxu0
        %v2577 = vadd.f32 0.0, %v2576
        %2578 = vdwg.mxu0
        %v2580 = vsel %vm1088, %v2222, 0
        %v2583 = vsel %vm1088, %v2468, 0
        %2585 = vmatpush.xpose.msra.mxu0 0.0
        %2586 = vmatpush.xpose.msra.mxu0 0.0
        %2587 = vmatpush.xpose.msra.mxu0 0.0
        %2588 = vmatpush.xpose.msra.mxu0 0.0
        %2589 = vmatpush.xpose.msra.mxu0 0.0
        %2590 = vmatpush.xpose.msra.mxu0 0.0
        %2591 = vmatpush.xpose.msra.mxu0 0.0
        %2592 = vmatpush.xpose.msra.mxu0 0.0
        %2593 = vmatpush.xpose.msra.mxu0 0.0
        %2594 = vmatpush.xpose.msra.mxu0 0.0
        %2595 = vmatpush.xpose.msra.mxu0 0.0
        %2596 = vmatpush.xpose.msra.mxu0 0.0
        %2597 = vmatpush.xpose.msra.mxu0 0.0
        %2598 = vmatpush.xpose.msra.mxu0 0.0
        %2599 = vmatpush.xpose.msra.mxu0 0.0
        %2600 = vmatpush.xpose.msra.mxu0 %v2583
        %2601 = vmatmul.f32.gmra.mxu0 %v2580
        %v2602 = vpop.f32.mrf.mxu0
        %v2603 = vadd.f32 0.0, %v2602
        %2604 = vdwg.mxu0
        %v2606 = vsel %vm1088, %v2224, 0
        %v2609 = vsel %vm1088, %v2470, 0
        %2611 = vmatpush.xpose.msra.mxu0 0.0
        %2612 = vmatpush.xpose.msra.mxu0 0.0
        %2613 = vmatpush.xpose.msra.mxu0 0.0
        %2614 = vmatpush.xpose.msra.mxu0 0.0
        %2615 = vmatpush.xpose.msra.mxu0 0.0
        %2616 = vmatpush.xpose.msra.mxu0 0.0
        %2617 = vmatpush.xpose.msra.mxu0 0.0
        %2618 = vmatpush.xpose.msra.mxu0 0.0
        %2619 = vmatpush.xpose.msra.mxu0 0.0
        %2620 = vmatpush.xpose.msra.mxu0 0.0
        %2621 = vmatpush.xpose.msra.mxu0 0.0
        %2622 = vmatpush.xpose.msra.mxu0 0.0
        %2623 = vmatpush.xpose.msra.mxu0 0.0
        %2624 = vmatpush.xpose.msra.mxu0 0.0
        %2625 = vmatpush.xpose.msra.mxu0 0.0
        %2626 = vmatpush.xpose.msra.mxu0 %v2609
        %2627 = vmatmul.f32.gmra.mxu0 %v2606
        %v2628 = vpop.f32.mrf.mxu0
        %v2629 = vadd.f32 0.0, %v2628
        %2630 = vdwg.mxu0
        %v2632 = vsel %vm1088, %v2226, 0
        %v2635 = vsel %vm1088, %v2472, 0
        %2637 = vmatpush.xpose.msra.mxu0 0.0
        %2638 = vmatpush.xpose.msra.mxu0 0.0
        %2639 = vmatpush.xpose.msra.mxu0 0.0
        %2640 = vmatpush.xpose.msra.mxu0 0.0
        %2641 = vmatpush.xpose.msra.mxu0 0.0
        %2642 = vmatpush.xpose.msra.mxu0 0.0
        %2643 = vmatpush.xpose.msra.mxu0 0.0
        %2644 = vmatpush.xpose.msra.mxu0 0.0
        %2645 = vmatpush.xpose.msra.mxu0 0.0
        %2646 = vmatpush.xpose.msra.mxu0 0.0
        %2647 = vmatpush.xpose.msra.mxu0 0.0
        %2648 = vmatpush.xpose.msra.mxu0 0.0
        %2649 = vmatpush.xpose.msra.mxu0 0.0
        %2650 = vmatpush.xpose.msra.mxu0 0.0
        %2651 = vmatpush.xpose.msra.mxu0 0.0
        %2652 = vmatpush.xpose.msra.mxu0 %v2635
        %2653 = vmatmul.f32.gmra.mxu0 %v2632
        %v2654 = vpop.f32.mrf.mxu0
        %v2655 = vadd.f32 0.0, %v2654
        %2656 = vdwg.mxu0
        %v2658 = vsel %vm1088, %v2228, 0
        %v2661 = vsel %vm1088, %v2474, 0
        %2663 = vmatpush.xpose.msra.mxu0 0.0
        %2664 = vmatpush.xpose.msra.mxu0 0.0
        %2665 = vmatpush.xpose.msra.mxu0 0.0
        %2666 = vmatpush.xpose.msra.mxu0 0.0
        %2667 = vmatpush.xpose.msra.mxu0 0.0
        %2668 = vmatpush.xpose.msra.mxu0 0.0
        %2669 = vmatpush.xpose.msra.mxu0 0.0
        %2670 = vmatpush.xpose.msra.mxu0 0.0
        %2671 = vmatpush.xpose.msra.mxu0 0.0
        %2672 = vmatpush.xpose.msra.mxu0 0.0
        %2673 = vmatpush.xpose.msra.mxu0 0.0
        %2674 = vmatpush.xpose.msra.mxu0 0.0
        %2675 = vmatpush.xpose.msra.mxu0 0.0
        %2676 = vmatpush.xpose.msra.mxu0 0.0
        %2677 = vmatpush.xpose.msra.mxu0 0.0
        %2678 = vmatpush.xpose.msra.mxu0 %v2661
        %2679 = vmatmul.f32.gmra.mxu0 %v2658
        %v2680 = vpop.f32.mrf.mxu0
        %v2681 = vadd.f32 0.0, %v2680
        %2682 = vdwg.mxu0
        %v2683 = vsel %vm1297, %v2499, -inf
        %2684 = vmax.xlane.f32.xlu0 %v2683
        %v2685 = vpop.xlane.xlu0 %2684
        %v2686 = vsel %vm1297, %v2525, -inf
        %2687 = vmax.xlane.f32.xlu0 %v2686
        %v2688 = vpop.xlane.xlu0 %2687
        %v2689 = vsel %vm1297, %v2551, -inf
        %2690 = vmax.xlane.f32.xlu0 %v2689
        %v2691 = vpop.xlane.xlu0 %2690
        %v2692 = vsel %vm1297, %v2577, -inf
        %2693 = vmax.xlane.f32.xlu0 %v2692
        %v2694 = vpop.xlane.xlu0 %2693
        %v2695 = vsel %vm1297, %v2603, -inf
        %2696 = vmax.xlane.f32.xlu0 %v2695
        %v2697 = vpop.xlane.xlu0 %2696
        %v2698 = vsel %vm1297, %v2629, -inf
        %2699 = vmax.xlane.f32.xlu0 %v2698
        %v2700 = vpop.xlane.xlu0 %2699
        %v2701 = vsel %vm1297, %v2655, -inf
        %2702 = vmax.xlane.f32.xlu0 %v2701
        %v2703 = vpop.xlane.xlu0 %2702
        %v2704 = vsel %vm1297, %v2681, -inf
        %2705 = vmax.xlane.f32.xlu0 %v2704
        %v2706 = vpop.xlane.xlu0 %2705
        %v2707 = vsub.f32 %v2499, %v2685
        %v2708 = vsub.f32 %v2525, %v2688
        %v2709 = vsub.f32 %v2551, %v2691
        %v2710 = vsub.f32 %v2577, %v2694
        %v2711 = vsub.f32 %v2603, %v2697
        %v2712 = vsub.f32 %v2629, %v2700
        %v2713 = vsub.f32 %v2655, %v2703
        %v2714 = vsub.f32 %v2681, %v2706
        %v2715 = vmul.f32 %v2707, 1.442695
        %v2716 = vpow.pop %v2715
        %v2717 = vmul.f32 %v2708, 1.442695
        %v2718 = vpow.pop %v2717
        %v2719 = vmul.f32 %v2709, 1.442695
        %v2720 = vpow.pop %v2719
        %v2721 = vmul.f32 %v2710, 1.442695
        %v2722 = vpow.pop %v2721
        %v2723 = vmul.f32 %v2711, 1.442695
        %v2724 = vpow.pop %v2723
        %v2725 = vmul.f32 %v2712, 1.442695
        %v2726 = vpow.pop %v2725
        %v2727 = vmul.f32 %v2713, 1.442695
        %v2728 = vpow.pop %v2727
        %v2729 = vmul.f32 %v2714, 1.442695
        %v2730 = vpow.pop %v2729
        %v2731 = vsel %vm1297, %v2716, 0.0
        %2732 = vadd.xlane.f32.xlu0 %v2731
        %v2733 = vpop.xlane.xlu0 %2732
        %v2734 = vsel %vm1297, %v2718, 0.0
        %2735 = vadd.xlane.f32.xlu0 %v2734
        %v2736 = vpop.xlane.xlu0 %2735
        %v2737 = vsel %vm1297, %v2720, 0.0
        %2738 = vadd.xlane.f32.xlu0 %v2737
        %v2739 = vpop.xlane.xlu0 %2738
        %v2740 = vsel %vm1297, %v2722, 0.0
        %2741 = vadd.xlane.f32.xlu0 %v2740
        %v2742 = vpop.xlane.xlu0 %2741
        %v2743 = vsel %vm1297, %v2724, 0.0
        %2744 = vadd.xlane.f32.xlu0 %v2743
        %v2745 = vpop.xlane.xlu0 %2744
        %v2746 = vsel %vm1297, %v2726, 0.0
        %2747 = vadd.xlane.f32.xlu0 %v2746
        %v2748 = vpop.xlane.xlu0 %2747
        %v2749 = vsel %vm1297, %v2728, 0.0
        %2750 = vadd.xlane.f32.xlu0 %v2749
        %v2751 = vpop.xlane.xlu0 %2750
        %v2752 = vsel %vm1297, %v2730, 0.0
        %2753 = vadd.xlane.f32.xlu0 %v2752
        %v2754 = vpop.xlane.xlu0 %2753
        %v2755 = vrcp.pop %v2733
        %v2756 = vrcp.pop %v2736
        %v2757 = vrcp.pop %v2739
        %v2758 = vrcp.pop %v2742
        %v2759 = vrcp.pop %v2745
        %v2760 = vrcp.pop %v2748
        %v2761 = vrcp.pop %v2751
        %v2762 = vrcp.pop %v2754
        %v2763 = vmul.f32 %v2716, %v2755
        %v2764 = vmul.f32 %v2718, %v2756
        %v2765 = vmul.f32 %v2720, %v2757
        %v2766 = vmul.f32 %v2722, %v2758
        %v2767 = vmul.f32 %v2724, %v2759
        %v2768 = vmul.f32 %v2726, %v2760
        %v2769 = vmul.f32 %v2728, %v2761
        %v2770 = vmul.f32 %v2730, %v2762
        %2771 = vst.msk [vmem:[%s334] sm:$0xff] %vm1297, %v2763
        %2772 = vst.msk [vmem:[%s334 + $0x8] sm:$0xff] %vm1297, %v2764
        %2773 = vst.msk [vmem:[%s334 + $0x10] sm:$0xff] %vm1297, %v2765
        %2774 = vst.msk [vmem:[%s334 + $0x18] sm:$0xff] %vm1297, %v2766
        %2775 = vst.msk [vmem:[%s334 + $0x20] sm:$0xff] %vm1297, %v2767
        %2776 = vst.msk [vmem:[%s334 + $0x28] sm:$0xff] %vm1297, %v2768
        %2777 = vst.msk [vmem:[%s334 + $0x30] sm:$0xff] %vm1297, %v2769
        %2778 = vst.msk [vmem:[%s334 + $0x38] sm:$0xff] %vm1297, %v2770
        %v2780 = vsel %vm1297, %v2763, 0
        %v2783 = vsel %vm1297, %v2764, 0
        %v2786 = vsel %vm1297, %v2765, 0
        %v2789 = vsel %vm1297, %v2766, 0
        %v2792 = vsel %vm1297, %v2767, 0
        %v2795 = vsel %vm1297, %v2768, 0
        %v2798 = vsel %vm1297, %v2769, 0
        %v2801 = vsel %vm1297, %v2770, 0
        %2803 = vmatpush.msra.mxu0 0.0
        %2804 = vmatpush.msra.mxu0 0.0
        %2805 = vmatpush.msra.mxu0 0.0
        %2806 = vmatpush.msra.mxu0 0.0
        %2807 = vmatpush.msra.mxu0 0.0
        %2808 = vmatpush.msra.mxu0 0.0
        %2809 = vmatpush.msra.mxu0 0.0
        %2810 = vmatpush.msra.mxu0 0.0
        %2811 = vmatpush.msra.mxu0 0.0
        %2812 = vmatpush.msra.mxu0 0.0
        %2813 = vmatpush.msra.mxu0 0.0
        %2814 = vmatpush.msra.mxu0 0.0
        %2815 = vmatpush.msra.mxu0 0.0
        %2816 = vmatpush.msra.mxu0 0.0
        %2817 = vmatpush.msra.mxu0 0.0
        %2818 = vmatpush.msra.mxu0 %v1853
        %2819 = vmatmul.f32.gmra.mxu0 %v2780
        %v2820 = vpop.f32.mrf.mxu0
        %v2821 = vadd.f32 0.0, %v2820
        %2822 = vmatmul.f32.gmra.mxu0 %v2783
        %v2823 = vpop.f32.mrf.mxu0
        %v2824 = vadd.f32 0.0, %v2823
        %2825 = vmatmul.f32.gmra.mxu0 %v2786
        %v2826 = vpop.f32.mrf.mxu0
        %v2827 = vadd.f32 0.0, %v2826
        %2828 = vmatmul.f32.gmra.mxu0 %v2789
        %v2829 = vpop.f32.mrf.mxu0
        %v2830 = vadd.f32 0.0, %v2829
        %2831 = vmatmul.f32.gmra.mxu0 %v2792
        %v2832 = vpop.f32.mrf.mxu0
        %v2833 = vadd.f32 0.0, %v2832
        %2834 = vmatmul.f32.gmra.mxu0 %v2795
        %v2835 = vpop.f32.mrf.mxu0
        %v2836 = vadd.f32 0.0, %v2835
        %2837 = vmatmul.f32.gmra.mxu0 %v2798
        %v2838 = vpop.f32.mrf.mxu0
        %v2839 = vadd.f32 0.0, %v2838
        %2840 = vmatmul.f32.gmra.mxu0 %v2801
        %v2841 = vpop.f32.mrf.mxu0
        %v2842 = vadd.f32 0.0, %v2841
        %2843 = vdwg.mxu0
        %2844 = vmatpush.msra.mxu0 %v1870
        %2845 = vmatpush.msra.mxu0 %v1869
        %2846 = vmatpush.msra.mxu0 %v1868
        %2847 = vmatpush.msra.mxu0 %v1867
        %2848 = vmatpush.msra.mxu0 %v1866
        %2849 = vmatpush.msra.mxu0 %v1865
        %2850 = vmatpush.msra.mxu0 %v1864
        %2851 = vmatpush.msra.mxu0 %v1863
        %2852 = vmatpush.msra.mxu0 %v1862
        %2853 = vmatpush.msra.mxu0 %v1861
        %2854 = vmatpush.msra.mxu0 %v1860
        %2855 = vmatpush.msra.mxu0 %v1859
        %2856 = vmatpush.msra.mxu0 %v1858
        %2857 = vmatpush.msra.mxu0 %v1857
        %2858 = vmatpush.msra.mxu0 %v1856
        %2859 = vmatpush.msra.mxu0 %v1855
        %2860 = vmatmul.f32.gmra.mxu0 %v2821
        %v2861 = vpop.f32.mrf.mxu0
        %v2862 = vadd.f32 0.0, %v2861
        %2863 = vdwg.mxu0
        %2864 = vmatpush.msra.mxu0 %v1886
        %2865 = vmatpush.msra.mxu0 %v1885
        %2866 = vmatpush.msra.mxu0 %v1884
        %2867 = vmatpush.msra.mxu0 %v1883
        %2868 = vmatpush.msra.mxu0 %v1882
        %2869 = vmatpush.msra.mxu0 %v1881
        %2870 = vmatpush.msra.mxu0 %v1880
        %2871 = vmatpush.msra.mxu0 %v1879
        %2872 = vmatpush.msra.mxu0 %v1878
        %2873 = vmatpush.msra.mxu0 %v1877
        %2874 = vmatpush.msra.mxu0 %v1876
        %2875 = vmatpush.msra.mxu0 %v1875
        %2876 = vmatpush.msra.mxu0 %v1874
        %2877 = vmatpush.msra.mxu0 %v1873
        %2878 = vmatpush.msra.mxu0 %v1872
        %2879 = vmatpush.msra.mxu0 %v1871
        %2880 = vmatmul.f32.gmra.mxu0 %v2824
        %v2881 = vpop.f32.mrf.mxu0
        %v2882 = vadd.f32 0.0, %v2881
        %2883 = vdwg.mxu0
        %2884 = vmatpush.msra.mxu0 %v1902
        %2885 = vmatpush.msra.mxu0 %v1901
        %2886 = vmatpush.msra.mxu0 %v1900
        %2887 = vmatpush.msra.mxu0 %v1899
        %2888 = vmatpush.msra.mxu0 %v1898
        %2889 = vmatpush.msra.mxu0 %v1897
        %2890 = vmatpush.msra.mxu0 %v1896
        %2891 = vmatpush.msra.mxu0 %v1895
        %2892 = vmatpush.msra.mxu0 %v1894
        %2893 = vmatpush.msra.mxu0 %v1893
        %2894 = vmatpush.msra.mxu0 %v1892
        %2895 = vmatpush.msra.mxu0 %v1891
        %2896 = vmatpush.msra.mxu0 %v1890
        %2897 = vmatpush.msra.mxu0 %v1889
        %2898 = vmatpush.msra.mxu0 %v1888
        %2899 = vmatpush.msra.mxu0 %v1887
        %2900 = vmatmul.f32.gmra.mxu0 %v2827
        %v2901 = vpop.f32.mrf.mxu0
        %v2902 = vadd.f32 0.0, %v2901
        %2903 = vdwg.mxu0
        %2904 = vmatpush.msra.mxu0 %v1918
        %2905 = vmatpush.msra.mxu0 %v1917
        %2906 = vmatpush.msra.mxu0 %v1916
        %2907 = vmatpush.msra.mxu0 %v1915
        %2908 = vmatpush.msra.mxu0 %v1914
        %2909 = vmatpush.msra.mxu0 %v1913
        %2910 = vmatpush.msra.mxu0 %v1912
        %2911 = vmatpush.msra.mxu0 %v1911
        %2912 = vmatpush.msra.mxu0 %v1910
        %2913 = vmatpush.msra.mxu0 %v1909
        %2914 = vmatpush.msra.mxu0 %v1908
        %2915 = vmatpush.msra.mxu0 %v1907
        %2916 = vmatpush.msra.mxu0 %v1906
        %2917 = vmatpush.msra.mxu0 %v1905
        %2918 = vmatpush.msra.mxu0 %v1904
        %2919 = vmatpush.msra.mxu0 %v1903
        %2920 = vmatmul.f32.gmra.mxu0 %v2830
        %v2921 = vpop.f32.mrf.mxu0
        %v2922 = vadd.f32 0.0, %v2921
        %2923 = vdwg.mxu0
        %2924 = vmatpush.msra.mxu0 %v1934
        %2925 = vmatpush.msra.mxu0 %v1933
        %2926 = vmatpush.msra.mxu0 %v1932
        %2927 = vmatpush.msra.mxu0 %v1931
        %2928 = vmatpush.msra.mxu0 %v1930
        %2929 = vmatpush.msra.mxu0 %v1929
        %2930 = vmatpush.msra.mxu0 %v1928
        %2931 = vmatpush.msra.mxu0 %v1927
        %2932 = vmatpush.msra.mxu0 %v1926
        %2933 = vmatpush.msra.mxu0 %v1925
        %2934 = vmatpush.msra.mxu0 %v1924
        %2935 = vmatpush.msra.mxu0 %v1923
        %2936 = vmatpush.msra.mxu0 %v1922
        %2937 = vmatpush.msra.mxu0 %v1921
        %2938 = vmatpush.msra.mxu0 %v1920
        %2939 = vmatpush.msra.mxu0 %v1919
        %2940 = vmatmul.f32.gmra.mxu0 %v2833
        %v2941 = vpop.f32.mrf.mxu0
        %v2942 = vadd.f32 0.0, %v2941
        %2943 = vdwg.mxu0
        %2944 = vmatpush.msra.mxu0 %v1950
        %2945 = vmatpush.msra.mxu0 %v1949
        %2946 = vmatpush.msra.mxu0 %v1948
        %2947 = vmatpush.msra.mxu0 %v1947
        %2948 = vmatpush.msra.mxu0 %v1946
        %2949 = vmatpush.msra.mxu0 %v1945
        %2950 = vmatpush.msra.mxu0 %v1944
        %2951 = vmatpush.msra.mxu0 %v1943
        %2952 = vmatpush.msra.mxu0 %v1942
        %2953 = vmatpush.msra.mxu0 %v1941
        %2954 = vmatpush.msra.mxu0 %v1940
        %2955 = vmatpush.msra.mxu0 %v1939
        %2956 = vmatpush.msra.mxu0 %v1938
        %2957 = vmatpush.msra.mxu0 %v1937
        %2958 = vmatpush.msra.mxu0 %v1936
        %2959 = vmatpush.msra.mxu0 %v1935
        %2960 = vmatmul.f32.gmra.mxu0 %v2836
        %v2961 = vpop.f32.mrf.mxu0
        %v2962 = vadd.f32 0.0, %v2961
        %2963 = vdwg.mxu0
        %2964 = vmatpush.msra.mxu0 %v1966
        %2965 = vmatpush.msra.mxu0 %v1965
        %2966 = vmatpush.msra.mxu0 %v1964
        %2967 = vmatpush.msra.mxu0 %v1963
        %2968 = vmatpush.msra.mxu0 %v1962
        %2969 = vmatpush.msra.mxu0 %v1961
        %2970 = vmatpush.msra.mxu0 %v1960
        %2971 = vmatpush.msra.mxu0 %v1959
        %2972 = vmatpush.msra.mxu0 %v1958
        %2973 = vmatpush.msra.mxu0 %v1957
        %2974 = vmatpush.msra.mxu0 %v1956
        %2975 = vmatpush.msra.mxu0 %v1955
        %2976 = vmatpush.msra.mxu0 %v1954
        %2977 = vmatpush.msra.mxu0 %v1953
        %2978 = vmatpush.msra.mxu0 %v1952
        %2979 = vmatpush.msra.mxu0 %v1951
        %2980 = vmatmul.f32.gmra.mxu0 %v2839
        %v2981 = vpop.f32.mrf.mxu0
        %v2982 = vadd.f32 0.0, %v2981
        %2983 = vdwg.mxu0
        %2984 = vmatpush.msra.mxu0 %v1982
        %2985 = vmatpush.msra.mxu0 %v1981
        %2986 = vmatpush.msra.mxu0 %v1980
        %2987 = vmatpush.msra.mxu0 %v1979
        %2988 = vmatpush.msra.mxu0 %v1978
        %2989 = vmatpush.msra.mxu0 %v1977
        %2990 = vmatpush.msra.mxu0 %v1976
        %2991 = vmatpush.msra.mxu0 %v1975
        %2992 = vmatpush.msra.mxu0 %v1974
        %2993 = vmatpush.msra.mxu0 %v1973
        %2994 = vmatpush.msra.mxu0 %v1972
        %2995 = vmatpush.msra.mxu0 %v1971
        %2996 = vmatpush.msra.mxu0 %v1970
        %2997 = vmatpush.msra.mxu0 %v1969
        %2998 = vmatpush.msra.mxu0 %v1968
        %2999 = vmatpush.msra.mxu0 %v1967
        %3000 = vmatmul.f32.gmra.mxu0 %v2842
        %v3001 = vpop.f32.mrf.mxu0
        %v3002 = vadd.f32 0.0, %v3001
        %3003 = vdwg.mxu0
        %v3004 = vsel %vm341, %v2862, 0.0
        %v3005 = vsel %vm341, %v2882, 0.0
        %v3006 = vadd.f32 %v3004, %v3005
        %v3007 = vsel %vm341, %v2902, 0.0
        %v3008 = vadd.f32 %v3006, %v3007
        %v3009 = vsel %vm341, %v2922, 0.0
        %v3010 = vadd.f32 %v3008, %v3009
        %v3011 = vsel %vm341, %v2942, 0.0
        %v3012 = vadd.f32 %v3010, %v3011
        %v3013 = vsel %vm341, %v2962, 0.0
        %v3014 = vadd.f32 %v3012, %v3013
        %v3015 = vsel %vm341, %v2982, 0.0
        %v3016 = vadd.f32 %v3014, %v3015
        %v3017 = vsel %vm341, %v3002, 0.0
        %v3018 = vadd.f32 %v3016, %v3017
        %v3019 = vperm.slane %v1733, 2
        %v3020 = vadd.f32 %v3018, %v3019
        %v3021 = vadd.f32 %v3020, %v1731
        %v3022 = vsel %vm341, %v3021, 0.0
        %3023 = vadd.xlane.f32.xlu0 %v3022
        %v3024 = vpop.xlane.xlu0 %3023
        %v3025 = vmul.f32 %v3024, %v351
        %v3026 = vsub.f32 %v3021, %v3025
        %v3027 = vmul.f32 %v3026, %v3026
        %v3028 = vsel %vm341, %v3027, 0.0
        %3029 = vadd.xlane.f32.xlu0 %v3028
        %v3030 = vpop.xlane.xlu0 %3029
        %v3031 = vmul.f32 %v3030, %v351
        %v3032 = vadd.f32 %v3031, 1e-05
        %v3033 = vrsqrt.pop %v3032
        %v3034 = vmul.f32 %v3033, %v3032
        %v3035 = vmul.f32 %v3034, %v3033
        %v3036 = vmul.f32 0.5, %v3035
        %v3037 = vsub.f32 1.5, %v3036
        %v3038 = vmul.f32 %v3033, %v3037
        %vm3039 = vweird.f32 %v3032
        %vm3040 = vweird.f32 %v3033
        %vm3041 = vmor %vm3039, %vm3040
        %v3042 = vsel %vm3041, %v3033, %v3038
        %v3043 = vmul.f32 %v3026, %v3042
        %v3044 = vperm.slane %v1733, 3
        %v3045 = vmul.f32 %v3043, %v3044
        %v3046 = vperm.slane %v1733, 4
        %v3047 = vadd.f32 %v3045, %v3046
        %s3048 = scalar_lea.vmem %s4, 64
        %v3049 = vld [vmem:[%s3048] sm:$0xff]
        %v3050 = vld [vmem:[%s3048 + $0x8] sm:$0xff]
        %v3051 = vld [vmem:[%s3048 + $0x10] sm:$0xff]
        %v3052 = vld [vmem:[%s3048 + $0x18] sm:$0xff]
        %v3053 = vld [vmem:[%s3048 + $0x20] sm:$0xff]
        %v3054 = vld [vmem:[%s3048 + $0x28] sm:$0xff]
        %v3055 = vld [vmem:[%s3048 + $0x30] sm:$0xff]
        %v3056 = vld [vmem:[%s3048 + $0x38] sm:$0xff]
        %s3057 = scalar_lea.vmem %s5, 1
        %v3058 = vld [vmem:[%s3057] sm:$0x1]
        %v3060 = vperm.slane %v3058, 0
        %v3063 = vsel %vm341, %v3047, 0
        %3065 = vmatpush.msra.mxu0 0.0
        %3066 = vmatpush.msra.mxu0 0.0
        %3067 = vmatpush.msra.mxu0 0.0
        %3068 = vmatpush.msra.mxu0 0.0
        %3069 = vmatpush.msra.mxu0 0.0
        %3070 = vmatpush.msra.mxu0 0.0
        %3071 = vmatpush.msra.mxu0 0.0
        %3072 = vmatpush.msra.mxu0 0.0
        %3073 = vmatpush.msra.mxu0 %v3056
        %3074 = vmatpush.msra.mxu0 %v3055
        %3075 = vmatpush.msra.mxu0 %v3054
        %3076 = vmatpush.msra.mxu0 %v3053
        %3077 = vmatpush.msra.mxu0 %v3052
        %3078 = vmatpush.msra.mxu0 %v3051
        %3079 = vmatpush.msra.mxu0 %v3050
        %3080 = vmatpush.msra.mxu0 %v3049
        %3081 = vmatmul.f32.gmra.mxu0 %v3063
        %v3082 = vpop.f32.mrf.mxu0
        %v3083 = vadd.f32 %v3060, %v3082
        %3084 = vdwg.mxu0
        %v3085 = vmul.f32 %v3083, 0.5
        %v3086 = vmul.f32 %v3083, 0.044715
        %v3087 = vmul.f32 %v3086, %v3083
        %v3088 = vmul.f32 %v3087, %v3083
        %v3089 = vadd.f32 %v3083, %v3088
        %v3090 = vmul.f32 %v3089, 0.7978846
        %v3091 = vtanh.pop %v3090
        %v3092 = vadd.f32 %v3091, 1.0
        %v3093 = vmul.f32 %v3085, %v3092
        %s3094 = scalar_lea.vmem %s6, 64
        %v3095 = vld [vmem:[%s3094] sm:$0xff]
        %v3096 = vld [vmem:[%s3094 + $0x8] sm:$0xff]
        %v3097 = vld [vmem:[%s3094 + $0x10] sm:$0xff]
        %v3098 = vld [vmem:[%s3094 + $0x18] sm:$0xff]
        %v3099 = vld [vmem:[%s3094 + $0x20] sm:$0xff]
        %v3100 = vld [vmem:[%s3094 + $0x28] sm:$0xff]
        %v3101 = vld [vmem:[%s3094 + $0x30] sm:$0xff]
        %v3102 = vld [vmem:[%s3094 + $0x38] sm:$0xff]
        %v3103 = vperm.slane %v1733, 5
        %v3105 = vsel %vm341, %v3093, 0
        %3107 = vmatpush.msra.mxu0 0.0
        %3108 = vmatpush.msra.mxu0 0.0
        %3109 = vmatpush.msra.mxu0 0.0
        %3110 = vmatpush.msra.mxu0 0.0
        %3111 = vmatpush.msra.mxu0 0.0
        %3112 = vmatpush.msra.mxu0 0.0
        %3113 = vmatpush.msra.mxu0 0.0
        %3114 = vmatpush.msra.mxu0 0.0
        %3115 = vmatpush.msra.mxu0 %v3102
        %3116 = vmatpush.msra.mxu0 %v3101
        %3117 = vmatpush.msra.mxu0 %v3100
        %3118 = vmatpush.msra.mxu0 %v3099
        %3119 = vmatpush.msra.mxu0 %v3098
        %3120 = vmatpush.msra.mxu0 %v3097
        %3121 = vmatpush.msra.mxu0 %v3096
        %3122 = vmatpush.msra.mxu0 %v3095
        %3123 = vmatmul.f32.gmra.mxu0 %v3105
        %v3124 = vpop.f32.mrf.mxu0
        %v3125 = vadd.f32 %v3103, %v3124
        %3126 = vdwg.mxu0
        %v3127 = vadd.f32 %v3125, %v3021
        %3128 = vst.msk [vmem:[%s327] sm:$0xff] %vm341, %v3127
        %s3129 = sand.u32 %s208, 1
        %s3130 = scalar_lea.sflag [#allocation3], %s3129
        %s3131 = sand.u32 %s208, 1
        %s3132 = smul.addr %s3131, 8
        %s3133 = scalar_lea.vmem [#allocation2], %s3132
        %s3134 = sand.u32 %s234, 1
        %s3135 = scalar_lea.sflag [#allocation5], %s3134
        %s3136 = sand.u32 %s234, 1
        %s3137 = smul.addr %s3136, 64
        %s3138 = scalar_lea.vmem [#allocation4], %s3137
        // Predicated region
        $region53: #{tpu_custom_call.1} parent=51 // pred_check
          %p3139 = pneg %p218
        $region54: #{tpu_custom_call.1} parent=51 // pred_check_branch
          %3141 = sbr.rel (%p3139) target = $region56
        $region55: #{tpu_custom_call.1} parent=51 // pred_region
          %3143 = vsyncadd %s3130, 0
          %s3144 = smul.addr %s27, 8
          %s3145 = scalar_lea.hbm %s8, %s3144
          %s3147 = sshll.u32 %s3133, 4
          %s3148 = int_to_ptr.vmem [resolvable:$true] %s3147
          %s3149 = sshll.u32 %s3145, 4
          %s3150 = int_to_ptr.hbm [resolvable:$true] %s3149
          %3152 = dma.vmem_to_hbm [thread:$0]  %s3148, 128, %s3150, %s3130
        $region56: #{tpu_custom_call.1} parent=51 // pred_fallthru
          _
        // Predicated region
        $region57: #{tpu_custom_call.1} parent=51 // pred_check
          %p3153 = pneg %p244
        $region58: #{tpu_custom_call.1} parent=51 // pred_check_branch
          %3155 = sbr.rel (%p3153) target = $region60
        $region59: #{tpu_custom_call.1} parent=51 // pred_region
          %3157 = vsyncadd %s3135, 0
          %s3158 = smul.addr %s27, 8
          %s3159 = smul.addr %s3158, 8
          %s3160 = scalar_lea.hbm %s9, %s3159
          %s3161 = sshll.u32 %s3138, 4
          %s3162 = int_to_ptr.vmem [resolvable:$true] %s3161
          %s3163 = sshll.u32 %s3160, 4
          %s3164 = int_to_ptr.hbm [resolvable:$true] %s3163
          %3169 = dma.vmem_to_hbm [thread:$0]  %s3162, 1024, %s3164, %s3135, 128, 128, 8
        $region60: #{tpu_custom_call.1} parent=51 // pred_fallthru
          _
      $region52: #{tpu_custom_call.1} parent=5 // pred_fallthru
        _
      %p3170 = scmp.le.s32.totalorder 2, %s22
      // Predicated region
      $region61: #{tpu_custom_call.1} parent=5 // pred_check
        %p3171 = pneg %p3170
      $region62: #{tpu_custom_call.1} parent=5 // pred_check_branch
        %3173 = sbr.rel (%p3171) target = $region64
      $region63: #{tpu_custom_call.1} parent=5 // pred_region
        %s3174 = ssub.s32 %s22, 2
        // Predicated region
        $region65: #{tpu_custom_call.1} parent=63 // pred_check
          %p3175 = pneg %p224
        $region66: #{tpu_custom_call.1} parent=63 // pred_check_branch
          %3177 = sbr.rel (%p3175) target = $region68
        $region67: #{tpu_custom_call.1} parent=63 // pred_region
          %s3178 = sand.u32 %s209, 1
          %s3179 = scalar_lea.sflag [#allocation3], %s3178
          %s3180 = sand.u32 %s209, 1
          %s3181 = smul.addr %s3180, 8
          %s3182 = scalar_lea.vmem [#allocation2], %s3181
          %3184 = dma.done %s3179, 128
        $region68: #{tpu_custom_call.1} parent=63 // pred_fallthru
          _
        // Predicated region
        $region69: #{tpu_custom_call.1} parent=63 // pred_check
          %p3185 = pneg %p250
        $region70: #{tpu_custom_call.1} parent=63 // pred_check_branch
          %3187 = sbr.rel (%p3185) target = $region72
        $region71: #{tpu_custom_call.1} parent=63 // pred_region
          %s3188 = sand.u32 %s235, 1
          %s3189 = scalar_lea.sflag [#allocation5], %s3188
          %s3190 = sand.u32 %s235, 1
          %s3191 = smul.addr %s3190, 64
          %s3192 = scalar_lea.vmem [#allocation4], %s3191
          %3194 = dma.done %s3189, 1024
        $region72: #{tpu_custom_call.1} parent=63 // pred_fallthru
          _
      $region64: #{tpu_custom_call.1} parent=5 // pred_fallthru
        _
    $region6: #{tpu_custom_call.1} parent=1 // loop_footer
      %s26 = sadd.s32 1, %s22
    $region7: #{tpu_custom_call.1} parent=1 // loop_footer_branch
      %21 = sbr.rel target = $region3
    $region8: #{tpu_custom_call.1} parent=1 // loop_exit
      _
    %3195 = vsyncpa [#allocation3], 1
    %s3196 = scalar_lea.sflag [#allocation3], 1
    %3197 = vsyncpa %s3196, 1
    %3198 = vsyncpa [#allocation5], 1
    %s3199 = scalar_lea.sflag [#allocation5], 1
    %3200 = vsyncpa %s3199, 1

</llo_original>
